<compile_context>
chip_gen: v6e
topology: v6e:2x2x1
jax: 0.10.0
libtpu: 0.0.40
codegen_flags: <defaults>
</compile_context>

<pallas_src>
import math

import jax
import jax.numpy as jnp
from jax.experimental import pallas as pl
from jax.experimental.pallas import tpu as pltpu

# ---------------------------------------------------------------------------
# Original (unpacked) parameter naming — used by init + pure-JAX reference
# ---------------------------------------------------------------------------
LINEAR_NAMES = [
    "enc1_wq", "enc1_wk", "enc1_wv", "enc1_fc1", "enc1_fc2",
    "enc2_wq", "enc2_wk", "enc2_wv", "enc2_fc1", "enc2_fc2",
    "decsat1_wq", "decsat1_wk", "decsat1_wv", "decsat1_wo",
    "aux",
    "dec1_wq", "dec1_wk", "dec1_wv", "dec1_fc1", "dec1_fc2",
    "decsat2_wq", "decsat2_wk", "decsat2_wv", "decsat2_wo",
    "dec2_wq", "dec2_wk", "dec2_wv", "dec2_fc1", "dec2_fc2",
    "proj",
]
LN_NAMES = ["enc1_ln", "enc2_ln", "dec1_ln", "dec2_ln"]

# Packed operand order passed to the kernel (after x, y)
PACKED_ORDER = [
    "enc_qkv_w", "enc_qkv_b", "enc_fc1_w", "enc_fc1_b", "enc_fc2_w", "enc_fc2_b",
    "sat_qkv_w", "sat_qkv_b", "sat_wo_w", "sat_wo_b",
    "dec_qk_w", "dec_qk_b", "dec_v_w", "dec_v_b",
    "dec_fc1_w", "dec_fc1_b", "dec_fc2_w", "dec_fc2_b",
    "aux_w", "aux_b", "proj_w", "proj_b",
]


# ---------------------------------------------------------------------------
# Pallas kernel: whole forward pass
# ---------------------------------------------------------------------------
def transformer_kernel(
    x_ref, y_ref,
    enc_qkv_w, enc_qkv_b, enc_fc1_w, enc_fc1_b, enc_fc2_w, enc_fc2_b,
    sat_qkv_w, sat_qkv_b, sat_wo_w, sat_wo_b,
    dec_qk_w, dec_qk_b, dec_v_w, dec_v_b,
    dec_fc1_w, dec_fc1_b, dec_fc2_w, dec_fc2_b,
    aux_w, aux_b, proj_w, proj_b,
    out_ref,
):
    f32 = jnp.float32
    x = x_ref[...].astype(f32)          # (n_frames, d_model)
    y = y_ref[...].astype(f32)          # (n_gts, bb_dim)
    d_model = x.shape[-1]
    bb_dim = y.shape[-1]

    def softmax_rows(s):
        s = s - jnp.max(s, axis=-1, keepdims=True)
        e = jnp.exp(s)
        # divide -> EUP approximate reciprocal (off the VPU critical path)
        return e * pl.reciprocal(jnp.sum(e, axis=-1, keepdims=True), approx=True)

    def attn(q, k, v):
        # 1/sqrt(d) scale already folded into the q-projection weights host-side
        s = jax.lax.dot_general(q, k, (((1,), (1,)), ((), ())),
                                preferred_element_type=f32)
        return jnp.dot(softmax_rows(s), v, preferred_element_type=f32)

    def norm(z, eps=1e-5):
        # LayerNorm with the affine (gamma/beta) folded into the following fc1
        mu = jnp.mean(z, axis=-1, keepdims=True)
        var = jnp.mean((z - mu) ** 2, axis=-1, keepdims=True)
        return (z - mu) * jax.lax.rsqrt(var + eps)

    def relu(a):
        return jnp.maximum(a, 0.0)

    def encoder_block(inp, i):
        qkv = jnp.dot(inp, enc_qkv_w[i], preferred_element_type=f32) + enc_qkv_b[i]
        q = qkv[:, :d_model]
        k = qkv[:, d_model:2 * d_model]
        v = qkv[:, 2 * d_model:]
        z = norm(attn(q, k, v))
        h = relu(jnp.dot(z, enc_fc1_w[i], preferred_element_type=f32) + enc_fc1_b[i])
        return inp + jnp.dot(h, enc_fc2_w[i], preferred_element_type=f32) + enc_fc2_b[i]

    def sat_block(inp, i):
        qkv = jnp.dot(inp, sat_qkv_w[i], preferred_element_type=f32) + sat_qkv_b[i]
        q = qkv[:, :bb_dim]
        k = qkv[:, bb_dim:2 * bb_dim]
        v = qkv[:, 2 * bb_dim:]
        z = attn(q, k, v)
        return jnp.dot(z, sat_wo_w[i], preferred_element_type=f32) + sat_wo_b[i]

    def dec_block(mem, val_in, i):
        qk = jnp.dot(mem, dec_qk_w[i], preferred_element_type=f32) + dec_qk_b[i]
        q = qk[:, :d_model]
        k = qk[:, d_model:]
        v = jnp.dot(val_in, dec_v_w[i], preferred_element_type=f32) + dec_v_b[i]
        z = norm(attn(q, k, v))
        h = relu(jnp.dot(z, dec_fc1_w[i], preferred_element_type=f32) + dec_fc1_b[i])
        return jnp.dot(h, dec_fc2_w[i], preferred_element_type=f32) + dec_fc2_b[i]

    # ------------------------- ENCODERS -------------------------
    enc1_z = encoder_block(x, 0)
    enc2_z = encoder_block(enc1_z, 1)

    # ------------------- DECODER SELF-ATTENTION 1 -----------------
    decsat1_z = sat_block(y, 0)

    # ----- aux projection, transpose-free: mem[g,d] = sum_f aux_w[f,g]*enc2_z[f,d] + aux_b[g]
    mem = jax.lax.dot_general(aux_w[...], enc2_z, (((0,), (0,)), ((), ())),
                              preferred_element_type=f32) + aux_b[...]

    # ------------------------- DECODER 1 (no residual) -------------
    dec1_z = dec_block(mem, decsat1_z, 0)

    # ------------------- DECODER SELF-ATTENTION 2 -----------------
    decsat2_z = sat_block(dec1_z, 1)

    # ------------------------- DECODER 2 --------------------------
    dec2_z = decsat2_z + dec_block(mem, decsat2_z, 1)

    # ------------------------ BB GENERATOR ------------------------
    # proj + mean(axis=1) + transposes collapsed to a single matvec
    out_ref[...] = jnp.dot(proj_w[...], dec2_z, preferred_element_type=f32) + proj_b[...]


# ---------------------------------------------------------------------------
# Host-side parameter packing / folding
# ---------------------------------------------------------------------------
def pack_params(params, d_model, bb_dim):
    inv_sd = 1.0 / math.sqrt(d_model)
    inv_sb = 1.0 / math.sqrt(bb_dim)

    def cat_w(names, scales):
        return jnp.concatenate([params[n + "_w"] * s for n, s in zip(names, scales)], axis=1)

    def cat_b(names, scales):
        return jnp.concatenate([params[n + "_b"] * s for n, s in zip(names, scales)], axis=1)

    def fold_ln_fc1(ln, fc1):
        g = params[ln + "_g"]          # (1, feat)
        b = params[ln + "_b"]          # (1, feat)
        w1 = params[fc1 + "_w"]        # (feat, ff)
        b1 = params[fc1 + "_b"]        # (1, ff)
        return g.T * w1, b @ w1 + b1   # z_norm @ (diag(g)W1) + (b@W1 + b1)

    enc1_fc1_w, enc1_fc1_b = fold_ln_fc1("enc1_ln", "enc1_fc1")
    enc2_fc1_w, enc2_fc1_b = fold_ln_fc1("enc2_ln", "enc2_fc1")
    dec1_fc1_w, dec1_fc1_b = fold_ln_fc1("dec1_ln", "dec1_fc1")
    dec2_fc1_w, dec2_fc1_b = fold_ln_fc1("dec2_ln", "dec2_fc1")

    packed = {
        # encoders (leading axis = [enc1, enc2]); scale folded into Wq slice
        "enc_qkv_w": jnp.stack([cat_w(["enc1_wq", "enc1_wk", "enc1_wv"], [inv_sd, 1.0, 1.0]),
                                cat_w(["enc2_wq", "enc2_wk", "enc2_wv"], [inv_sd, 1.0, 1.0])]),
        "enc_qkv_b": jnp.stack([cat_b(["enc1_wq", "enc1_wk", "enc1_wv"], [inv_sd, 1.0, 1.0]),
                                cat_b(["enc2_wq", "enc2_wk", "enc2_wv"], [inv_sd, 1.0, 1.0])]),
        "enc_fc1_w": jnp.stack([enc1_fc1_w, enc2_fc1_w]),
        "enc_fc1_b": jnp.stack([enc1_fc1_b, enc2_fc1_b]),
        "enc_fc2_w": jnp.stack([params["enc1_fc2_w"], params["enc2_fc2_w"]]),
        "enc_fc2_b": jnp.stack([params["enc1_fc2_b"], params["enc2_fc2_b"]]),
        # decoder self-attention (leading axis = [decsat1, decsat2])
        "sat_qkv_w": jnp.stack([cat_w(["decsat1_wq", "decsat1_wk", "decsat1_wv"], [inv_sb, 1.0, 1.0]),
                                cat_w(["decsat2_wq", "decsat2_wk", "decsat2_wv"], [inv_sb, 1.0, 1.0])]),
        "sat_qkv_b": jnp.stack([cat_b(["decsat1_wq", "decsat1_wk", "decsat1_wv"], [inv_sb, 1.0, 1.0]),
                                cat_b(["decsat2_wq", "decsat2_wk", "decsat2_wv"], [inv_sb, 1.0, 1.0])]),
        "sat_wo_w": jnp.stack([params["decsat1_wo_w"], params["decsat2_wo_w"]]),
        "sat_wo_b": jnp.stack([params["decsat1_wo_b"], params["decsat2_wo_b"]]),
        # decoder cross-attention (leading axis = [dec1, dec2])
        "dec_qk_w": jnp.stack([cat_w(["dec1_wq", "dec1_wk"], [inv_sd, 1.0]),
                               cat_w(["dec2_wq", "dec2_wk"], [inv_sd, 1.0])]),
        "dec_qk_b": jnp.stack([cat_b(["dec1_wq", "dec1_wk"], [inv_sd, 1.0]),
                               cat_b(["dec2_wq", "dec2_wk"], [inv_sd, 1.0])]),
        "dec_v_w": jnp.stack([params["dec1_wv_w"], params["dec2_wv_w"]]),
        "dec_v_b": jnp.stack([params["dec1_wv_b"], params["dec2_wv_b"]]),
        "dec_fc1_w": jnp.stack([dec1_fc1_w, dec2_fc1_w]),
        "dec_fc1_b": jnp.stack([dec1_fc1_b, dec2_fc1_b]),
        "dec_fc2_w": jnp.stack([params["dec1_fc2_w"], params["dec2_fc2_w"]]),
        "dec_fc2_b": jnp.stack([params["dec1_fc2_b"], params["dec2_fc2_b"]]),
        # aux projection (bias as a column so the transpose-free output broadcasts)
        "aux_w": params["aux_w"],                                           # (n_frames, n_gts)
        "aux_b": params["aux_b"].T,                                         # (n_gts, 1)
        # proj + mean tail collapsed to a matvec (mean is linear)
        "proj_w": jnp.mean(params["proj_w"], axis=1, keepdims=True).T,      # (1, n_gts)
        "proj_b": jnp.mean(params["proj_b"]).reshape(1, 1),                 # (1, 1)
    }
    return [packed[name] for name in PACKED_ORDER]


# ---------------------------------------------------------------------------
# Wrapper
# ---------------------------------------------------------------------------
def make_transformer_advanced(x, y, params):
    d_model, bb_dim = x.shape[-1], y.shape[-1]
    inputs = [x, y] + pack_params(params, d_model, bb_dim)
    # TODO(synk): for batched (x, y) workloads on v7x, add a "parallel" grid axis so
    # both TensorCores are used; a single sample has no batch dimension to shard.
    out = pl.pallas_call(
        transformer_kernel,
        out_shape=jax.ShapeDtypeStruct((1, bb_dim), jnp.float32),
        in_specs=[pl.BlockSpec(memory_space=pltpu.MemorySpace.VMEM)] * len(inputs),
        out_specs=pl.BlockSpec(memory_space=pltpu.MemorySpace.VMEM),
    )(*inputs)
    return out[0]                                                            # (bb_dim,)


# ---------------------------------------------------------------------------
# Deterministic parameter initialization (torch.nn.Linear-style uniform)
# ---------------------------------------------------------------------------
def init_params(key, d_model, n_frames, n_gts, bb_dim):
    enc_ff, dec_ff = 2 * d_model, 2 * bb_dim
    lin_dims = {
        "enc1_wq": (d_model, d_model), "enc1_wk": (d_model, d_model), "enc1_wv": (d_model, d_model),
        "enc1_fc1": (d_model, enc_ff), "enc1_fc2": (enc_ff, d_model),
        "enc2_wq": (d_model, d_model), "enc2_wk": (d_model, d_model), "enc2_wv": (d_model, d_model),
        "enc2_fc1": (d_model, enc_ff), "enc2_fc2": (enc_ff, d_model),
        "decsat1_wq": (bb_dim, bb_dim), "decsat1_wk": (bb_dim, bb_dim),
        "decsat1_wv": (bb_dim, bb_dim), "decsat1_wo": (bb_dim, bb_dim),
        "aux": (n_frames, n_gts),
        "dec1_wq": (d_model, d_model), "dec1_wk": (d_model, d_model), "dec1_wv": (bb_dim, bb_dim),
        "dec1_fc1": (bb_dim, dec_ff), "dec1_fc2": (dec_ff, bb_dim),
        "decsat2_wq": (bb_dim, bb_dim), "decsat2_wk": (bb_dim, bb_dim),
        "decsat2_wv": (bb_dim, bb_dim), "decsat2_wo": (bb_dim, bb_dim),
        "dec2_wq": (d_model, d_model), "dec2_wk": (d_model, d_model), "dec2_wv": (bb_dim, bb_dim),
        "dec2_fc1": (bb_dim, dec_ff), "dec2_fc2": (dec_ff, bb_dim),
        "proj": (n_gts, n_gts),
    }
    ln_dims = {"enc1_ln": d_model, "enc2_ln": d_model, "dec1_ln": bb_dim, "dec2_ln": bb_dim}

    keys = jax.random.split(key, 2 * len(LINEAR_NAMES) + 2 * len(LN_NAMES))
    params = {}
    for i, name in enumerate(LINEAR_NAMES):
        fin, fout = lin_dims[name]
        bound = 1.0 / math.sqrt(fin)
        params[name + "_w"] = jax.random.uniform(keys[2 * i], (fin, fout), jnp.float32, -bound, bound)
        params[name + "_b"] = jax.random.uniform(keys[2 * i + 1], (1, fout), jnp.float32, -bound, bound)
    off = 2 * len(LINEAR_NAMES)
    for j, name in enumerate(LN_NAMES):
        f = ln_dims[name]
        # randomized affine (instead of torch's 1/0 init) so the LN->fc1 folding is exercised
        params[name + "_g"] = jax.random.uniform(keys[off + 2 * j], (1, f), jnp.float32, 0.5, 1.5)
        params[name + "_b"] = jax.random.uniform(keys[off + 2 * j + 1], (1, f), jnp.float32, -0.5, 0.5)
    return params


# ---------------------------------------------------------------------------
# Pure-JAX reference (uses the ORIGINAL unpacked/unfolded params)
# ---------------------------------------------------------------------------
def reference_forward(x, y, params):
    d_model, bb_dim = x.shape[-1], y.shape[-1]

    def lin(a, n): return a @ params[n + "_w"] + params[n + "_b"]

    def ln(z, n):
        mu = z.mean(-1, keepdims=True)
        var = ((z - mu) ** 2).mean(-1, keepdims=True)
        return (z - mu) / jnp.sqrt(var + 1e-5) * params[n + "_g"] + params[n + "_b"]

    def attn(q, k, v, scale):
        return jax.nn.softmax(q @ k.T * scale, axis=-1) @ v

    relu = jax.nn.relu
    sd, sb = 1.0 / math.sqrt(d_model), 1.0 / math.sqrt(bb_dim)

    z = ln(attn(lin(x, "enc1_wq"), lin(x, "enc1_wk"), lin(x, "enc1_wv"), sd), "enc1_ln")
    enc1_z = x + lin(relu(lin(z, "enc1_fc1")), "enc1_fc2")
    z = ln(attn(lin(enc1_z, "enc2_wq"), lin(enc1_z, "enc2_wk"), lin(enc1_z, "enc2_wv"), sd), "enc2_ln")
    enc2_z = enc1_z + lin(relu(lin(z, "enc2_fc1")), "enc2_fc2")
    decsat1_z = lin(attn(lin(y, "decsat1_wq"), lin(y, "decsat1_wk"), lin(y, "decsat1_wv"), sb), "decsat1_wo")
    enc2_z = lin(enc2_z.T, "aux").T
    dec1_z = ln(attn(lin(enc2_z, "dec1_wq"), lin(enc2_z, "dec1_wk"), lin(decsat1_z, "dec1_wv"), sd), "dec1_ln")
    dec1_z = lin(relu(lin(dec1_z, "dec1_fc1")), "dec1_fc2")
    decsat2_z = lin(attn(lin(dec1_z, "decsat2_wq"), lin(dec1_z, "decsat2_wk"), lin(dec1_z, "decsat2_wv"), sb),
                    "decsat2_wo")
    dec2_z = ln(attn(lin(enc2_z, "dec2_wq"), lin(enc2_z, "dec2_wk"), lin(decsat2_z, "dec2_wv"), sd), "dec2_ln")
    dec2_z = decsat2_z + lin(relu(lin(dec2_z, "dec2_fc1")), "dec2_fc2")
    return lin(dec2_z.T, "proj").mean(1)


# ---------------------------------------------------------------------------
if __name__ == "__main__":
    d_model, n_frames, n_gts, bb_dim = 32, 8, 8, 32

    key = jax.random.PRNGKey(0)
    kx, ky, kp = jax.random.split(key, 3)
    x = jax.random.normal(kx, (n_frames, d_model), jnp.float32)
    y = jax.random.normal(ky, (n_gts, bb_dim), jnp.float32)
    params = init_params(kp, d_model, n_frames, n_gts, bb_dim)

    out = make_transformer_advanced(x, y, params)
    jax.block_until_ready(out)

    assert out.shape == (bb_dim,)
    ref = reference_forward(x, y, params)
    # tolerance slightly loosened vs exact f32 because the softmax denominator uses
    # the EUP approximate reciprocal (per perf review)
    assert jnp.allclose(out, ref, rtol=5e-3, atol=5e-3), (out, ref)

    print("KERNEL_OK")
</pallas_src>

<mosaic_0001>
module attributes {stable_mosaic.version = 11 : i64} {
  func.func @transformer_kernel(%arg0: memref<8x32xf32, #tpu.memory_space<vmem>>, %arg1: memref<8x32xf32, #tpu.memory_space<vmem>>, %arg2: memref<2x32x96xf32, #tpu.memory_space<vmem>>, %arg3: memref<2x1x96xf32, #tpu.memory_space<vmem>>, %arg4: memref<2x32x64xf32, #tpu.memory_space<vmem>>, %arg5: memref<2x1x64xf32, #tpu.memory_space<vmem>>, %arg6: memref<2x64x32xf32, #tpu.memory_space<vmem>>, %arg7: memref<2x1x32xf32, #tpu.memory_space<vmem>>, %arg8: memref<2x32x96xf32, #tpu.memory_space<vmem>>, %arg9: memref<2x1x96xf32, #tpu.memory_space<vmem>>, %arg10: memref<2x32x32xf32, #tpu.memory_space<vmem>>, %arg11: memref<2x1x32xf32, #tpu.memory_space<vmem>>, %arg12: memref<2x32x64xf32, #tpu.memory_space<vmem>>, %arg13: memref<2x1x64xf32, #tpu.memory_space<vmem>>, %arg14: memref<2x32x32xf32, #tpu.memory_space<vmem>>, %arg15: memref<2x1x32xf32, #tpu.memory_space<vmem>>, %arg16: memref<2x32x64xf32, #tpu.memory_space<vmem>>, %arg17: memref<2x1x64xf32, #tpu.memory_space<vmem>>, %arg18: memref<2x64x32xf32, #tpu.memory_space<vmem>>, %arg19: memref<2x1x32xf32, #tpu.memory_space<vmem>>, %arg20: memref<8x8xf32, #tpu.memory_space<vmem>>, %arg21: memref<8x1xf32, #tpu.memory_space<vmem>>, %arg22: memref<1x8xf32, #tpu.memory_space<vmem>>, %arg23: memref<1x1xf32, #tpu.memory_space<vmem>>, %arg24: memref<1x32xf32, #tpu.memory_space<vmem>>) attributes {dimension_semantics = [], scalar_prefetch = 0 : i64, scratch_operands = 0 : i64, tpu.core_type = #tpu.core_type<tc>} {
    %c0 = arith.constant 0 : index
    %c0_0 = arith.constant 0 : index
    %0 = vector.load %arg0[%c0, %c0_0] : memref<8x32xf32, #tpu.memory_space<vmem>>, vector<8x32xf32>
    %c0_1 = arith.constant 0 : index
    %c0_2 = arith.constant 0 : index
    %1 = vector.load %arg1[%c0_1, %c0_2] : memref<8x32xf32, #tpu.memory_space<vmem>>, vector<8x32xf32>
    %c0_3 = arith.constant 0 : index
    %c0_4 = arith.constant 0 : index
    %c0_5 = arith.constant 0 : index
    %2 = vector.load %arg2[%c0_3, %c0_4, %c0_5] : memref<2x32x96xf32, #tpu.memory_space<vmem>>, vector<1x32x96xf32>
    %3 = vector.shape_cast %2 : vector<1x32x96xf32> to vector<32x96xf32>
    %cst = arith.constant dense<0.000000e+00> : vector<8x96xf32>
    %4 = tpu.matmul %0, %3, %cst {dimension_numbers = #tpu.dot_dimension_numbers<[1], [0], [0], [1], [0, 0, 1, 1], [], []>} : vector<8x32xf32>, vector<32x96xf32>, vector<8x96xf32> -> vector<8x96xf32>
    %c0_6 = arith.constant 0 : index
    %c0_7 = arith.constant 0 : index
    %c0_8 = arith.constant 0 : index
    %5 = vector.load %arg3[%c0_6, %c0_7, %c0_8] : memref<2x1x96xf32, #tpu.memory_space<vmem>>, vector<1x1x96xf32>
    %6 = vector.shape_cast %5 : vector<1x1x96xf32> to vector<1x96xf32>
    %7 = vector.broadcast %6 : vector<1x96xf32> to vector<8x96xf32>
    %8 = arith.addf %4, %7 : vector<8x96xf32>
    %9 = vector.extract_strided_slice %8 {offsets = [0, 0], sizes = [8, 32], strides = [1, 1]} : vector<8x96xf32> to vector<8x32xf32>
    %10 = vector.extract_strided_slice %8 {offsets = [0, 32], sizes = [8, 32], strides = [1, 1]} : vector<8x96xf32> to vector<8x32xf32>
    %11 = vector.extract_strided_slice %8 {offsets = [0, 64], sizes = [8, 32], strides = [1, 1]} : vector<8x96xf32> to vector<8x32xf32>
    %cst_9 = arith.constant dense<0.000000e+00> : vector<8x8xf32>
    %12 = tpu.matmul %9, %10, %cst_9 {dimension_numbers = #tpu.dot_dimension_numbers<[1], [1], [0], [0], [0, 0, 1, 0], [], []>} : vector<8x32xf32>, vector<8x32xf32>, vector<8x8xf32> -> vector<8x8xf32>
    %cst_10 = arith.constant dense<0xFF800000> : vector<8xf32>
    %13 = vector.multi_reduction <maximumf>, %12, %cst_10 [1] : vector<8x8xf32> to vector<8xf32>
    %14 = vector.shape_cast %13 : vector<8xf32> to vector<8x1xf32>
    %15 = vector.broadcast %14 : vector<8x1xf32> to vector<8x8xf32>
    %16 = arith.subf %12, %15 : vector<8x8xf32>
    %17 = math.exp %16 : vector<8x8xf32>
    %cst_11 = arith.constant dense<0.000000e+00> : vector<8xf32>
    %18 = vector.multi_reduction <add>, %17, %cst_11 [1] : vector<8x8xf32> to vector<8xf32>
    %19 = vector.shape_cast %18 : vector<8xf32> to vector<8x1xf32>
    %20 = tpu.reciprocal %19 {approx = true} : vector<8x1xf32> -> vector<8x1xf32>
    %21 = vector.broadcast %20 : vector<8x1xf32> to vector<8x8xf32>
    %22 = arith.mulf %17, %21 : vector<8x8xf32>
    %cst_12 = arith.constant dense<0.000000e+00> : vector<8x32xf32>
    %23 = tpu.matmul %22, %11, %cst_12 {dimension_numbers = #tpu.dot_dimension_numbers<[1], [0], [0], [1], [0, 0, 1, 1], [], []>} : vector<8x8xf32>, vector<8x32xf32>, vector<8x32xf32> -> vector<8x32xf32>
    %cst_13 = arith.constant dense<0.000000e+00> : vector<8xf32>
    %24 = vector.multi_reduction <add>, %23, %cst_13 [1] : vector<8x32xf32> to vector<8xf32>
    %25 = vector.shape_cast %24 : vector<8xf32> to vector<8x1xf32>
    %cst_14 = arith.constant 3.200000e+01 : f32
    %26 = vector.broadcast %cst_14 : f32 to vector<8x1xf32>
    %27 = arith.divf %25, %26 : vector<8x1xf32>
    %28 = vector.broadcast %27 : vector<8x1xf32> to vector<8x32xf32>
    %29 = arith.subf %23, %28 : vector<8x32xf32>
    %30 = arith.mulf %29, %29 : vector<8x32xf32>
    %cst_15 = arith.constant dense<0.000000e+00> : vector<8xf32>
    %31 = vector.multi_reduction <add>, %30, %cst_15 [1] : vector<8x32xf32> to vector<8xf32>
    %32 = vector.shape_cast %31 : vector<8xf32> to vector<8x1xf32>
    %cst_16 = arith.constant 3.200000e+01 : f32
    %33 = vector.broadcast %cst_16 : f32 to vector<8x1xf32>
    %34 = arith.divf %32, %33 : vector<8x1xf32>
    %35 = vector.broadcast %27 : vector<8x1xf32> to vector<8x32xf32>
    %36 = arith.subf %23, %35 : vector<8x32xf32>
    %cst_17 = arith.constant 9.99999974E-6 : f32
    %37 = vector.broadcast %cst_17 : f32 to vector<8x1xf32>
    %38 = arith.addf %34, %37 : vector<8x1xf32>
    %39 = math.rsqrt %38 : vector<8x1xf32>
    %40 = vector.broadcast %39 : vector<8x1xf32> to vector<8x32xf32>
    %41 = arith.mulf %36, %40 : vector<8x32xf32>
    %c0_18 = arith.constant 0 : index
    %c0_19 = arith.constant 0 : index
    %c0_20 = arith.constant 0 : index
    %42 = vector.load %arg4[%c0_18, %c0_19, %c0_20] : memref<2x32x64xf32, #tpu.memory_space<vmem>>, vector<1x32x64xf32>
    %43 = vector.shape_cast %42 : vector<1x32x64xf32> to vector<32x64xf32>
    %cst_21 = arith.constant dense<0.000000e+00> : vector<8x64xf32>
    %44 = tpu.matmul %41, %43, %cst_21 {dimension_numbers = #tpu.dot_dimension_numbers<[1], [0], [0], [1], [0, 0, 1, 1], [], []>} : vector<8x32xf32>, vector<32x64xf32>, vector<8x64xf32> -> vector<8x64xf32>
    %c0_22 = arith.constant 0 : index
    %c0_23 = arith.constant 0 : index
    %c0_24 = arith.constant 0 : index
    %45 = vector.load %arg5[%c0_22, %c0_23, %c0_24] : memref<2x1x64xf32, #tpu.memory_space<vmem>>, vector<1x1x64xf32>
    %46 = vector.shape_cast %45 : vector<1x1x64xf32> to vector<1x64xf32>
    %47 = vector.broadcast %46 : vector<1x64xf32> to vector<8x64xf32>
    %48 = arith.addf %44, %47 : vector<8x64xf32>
    %cst_25 = arith.constant 0.000000e+00 : f32
    %49 = vector.broadcast %cst_25 : f32 to vector<8x64xf32>
    %50 = arith.maximumf %48, %49 : vector<8x64xf32>
    %c0_26 = arith.constant 0 : index
    %c0_27 = arith.constant 0 : index
    %c0_28 = arith.constant 0 : index
    %51 = vector.load %arg6[%c0_26, %c0_27, %c0_28] : memref<2x64x32xf32, #tpu.memory_space<vmem>>, vector<1x64x32xf32>
    %52 = vector.shape_cast %51 : vector<1x64x32xf32> to vector<64x32xf32>
    %cst_29 = arith.constant dense<0.000000e+00> : vector<8x32xf32>
    %53 = tpu.matmul %50, %52, %cst_29 {dimension_numbers = #tpu.dot_dimension_numbers<[1], [0], [0], [1], [0, 0, 1, 1], [], []>} : vector<8x64xf32>, vector<64x32xf32>, vector<8x32xf32> -> vector<8x32xf32>
    %54 = arith.addf %0, %53 : vector<8x32xf32>
    %c0_30 = arith.constant 0 : index
    %c0_31 = arith.constant 0 : index
    %c0_32 = arith.constant 0 : index
    %55 = vector.load %arg7[%c0_30, %c0_31, %c0_32] : memref<2x1x32xf32, #tpu.memory_space<vmem>>, vector<1x1x32xf32>
    %56 = vector.shape_cast %55 : vector<1x1x32xf32> to vector<1x32xf32>
    %57 = vector.broadcast %56 : vector<1x32xf32> to vector<8x32xf32>
    %58 = arith.addf %54, %57 : vector<8x32xf32>
    %c1 = arith.constant 1 : index
    %c0_33 = arith.constant 0 : index
    %c0_34 = arith.constant 0 : index
    %59 = vector.load %arg2[%c1, %c0_33, %c0_34] : memref<2x32x96xf32, #tpu.memory_space<vmem>>, vector<1x32x96xf32>
    %60 = vector.shape_cast %59 : vector<1x32x96xf32> to vector<32x96xf32>
    %cst_35 = arith.constant dense<0.000000e+00> : vector<8x96xf32>
    %61 = tpu.matmul %58, %60, %cst_35 {dimension_numbers = #tpu.dot_dimension_numbers<[1], [0], [0], [1], [0, 0, 1, 1], [], []>} : vector<8x32xf32>, vector<32x96xf32>, vector<8x96xf32> -> vector<8x96xf32>
    %c1_36 = arith.constant 1 : index
    %c0_37 = arith.constant 0 : index
    %c0_38 = arith.constant 0 : index
    %62 = vector.load %arg3[%c1_36, %c0_37, %c0_38] : memref<2x1x96xf32, #tpu.memory_space<vmem>>, vector<1x1x96xf32>
    %63 = vector.shape_cast %62 : vector<1x1x96xf32> to vector<1x96xf32>
    %64 = vector.broadcast %63 : vector<1x96xf32> to vector<8x96xf32>
    %65 = arith.addf %61, %64 : vector<8x96xf32>
    %66 = vector.extract_strided_slice %65 {offsets = [0, 0], sizes = [8, 32], strides = [1, 1]} : vector<8x96xf32> to vector<8x32xf32>
    %67 = vector.extract_strided_slice %65 {offsets = [0, 32], sizes = [8, 32], strides = [1, 1]} : vector<8x96xf32> to vector<8x32xf32>
    %68 = vector.extract_strided_slice %65 {offsets = [0, 64], sizes = [8, 32], strides = [1, 1]} : vector<8x96xf32> to vector<8x32xf32>
    %cst_39 = arith.constant dense<0.000000e+00> : vector<8x8xf32>
    %69 = tpu.matmul %66, %67, %cst_39 {dimension_numbers = #tpu.dot_dimension_numbers<[1], [1], [0], [0], [0, 0, 1, 0], [], []>} : vector<8x32xf32>, vector<8x32xf32>, vector<8x8xf32> -> vector<8x8xf32>
    %cst_40 = arith.constant dense<0xFF800000> : vector<8xf32>
    %70 = vector.multi_reduction <maximumf>, %69, %cst_40 [1] : vector<8x8xf32> to vector<8xf32>
    %71 = vector.shape_cast %70 : vector<8xf32> to vector<8x1xf32>
    %72 = vector.broadcast %71 : vector<8x1xf32> to vector<8x8xf32>
    %73 = arith.subf %69, %72 : vector<8x8xf32>
    %74 = math.exp %73 : vector<8x8xf32>
    %cst_41 = arith.constant dense<0.000000e+00> : vector<8xf32>
    %75 = vector.multi_reduction <add>, %74, %cst_41 [1] : vector<8x8xf32> to vector<8xf32>
    %76 = vector.shape_cast %75 : vector<8xf32> to vector<8x1xf32>
    %77 = tpu.reciprocal %76 {approx = true} : vector<8x1xf32> -> vector<8x1xf32>
    %78 = vector.broadcast %77 : vector<8x1xf32> to vector<8x8xf32>
    %79 = arith.mulf %74, %78 : vector<8x8xf32>
    %cst_42 = arith.constant dense<0.000000e+00> : vector<8x32xf32>
    %80 = tpu.matmul %79, %68, %cst_42 {dimension_numbers = #tpu.dot_dimension_numbers<[1], [0], [0], [1], [0, 0, 1, 1], [], []>} : vector<8x8xf32>, vector<8x32xf32>, vector<8x32xf32> -> vector<8x32xf32>
    %cst_43 = arith.constant dense<0.000000e+00> : vector<8xf32>
    %81 = vector.multi_reduction <add>, %80, %cst_43 [1] : vector<8x32xf32> to vector<8xf32>
    %82 = vector.shape_cast %81 : vector<8xf32> to vector<8x1xf32>
    %cst_44 = arith.constant 3.200000e+01 : f32
    %83 = vector.broadcast %cst_44 : f32 to vector<8x1xf32>
    %84 = arith.divf %82, %83 : vector<8x1xf32>
    %85 = vector.broadcast %84 : vector<8x1xf32> to vector<8x32xf32>
    %86 = arith.subf %80, %85 : vector<8x32xf32>
    %87 = arith.mulf %86, %86 : vector<8x32xf32>
    %cst_45 = arith.constant dense<0.000000e+00> : vector<8xf32>
    %88 = vector.multi_reduction <add>, %87, %cst_45 [1] : vector<8x32xf32> to vector<8xf32>
    %89 = vector.shape_cast %88 : vector<8xf32> to vector<8x1xf32>
    %cst_46 = arith.constant 3.200000e+01 : f32
    %90 = vector.broadcast %cst_46 : f32 to vector<8x1xf32>
    %91 = arith.divf %89, %90 : vector<8x1xf32>
    %92 = vector.broadcast %84 : vector<8x1xf32> to vector<8x32xf32>
    %93 = arith.subf %80, %92 : vector<8x32xf32>
    %cst_47 = arith.constant 9.99999974E-6 : f32
    %94 = vector.broadcast %cst_47 : f32 to vector<8x1xf32>
    %95 = arith.addf %91, %94 : vector<8x1xf32>
    %96 = math.rsqrt %95 : vector<8x1xf32>
    %97 = vector.broadcast %96 : vector<8x1xf32> to vector<8x32xf32>
    %98 = arith.mulf %93, %97 : vector<8x32xf32>
    %c1_48 = arith.constant 1 : index
    %c0_49 = arith.constant 0 : index
    %c0_50 = arith.constant 0 : index
    %99 = vector.load %arg4[%c1_48, %c0_49, %c0_50] : memref<2x32x64xf32, #tpu.memory_space<vmem>>, vector<1x32x64xf32>
    %100 = vector.shape_cast %99 : vector<1x32x64xf32> to vector<32x64xf32>
    %cst_51 = arith.constant dense<0.000000e+00> : vector<8x64xf32>
    %101 = tpu.matmul %98, %100, %cst_51 {dimension_numbers = #tpu.dot_dimension_numbers<[1], [0], [0], [1], [0, 0, 1, 1], [], []>} : vector<8x32xf32>, vector<32x64xf32>, vector<8x64xf32> -> vector<8x64xf32>
    %c1_52 = arith.constant 1 : index
    %c0_53 = arith.constant 0 : index
    %c0_54 = arith.constant 0 : index
    %102 = vector.load %arg5[%c1_52, %c0_53, %c0_54] : memref<2x1x64xf32, #tpu.memory_space<vmem>>, vector<1x1x64xf32>
    %103 = vector.shape_cast %102 : vector<1x1x64xf32> to vector<1x64xf32>
    %104 = vector.broadcast %103 : vector<1x64xf32> to vector<8x64xf32>
    %105 = arith.addf %101, %104 : vector<8x64xf32>
    %cst_55 = arith.constant 0.000000e+00 : f32
    %106 = vector.broadcast %cst_55 : f32 to vector<8x64xf32>
    %107 = arith.maximumf %105, %106 : vector<8x64xf32>
    %c1_56 = arith.constant 1 : index
    %c0_57 = arith.constant 0 : index
    %c0_58 = arith.constant 0 : index
    %108 = vector.load %arg6[%c1_56, %c0_57, %c0_58] : memref<2x64x32xf32, #tpu.memory_space<vmem>>, vector<1x64x32xf32>
    %109 = vector.shape_cast %108 : vector<1x64x32xf32> to vector<64x32xf32>
    %cst_59 = arith.constant dense<0.000000e+00> : vector<8x32xf32>
    %110 = tpu.matmul %107, %109, %cst_59 {dimension_numbers = #tpu.dot_dimension_numbers<[1], [0], [0], [1], [0, 0, 1, 1], [], []>} : vector<8x64xf32>, vector<64x32xf32>, vector<8x32xf32> -> vector<8x32xf32>
    %111 = arith.addf %58, %110 : vector<8x32xf32>
    %c1_60 = arith.constant 1 : index
    %c0_61 = arith.constant 0 : index
    %c0_62 = arith.constant 0 : index
    %112 = vector.load %arg7[%c1_60, %c0_61, %c0_62] : memref<2x1x32xf32, #tpu.memory_space<vmem>>, vector<1x1x32xf32>
    %113 = vector.shape_cast %112 : vector<1x1x32xf32> to vector<1x32xf32>
    %114 = vector.broadcast %113 : vector<1x32xf32> to vector<8x32xf32>
    %115 = arith.addf %111, %114 : vector<8x32xf32>
    %c0_63 = arith.constant 0 : index
    %c0_64 = arith.constant 0 : index
    %c0_65 = arith.constant 0 : index
    %116 = vector.load %arg8[%c0_63, %c0_64, %c0_65] : memref<2x32x96xf32, #tpu.memory_space<vmem>>, vector<1x32x96xf32>
    %117 = vector.shape_cast %116 : vector<1x32x96xf32> to vector<32x96xf32>
    %cst_66 = arith.constant dense<0.000000e+00> : vector<8x96xf32>
    %118 = tpu.matmul %1, %117, %cst_66 {dimension_numbers = #tpu.dot_dimension_numbers<[1], [0], [0], [1], [0, 0, 1, 1], [], []>} : vector<8x32xf32>, vector<32x96xf32>, vector<8x96xf32> -> vector<8x96xf32>
    %c0_67 = arith.constant 0 : index
    %c0_68 = arith.constant 0 : index
    %c0_69 = arith.constant 0 : index
    %119 = vector.load %arg9[%c0_67, %c0_68, %c0_69] : memref<2x1x96xf32, #tpu.memory_space<vmem>>, vector<1x1x96xf32>
    %120 = vector.shape_cast %119 : vector<1x1x96xf32> to vector<1x96xf32>
    %121 = vector.broadcast %120 : vector<1x96xf32> to vector<8x96xf32>
    %122 = arith.addf %118, %121 : vector<8x96xf32>
    %123 = vector.extract_strided_slice %122 {offsets = [0, 0], sizes = [8, 32], strides = [1, 1]} : vector<8x96xf32> to vector<8x32xf32>
    %124 = vector.extract_strided_slice %122 {offsets = [0, 32], sizes = [8, 32], strides = [1, 1]} : vector<8x96xf32> to vector<8x32xf32>
    %125 = vector.extract_strided_slice %122 {offsets = [0, 64], sizes = [8, 32], strides = [1, 1]} : vector<8x96xf32> to vector<8x32xf32>
    %cst_70 = arith.constant dense<0.000000e+00> : vector<8x8xf32>
    %126 = tpu.matmul %123, %124, %cst_70 {dimension_numbers = #tpu.dot_dimension_numbers<[1], [1], [0], [0], [0, 0, 1, 0], [], []>} : vector<8x32xf32>, vector<8x32xf32>, vector<8x8xf32> -> vector<8x8xf32>
    %cst_71 = arith.constant dense<0xFF800000> : vector<8xf32>
    %127 = vector.multi_reduction <maximumf>, %126, %cst_71 [1] : vector<8x8xf32> to vector<8xf32>
    %128 = vector.shape_cast %127 : vector<8xf32> to vector<8x1xf32>
    %129 = vector.broadcast %128 : vector<8x1xf32> to vector<8x8xf32>
    %130 = arith.subf %126, %129 : vector<8x8xf32>
    %131 = math.exp %130 : vector<8x8xf32>
    %cst_72 = arith.constant dense<0.000000e+00> : vector<8xf32>
    %132 = vector.multi_reduction <add>, %131, %cst_72 [1] : vector<8x8xf32> to vector<8xf32>
    %133 = vector.shape_cast %132 : vector<8xf32> to vector<8x1xf32>
    %134 = tpu.reciprocal %133 {approx = true} : vector<8x1xf32> -> vector<8x1xf32>
    %135 = vector.broadcast %134 : vector<8x1xf32> to vector<8x8xf32>
    %136 = arith.mulf %131, %135 : vector<8x8xf32>
    %cst_73 = arith.constant dense<0.000000e+00> : vector<8x32xf32>
    %137 = tpu.matmul %136, %125, %cst_73 {dimension_numbers = #tpu.dot_dimension_numbers<[1], [0], [0], [1], [0, 0, 1, 1], [], []>} : vector<8x8xf32>, vector<8x32xf32>, vector<8x32xf32> -> vector<8x32xf32>
    %c0_74 = arith.constant 0 : index
    %c0_75 = arith.constant 0 : index
    %c0_76 = arith.constant 0 : index
    %138 = vector.load %arg10[%c0_74, %c0_75, %c0_76] : memref<2x32x32xf32, #tpu.memory_space<vmem>>, vector<1x32x32xf32>
    %139 = vector.shape_cast %138 : vector<1x32x32xf32> to vector<32x32xf32>
    %cst_77 = arith.constant dense<0.000000e+00> : vector<8x32xf32>
    %140 = tpu.matmul %137, %139, %cst_77 {dimension_numbers = #tpu.dot_dimension_numbers<[1], [0], [0], [1], [0, 0, 1, 1], [], []>} : vector<8x32xf32>, vector<32x32xf32>, vector<8x32xf32> -> vector<8x32xf32>
    %c0_78 = arith.constant 0 : index
    %c0_79 = arith.constant 0 : index
    %c0_80 = arith.constant 0 : index
    %141 = vector.load %arg11[%c0_78, %c0_79, %c0_80] : memref<2x1x32xf32, #tpu.memory_space<vmem>>, vector<1x1x32xf32>
    %142 = vector.shape_cast %141 : vector<1x1x32xf32> to vector<1x32xf32>
    %143 = vector.broadcast %142 : vector<1x32xf32> to vector<8x32xf32>
    %144 = arith.addf %140, %143 : vector<8x32xf32>
    %c0_81 = arith.constant 0 : index
    %c0_82 = arith.constant 0 : index
    %145 = vector.load %arg20[%c0_81, %c0_82] : memref<8x8xf32, #tpu.memory_space<vmem>>, vector<8x8xf32>
    %cst_83 = arith.constant dense<0.000000e+00> : vector<8x32xf32>
    %146 = tpu.matmul %145, %115, %cst_83 {dimension_numbers = #tpu.dot_dimension_numbers<[0], [0], [1], [1], [0, 1, 1, 1], [], []>} : vector<8x8xf32>, vector<8x32xf32>, vector<8x32xf32> -> vector<8x32xf32>
    %c0_84 = arith.constant 0 : index
    %c0_85 = arith.constant 0 : index
    %147 = vector.load %arg21[%c0_84, %c0_85] : memref<8x1xf32, #tpu.memory_space<vmem>>, vector<8x1xf32>
    %148 = vector.broadcast %147 : vector<8x1xf32> to vector<8x32xf32>
    %149 = arith.addf %146, %148 : vector<8x32xf32>
    %c0_86 = arith.constant 0 : index
    %c0_87 = arith.constant 0 : index
    %c0_88 = arith.constant 0 : index
    %150 = vector.load %arg12[%c0_86, %c0_87, %c0_88] : memref<2x32x64xf32, #tpu.memory_space<vmem>>, vector<1x32x64xf32>
    %151 = vector.shape_cast %150 : vector<1x32x64xf32> to vector<32x64xf32>
    %cst_89 = arith.constant dense<0.000000e+00> : vector<8x64xf32>
    %152 = tpu.matmul %149, %151, %cst_89 {dimension_numbers = #tpu.dot_dimension_numbers<[1], [0], [0], [1], [0, 0, 1, 1], [], []>} : vector<8x32xf32>, vector<32x64xf32>, vector<8x64xf32> -> vector<8x64xf32>
    %c0_90 = arith.constant 0 : index
    %c0_91 = arith.constant 0 : index
    %c0_92 = arith.constant 0 : index
    %153 = vector.load %arg13[%c0_90, %c0_91, %c0_92] : memref<2x1x64xf32, #tpu.memory_space<vmem>>, vector<1x1x64xf32>
    %154 = vector.shape_cast %153 : vector<1x1x64xf32> to vector<1x64xf32>
    %155 = vector.broadcast %154 : vector<1x64xf32> to vector<8x64xf32>
    %156 = arith.addf %152, %155 : vector<8x64xf32>
    %157 = vector.extract_strided_slice %156 {offsets = [0, 0], sizes = [8, 32], strides = [1, 1]} : vector<8x64xf32> to vector<8x32xf32>
    %158 = vector.extract_strided_slice %156 {offsets = [0, 32], sizes = [8, 32], strides = [1, 1]} : vector<8x64xf32> to vector<8x32xf32>
    %c0_93 = arith.constant 0 : index
    %c0_94 = arith.constant 0 : index
    %c0_95 = arith.constant 0 : index
    %159 = vector.load %arg14[%c0_93, %c0_94, %c0_95] : memref<2x32x32xf32, #tpu.memory_space<vmem>>, vector<1x32x32xf32>
    %160 = vector.shape_cast %159 : vector<1x32x32xf32> to vector<32x32xf32>
    %cst_96 = arith.constant dense<0.000000e+00> : vector<8x32xf32>
    %161 = tpu.matmul %144, %160, %cst_96 {dimension_numbers = #tpu.dot_dimension_numbers<[1], [0], [0], [1], [0, 0, 1, 1], [], []>} : vector<8x32xf32>, vector<32x32xf32>, vector<8x32xf32> -> vector<8x32xf32>
    %c0_97 = arith.constant 0 : index
    %c0_98 = arith.constant 0 : index
    %c0_99 = arith.constant 0 : index
    %162 = vector.load %arg15[%c0_97, %c0_98, %c0_99] : memref<2x1x32xf32, #tpu.memory_space<vmem>>, vector<1x1x32xf32>
    %163 = vector.shape_cast %162 : vector<1x1x32xf32> to vector<1x32xf32>
    %164 = vector.broadcast %163 : vector<1x32xf32> to vector<8x32xf32>
    %165 = arith.addf %161, %164 : vector<8x32xf32>
    %cst_100 = arith.constant dense<0.000000e+00> : vector<8x8xf32>
    %166 = tpu.matmul %157, %158, %cst_100 {dimension_numbers = #tpu.dot_dimension_numbers<[1], [1], [0], [0], [0, 0, 1, 0], [], []>} : vector<8x32xf32>, vector<8x32xf32>, vector<8x8xf32> -> vector<8x8xf32>
    %cst_101 = arith.constant dense<0xFF800000> : vector<8xf32>
    %167 = vector.multi_reduction <maximumf>, %166, %cst_101 [1] : vector<8x8xf32> to vector<8xf32>
    %168 = vector.shape_cast %167 : vector<8xf32> to vector<8x1xf32>
    %169 = vector.broadcast %168 : vector<8x1xf32> to vector<8x8xf32>
    %170 = arith.subf %166, %169 : vector<8x8xf32>
    %171 = math.exp %170 : vector<8x8xf32>
    %cst_102 = arith.constant dense<0.000000e+00> : vector<8xf32>
    %172 = vector.multi_reduction <add>, %171, %cst_102 [1] : vector<8x8xf32> to vector<8xf32>
    %173 = vector.shape_cast %172 : vector<8xf32> to vector<8x1xf32>
    %174 = tpu.reciprocal %173 {approx = true} : vector<8x1xf32> -> vector<8x1xf32>
    %175 = vector.broadcast %174 : vector<8x1xf32> to vector<8x8xf32>
    %176 = arith.mulf %171, %175 : vector<8x8xf32>
    %cst_103 = arith.constant dense<0.000000e+00> : vector<8x32xf32>
    %177 = tpu.matmul %176, %165, %cst_103 {dimension_numbers = #tpu.dot_dimension_numbers<[1], [0], [0], [1], [0, 0, 1, 1], [], []>} : vector<8x8xf32>, vector<8x32xf32>, vector<8x32xf32> -> vector<8x32xf32>
    %cst_104 = arith.constant dense<0.000000e+00> : vector<8xf32>
    %178 = vector.multi_reduction <add>, %177, %cst_104 [1] : vector<8x32xf32> to vector<8xf32>
    %179 = vector.shape_cast %178 : vector<8xf32> to vector<8x1xf32>
    %cst_105 = arith.constant 3.200000e+01 : f32
    %180 = vector.broadcast %cst_105 : f32 to vector<8x1xf32>
    %181 = arith.divf %179, %180 : vector<8x1xf32>
    %182 = vector.broadcast %181 : vector<8x1xf32> to vector<8x32xf32>
    %183 = arith.subf %177, %182 : vector<8x32xf32>
    %184 = arith.mulf %183, %183 : vector<8x32xf32>
    %cst_106 = arith.constant dense<0.000000e+00> : vector<8xf32>
    %185 = vector.multi_reduction <add>, %184, %cst_106 [1] : vector<8x32xf32> to vector<8xf32>
    %186 = vector.shape_cast %185 : vector<8xf32> to vector<8x1xf32>
    %cst_107 = arith.constant 3.200000e+01 : f32
    %187 = vector.broadcast %cst_107 : f32 to vector<8x1xf32>
    %188 = arith.divf %186, %187 : vector<8x1xf32>
    %189 = vector.broadcast %181 : vector<8x1xf32> to vector<8x32xf32>
    %190 = arith.subf %177, %189 : vector<8x32xf32>
    %cst_108 = arith.constant 9.99999974E-6 : f32
    %191 = vector.broadcast %cst_108 : f32 to vector<8x1xf32>
    %192 = arith.addf %188, %191 : vector<8x1xf32>
    %193 = math.rsqrt %192 : vector<8x1xf32>
    %194 = vector.broadcast %193 : vector<8x1xf32> to vector<8x32xf32>
    %195 = arith.mulf %190, %194 : vector<8x32xf32>
    %c0_109 = arith.constant 0 : index
    %c0_110 = arith.constant 0 : index
    %c0_111 = arith.constant 0 : index
    %196 = vector.load %arg16[%c0_109, %c0_110, %c0_111] : memref<2x32x64xf32, #tpu.memory_space<vmem>>, vector<1x32x64xf32>
    %197 = vector.shape_cast %196 : vector<1x32x64xf32> to vector<32x64xf32>
    %cst_112 = arith.constant dense<0.000000e+00> : vector<8x64xf32>
    %198 = tpu.matmul %195, %197, %cst_112 {dimension_numbers = #tpu.dot_dimension_numbers<[1], [0], [0], [1], [0, 0, 1, 1], [], []>} : vector<8x32xf32>, vector<32x64xf32>, vector<8x64xf32> -> vector<8x64xf32>
    %c0_113 = arith.constant 0 : index
    %c0_114 = arith.constant 0 : index
    %c0_115 = arith.constant 0 : index
    %199 = vector.load %arg17[%c0_113, %c0_114, %c0_115] : memref<2x1x64xf32, #tpu.memory_space<vmem>>, vector<1x1x64xf32>
    %200 = vector.shape_cast %199 : vector<1x1x64xf32> to vector<1x64xf32>
    %201 = vector.broadcast %200 : vector<1x64xf32> to vector<8x64xf32>
    %202 = arith.addf %198, %201 : vector<8x64xf32>
    %cst_116 = arith.constant 0.000000e+00 : f32
    %203 = vector.broadcast %cst_116 : f32 to vector<8x64xf32>
    %204 = arith.maximumf %202, %203 : vector<8x64xf32>
    %c0_117 = arith.constant 0 : index
    %c0_118 = arith.constant 0 : index
    %c0_119 = arith.constant 0 : index
    %205 = vector.load %arg18[%c0_117, %c0_118, %c0_119] : memref<2x64x32xf32, #tpu.memory_space<vmem>>, vector<1x64x32xf32>
    %206 = vector.shape_cast %205 : vector<1x64x32xf32> to vector<64x32xf32>
    %cst_120 = arith.constant dense<0.000000e+00> : vector<8x32xf32>
    %207 = tpu.matmul %204, %206, %cst_120 {dimension_numbers = #tpu.dot_dimension_numbers<[1], [0], [0], [1], [0, 0, 1, 1], [], []>} : vector<8x64xf32>, vector<64x32xf32>, vector<8x32xf32> -> vector<8x32xf32>
    %c0_121 = arith.constant 0 : index
    %c0_122 = arith.constant 0 : index
    %c0_123 = arith.constant 0 : index
    %208 = vector.load %arg19[%c0_121, %c0_122, %c0_123] : memref<2x1x32xf32, #tpu.memory_space<vmem>>, vector<1x1x32xf32>
    %209 = vector.shape_cast %208 : vector<1x1x32xf32> to vector<1x32xf32>
    %210 = vector.broadcast %209 : vector<1x32xf32> to vector<8x32xf32>
    %211 = arith.addf %207, %210 : vector<8x32xf32>
    %c1_124 = arith.constant 1 : index
    %c0_125 = arith.constant 0 : index
    %c0_126 = arith.constant 0 : index
    %212 = vector.load %arg8[%c1_124, %c0_125, %c0_126] : memref<2x32x96xf32, #tpu.memory_space<vmem>>, vector<1x32x96xf32>
    %213 = vector.shape_cast %212 : vector<1x32x96xf32> to vector<32x96xf32>
    %cst_127 = arith.constant dense<0.000000e+00> : vector<8x96xf32>
    %214 = tpu.matmul %211, %213, %cst_127 {dimension_numbers = #tpu.dot_dimension_numbers<[1], [0], [0], [1], [0, 0, 1, 1], [], []>} : vector<8x32xf32>, vector<32x96xf32>, vector<8x96xf32> -> vector<8x96xf32>
    %c1_128 = arith.constant 1 : index
    %c0_129 = arith.constant 0 : index
    %c0_130 = arith.constant 0 : index
    %215 = vector.load %arg9[%c1_128, %c0_129, %c0_130] : memref<2x1x96xf32, #tpu.memory_space<vmem>>, vector<1x1x96xf32>
    %216 = vector.shape_cast %215 : vector<1x1x96xf32> to vector<1x96xf32>
    %217 = vector.broadcast %216 : vector<1x96xf32> to vector<8x96xf32>
    %218 = arith.addf %214, %217 : vector<8x96xf32>
    %219 = vector.extract_strided_slice %218 {offsets = [0, 0], sizes = [8, 32], strides = [1, 1]} : vector<8x96xf32> to vector<8x32xf32>
    %220 = vector.extract_strided_slice %218 {offsets = [0, 32], sizes = [8, 32], strides = [1, 1]} : vector<8x96xf32> to vector<8x32xf32>
    %221 = vector.extract_strided_slice %218 {offsets = [0, 64], sizes = [8, 32], strides = [1, 1]} : vector<8x96xf32> to vector<8x32xf32>
    %cst_131 = arith.constant dense<0.000000e+00> : vector<8x8xf32>
    %222 = tpu.matmul %219, %220, %cst_131 {dimension_numbers = #tpu.dot_dimension_numbers<[1], [1], [0], [0], [0, 0, 1, 0], [], []>} : vector<8x32xf32>, vector<8x32xf32>, vector<8x8xf32> -> vector<8x8xf32>
    %cst_132 = arith.constant dense<0xFF800000> : vector<8xf32>
    %223 = vector.multi_reduction <maximumf>, %222, %cst_132 [1] : vector<8x8xf32> to vector<8xf32>
    %224 = vector.shape_cast %223 : vector<8xf32> to vector<8x1xf32>
    %225 = vector.broadcast %224 : vector<8x1xf32> to vector<8x8xf32>
    %226 = arith.subf %222, %225 : vector<8x8xf32>
    %227 = math.exp %226 : vector<8x8xf32>
    %cst_133 = arith.constant dense<0.000000e+00> : vector<8xf32>
    %228 = vector.multi_reduction <add>, %227, %cst_133 [1] : vector<8x8xf32> to vector<8xf32>
    %229 = vector.shape_cast %228 : vector<8xf32> to vector<8x1xf32>
    %230 = tpu.reciprocal %229 {approx = true} : vector<8x1xf32> -> vector<8x1xf32>
    %231 = vector.broadcast %230 : vector<8x1xf32> to vector<8x8xf32>
    %232 = arith.mulf %227, %231 : vector<8x8xf32>
    %cst_134 = arith.constant dense<0.000000e+00> : vector<8x32xf32>
    %233 = tpu.matmul %232, %221, %cst_134 {dimension_numbers = #tpu.dot_dimension_numbers<[1], [0], [0], [1], [0, 0, 1, 1], [], []>} : vector<8x8xf32>, vector<8x32xf32>, vector<8x32xf32> -> vector<8x32xf32>
    %c1_135 = arith.constant 1 : index
    %c0_136 = arith.constant 0 : index
    %c0_137 = arith.constant 0 : index
    %234 = vector.load %arg10[%c1_135, %c0_136, %c0_137] : memref<2x32x32xf32, #tpu.memory_space<vmem>>, vector<1x32x32xf32>
    %235 = vector.shape_cast %234 : vector<1x32x32xf32> to vector<32x32xf32>
    %cst_138 = arith.constant dense<0.000000e+00> : vector<8x32xf32>
    %236 = tpu.matmul %233, %235, %cst_138 {dimension_numbers = #tpu.dot_dimension_numbers<[1], [0], [0], [1], [0, 0, 1, 1], [], []>} : vector<8x32xf32>, vector<32x32xf32>, vector<8x32xf32> -> vector<8x32xf32>
    %c1_139 = arith.constant 1 : index
    %c0_140 = arith.constant 0 : index
    %c0_141 = arith.constant 0 : index
    %237 = vector.load %arg11[%c1_139, %c0_140, %c0_141] : memref<2x1x32xf32, #tpu.memory_space<vmem>>, vector<1x1x32xf32>
    %238 = vector.shape_cast %237 : vector<1x1x32xf32> to vector<1x32xf32>
    %239 = vector.broadcast %238 : vector<1x32xf32> to vector<8x32xf32>
    %240 = arith.addf %236, %239 : vector<8x32xf32>
    %c1_142 = arith.constant 1 : index
    %c0_143 = arith.constant 0 : index
    %c0_144 = arith.constant 0 : index
    %241 = vector.load %arg12[%c1_142, %c0_143, %c0_144] : memref<2x32x64xf32, #tpu.memory_space<vmem>>, vector<1x32x64xf32>
    %242 = vector.shape_cast %241 : vector<1x32x64xf32> to vector<32x64xf32>
    %cst_145 = arith.constant dense<0.000000e+00> : vector<8x64xf32>
    %243 = tpu.matmul %149, %242, %cst_145 {dimension_numbers = #tpu.dot_dimension_numbers<[1], [0], [0], [1], [0, 0, 1, 1], [], []>} : vector<8x32xf32>, vector<32x64xf32>, vector<8x64xf32> -> vector<8x64xf32>
    %c1_146 = arith.constant 1 : index
    %c0_147 = arith.constant 0 : index
    %c0_148 = arith.constant 0 : index
    %244 = vector.load %arg13[%c1_146, %c0_147, %c0_148] : memref<2x1x64xf32, #tpu.memory_space<vmem>>, vector<1x1x64xf32>
    %245 = vector.shape_cast %244 : vector<1x1x64xf32> to vector<1x64xf32>
    %246 = vector.broadcast %245 : vector<1x64xf32> to vector<8x64xf32>
    %247 = arith.addf %243, %246 : vector<8x64xf32>
    %248 = vector.extract_strided_slice %247 {offsets = [0, 0], sizes = [8, 32], strides = [1, 1]} : vector<8x64xf32> to vector<8x32xf32>
    %249 = vector.extract_strided_slice %247 {offsets = [0, 32], sizes = [8, 32], strides = [1, 1]} : vector<8x64xf32> to vector<8x32xf32>
    %c1_149 = arith.constant 1 : index
    %c0_150 = arith.constant 0 : index
    %c0_151 = arith.constant 0 : index
    %250 = vector.load %arg14[%c1_149, %c0_150, %c0_151] : memref<2x32x32xf32, #tpu.memory_space<vmem>>, vector<1x32x32xf32>
    %251 = vector.shape_cast %250 : vector<1x32x32xf32> to vector<32x32xf32>
    %cst_152 = arith.constant dense<0.000000e+00> : vector<8x32xf32>
    %252 = tpu.matmul %240, %251, %cst_152 {dimension_numbers = #tpu.dot_dimension_numbers<[1], [0], [0], [1], [0, 0, 1, 1], [], []>} : vector<8x32xf32>, vector<32x32xf32>, vector<8x32xf32> -> vector<8x32xf32>
    %c1_153 = arith.constant 1 : index
    %c0_154 = arith.constant 0 : index
    %c0_155 = arith.constant 0 : index
    %253 = vector.load %arg15[%c1_153, %c0_154, %c0_155] : memref<2x1x32xf32, #tpu.memory_space<vmem>>, vector<1x1x32xf32>
    %254 = vector.shape_cast %253 : vector<1x1x32xf32> to vector<1x32xf32>
    %255 = vector.broadcast %254 : vector<1x32xf32> to vector<8x32xf32>
    %256 = arith.addf %252, %255 : vector<8x32xf32>
    %cst_156 = arith.constant dense<0.000000e+00> : vector<8x8xf32>
    %257 = tpu.matmul %248, %249, %cst_156 {dimension_numbers = #tpu.dot_dimension_numbers<[1], [1], [0], [0], [0, 0, 1, 0], [], []>} : vector<8x32xf32>, vector<8x32xf32>, vector<8x8xf32> -> vector<8x8xf32>
    %cst_157 = arith.constant dense<0xFF800000> : vector<8xf32>
    %258 = vector.multi_reduction <maximumf>, %257, %cst_157 [1] : vector<8x8xf32> to vector<8xf32>
    %259 = vector.shape_cast %258 : vector<8xf32> to vector<8x1xf32>
    %260 = vector.broadcast %259 : vector<8x1xf32> to vector<8x8xf32>
    %261 = arith.subf %257, %260 : vector<8x8xf32>
    %262 = math.exp %261 : vector<8x8xf32>
    %cst_158 = arith.constant dense<0.000000e+00> : vector<8xf32>
    %263 = vector.multi_reduction <add>, %262, %cst_158 [1] : vector<8x8xf32> to vector<8xf32>
    %264 = vector.shape_cast %263 : vector<8xf32> to vector<8x1xf32>
    %265 = tpu.reciprocal %264 {approx = true} : vector<8x1xf32> -> vector<8x1xf32>
    %266 = vector.broadcast %265 : vector<8x1xf32> to vector<8x8xf32>
    %267 = arith.mulf %262, %266 : vector<8x8xf32>
    %cst_159 = arith.constant dense<0.000000e+00> : vector<8x32xf32>
    %268 = tpu.matmul %267, %256, %cst_159 {dimension_numbers = #tpu.dot_dimension_numbers<[1], [0], [0], [1], [0, 0, 1, 1], [], []>} : vector<8x8xf32>, vector<8x32xf32>, vector<8x32xf32> -> vector<8x32xf32>
    %cst_160 = arith.constant dense<0.000000e+00> : vector<8xf32>
    %269 = vector.multi_reduction <add>, %268, %cst_160 [1] : vector<8x32xf32> to vector<8xf32>
    %270 = vector.shape_cast %269 : vector<8xf32> to vector<8x1xf32>
    %cst_161 = arith.constant 3.200000e+01 : f32
    %271 = vector.broadcast %cst_161 : f32 to vector<8x1xf32>
    %272 = arith.divf %270, %271 : vector<8x1xf32>
    %273 = vector.broadcast %272 : vector<8x1xf32> to vector<8x32xf32>
    %274 = arith.subf %268, %273 : vector<8x32xf32>
    %275 = arith.mulf %274, %274 : vector<8x32xf32>
    %cst_162 = arith.constant dense<0.000000e+00> : vector<8xf32>
    %276 = vector.multi_reduction <add>, %275, %cst_162 [1] : vector<8x32xf32> to vector<8xf32>
    %277 = vector.shape_cast %276 : vector<8xf32> to vector<8x1xf32>
    %cst_163 = arith.constant 3.200000e+01 : f32
    %278 = vector.broadcast %cst_163 : f32 to vector<8x1xf32>
    %279 = arith.divf %277, %278 : vector<8x1xf32>
    %280 = vector.broadcast %272 : vector<8x1xf32> to vector<8x32xf32>
    %281 = arith.subf %268, %280 : vector<8x32xf32>
    %cst_164 = arith.constant 9.99999974E-6 : f32
    %282 = vector.broadcast %cst_164 : f32 to vector<8x1xf32>
    %283 = arith.addf %279, %282 : vector<8x1xf32>
    %284 = math.rsqrt %283 : vector<8x1xf32>
    %285 = vector.broadcast %284 : vector<8x1xf32> to vector<8x32xf32>
    %286 = arith.mulf %281, %285 : vector<8x32xf32>
    %c1_165 = arith.constant 1 : index
    %c0_166 = arith.constant 0 : index
    %c0_167 = arith.constant 0 : index
    %287 = vector.load %arg16[%c1_165, %c0_166, %c0_167] : memref<2x32x64xf32, #tpu.memory_space<vmem>>, vector<1x32x64xf32>
    %288 = vector.shape_cast %287 : vector<1x32x64xf32> to vector<32x64xf32>
    %cst_168 = arith.constant dense<0.000000e+00> : vector<8x64xf32>
    %289 = tpu.matmul %286, %288, %cst_168 {dimension_numbers = #tpu.dot_dimension_numbers<[1], [0], [0], [1], [0, 0, 1, 1], [], []>} : vector<8x32xf32>, vector<32x64xf32>, vector<8x64xf32> -> vector<8x64xf32>
    %c1_169 = arith.constant 1 : index
    %c0_170 = arith.constant 0 : index
    %c0_171 = arith.constant 0 : index
    %290 = vector.load %arg17[%c1_169, %c0_170, %c0_171] : memref<2x1x64xf32, #tpu.memory_space<vmem>>, vector<1x1x64xf32>
    %291 = vector.shape_cast %290 : vector<1x1x64xf32> to vector<1x64xf32>
    %292 = vector.broadcast %291 : vector<1x64xf32> to vector<8x64xf32>
    %293 = arith.addf %289, %292 : vector<8x64xf32>
    %cst_172 = arith.constant 0.000000e+00 : f32
    %294 = vector.broadcast %cst_172 : f32 to vector<8x64xf32>
    %295 = arith.maximumf %293, %294 : vector<8x64xf32>
    %c1_173 = arith.constant 1 : index
    %c0_174 = arith.constant 0 : index
    %c0_175 = arith.constant 0 : index
    %296 = vector.load %arg18[%c1_173, %c0_174, %c0_175] : memref<2x64x32xf32, #tpu.memory_space<vmem>>, vector<1x64x32xf32>
    %297 = vector.shape_cast %296 : vector<1x64x32xf32> to vector<64x32xf32>
    %cst_176 = arith.constant dense<0.000000e+00> : vector<8x32xf32>
    %298 = tpu.matmul %295, %297, %cst_176 {dimension_numbers = #tpu.dot_dimension_numbers<[1], [0], [0], [1], [0, 0, 1, 1], [], []>} : vector<8x64xf32>, vector<64x32xf32>, vector<8x32xf32> -> vector<8x32xf32>
    %c1_177 = arith.constant 1 : index
    %c0_178 = arith.constant 0 : index
    %c0_179 = arith.constant 0 : index
    %299 = vector.load %arg19[%c1_177, %c0_178, %c0_179] : memref<2x1x32xf32, #tpu.memory_space<vmem>>, vector<1x1x32xf32>
    %300 = vector.shape_cast %299 : vector<1x1x32xf32> to vector<1x32xf32>
    %301 = vector.broadcast %300 : vector<1x32xf32> to vector<8x32xf32>
    %302 = arith.addf %298, %301 : vector<8x32xf32>
    %303 = arith.addf %240, %302 : vector<8x32xf32>
    %c0_180 = arith.constant 0 : index
    %c0_181 = arith.constant 0 : index
    %304 = vector.load %arg22[%c0_180, %c0_181] : memref<1x8xf32, #tpu.memory_space<vmem>>, vector<1x8xf32>
    %cst_182 = arith.constant dense<0.000000e+00> : vector<1x32xf32>
    %305 = tpu.matmul %304, %303, %cst_182 {dimension_numbers = #tpu.dot_dimension_numbers<[1], [0], [0], [1], [0, 0, 1, 1], [], []>} : vector<1x8xf32>, vector<8x32xf32>, vector<1x32xf32> -> vector<1x32xf32>
    %c0_183 = arith.constant 0 : index
    %c0_184 = arith.constant 0 : index
    %306 = vector.load %arg23[%c0_183, %c0_184] : memref<1x1xf32, #tpu.memory_space<vmem>>, vector<1x1xf32>
    %307 = vector.broadcast %306 : vector<1x1xf32> to vector<1x32xf32>
    %308 = arith.addf %305, %307 : vector<1x32xf32>
    %c0_185 = arith.constant 0 : index
    %c0_186 = arith.constant 0 : index
    %309 = vector.load %arg24[%c0_185, %c0_186] : memref<1x32xf32, #tpu.memory_space<vmem>>, vector<1x32xf32>
    tpu.vector_store %arg24[%c0_185, %c0_186], %308 {strides = array<i32>} : memref<1x32xf32, #tpu.memory_space<vmem>>, vector<1x32xf32>,
    return
  }
}

</mosaic_0001>

<llo_original>
// kernel: tpu_custom_call.1
$region0: #{tpu_custom_call.1}
  #allocation0 [shape = 'u32[]', space=smem, size = 0x4, offset = 0x4, fixed_abs, tag = 'smem constant byte address 0x4 - core index']
  #allocation1 [shape = 'u32[144,128]{1,0:T(1,128)}', space=vmem, size = 0x12000, scoped, tag = 'internal scratch']
  #allocation2 [shape = 'f32[1,1]{1,0:T(1,128)S(1)}', space=vmem, size = 0x200, scoped, tag = 'scoped memory for tpu_custom_call.1']
  %s0 = inlined_call_operand.vmem [shape: f32[8,32], index: 0, kind: input, shape index: {}]
  %s1 = inlined_call_operand.hbm [shape: f32[8,32], index: 1, kind: input, shape index: {}]
  %s2 = inlined_call_operand.vmem [shape: f32[2,32,96], index: 2, kind: input, shape index: {}]
  %s3 = inlined_call_operand.vmem [shape: f32[2,1,96], index: 3, kind: input, shape index: {}]
  %s4 = inlined_call_operand.vmem [shape: f32[2,32,64], index: 4, kind: input, shape index: {}]
  %s5 = inlined_call_operand.vmem [shape: f32[2,1,64], index: 5, kind: input, shape index: {}]
  %s6 = inlined_call_operand.vmem [shape: f32[2,64,32], index: 6, kind: input, shape index: {}]
  %s7 = inlined_call_operand.hbm [shape: f32[2,1,32], index: 7, kind: input, shape index: {}]
  %s8 = inlined_call_operand.vmem [shape: f32[2,32,96], index: 8, kind: input, shape index: {}]
  %s9 = inlined_call_operand.vmem [shape: f32[2,1,96], index: 9, kind: input, shape index: {}]
  %s10 = inlined_call_operand.vmem [shape: f32[2,32,32], index: 10, kind: input, shape index: {}]
  %s11 = inlined_call_operand.vmem [shape: f32[2,1,32], index: 11, kind: input, shape index: {}]
  %s12 = inlined_call_operand.vmem [shape: f32[2,32,64], index: 12, kind: input, shape index: {}]
  %s13 = inlined_call_operand.vmem [shape: f32[2,1,64], index: 13, kind: input, shape index: {}]
  %s14 = inlined_call_operand.hbm [shape: f32[2,32,32], index: 14, kind: input, shape index: {}]
  %s15 = inlined_call_operand.vmem [shape: f32[2,1,32], index: 15, kind: input, shape index: {}]
  %s16 = inlined_call_operand.hbm [shape: f32[2,32,64], index: 16, kind: input, shape index: {}]
  %s17 = inlined_call_operand.vmem [shape: f32[2,1,64], index: 17, kind: input, shape index: {}]
  %s18 = inlined_call_operand.vmem [shape: f32[2,64,32], index: 18, kind: input, shape index: {}]
  %s19 = inlined_call_operand.vmem [shape: f32[2,1,32], index: 19, kind: input, shape index: {}]
  %s20 = inlined_call_operand.vmem [shape: f32[8,8], index: 20, kind: input, shape index: {}]
  %s21 = inlined_call_operand.vmem [shape: f32[8,1], index: 21, kind: input, shape index: {}]
  %s22 = inlined_call_operand.vmem [shape: f32[1,8], index: 22, kind: input, shape index: {}]
  %s23 = inlined_call_operand.<no memory space> [shape: f32[1,1], index: 23, kind: input, shape index: {}]
  %s24 = inlined_call_operand.hbm [shape: f32[1,32], index: 24, kind: output, shape index: {}]
  %s25 = sld [smem:[#allocation0]]
  $region122: #{tpu_custom_call.1} parent=0
    _
  %s27 = ssub.s32 1, %s25
  %s28 = scalar_select 0, %s27, %s25
  %v29 = vstv %s23
  %30 = vst [vmem:[#allocation2] sm:$0x1] %v29
  $region1: #{tpu_custom_call.1} parent=0
    #allocation3 [shape = 'u8[4096]{0}', space=vmem, size = 0x1000, scoped, tag = 'input window, operand 1, single buffered']
    #allocation4 [shape = 's32[1]{0}', space=sflag, size = 0x4, scoped, tag = 'scoped memory for tpu_custom_call.1']
    #allocation5 [shape = 's32[1]{0}', space=sflag, size = 0x4, scoped, tag = 'scoped memory for tpu_custom_call.1']
    #allocation6 [shape = 'u8[1024]{0}', space=vmem, size = 0x400, scoped, tag = 'input window, operand 7, single buffered']
    #allocation7 [shape = 's32[1]{0}', space=sflag, size = 0x4, scoped, tag = 'scoped memory for tpu_custom_call.1']
    #allocation8 [shape = 'u8[32768]{0}', space=vmem, size = 0x8000, scoped, tag = 'input window, operand 14, single buffered']
    #allocation9 [shape = 'u8[32768]{0}', space=vmem, size = 0x8000, scoped, tag = 'input window, operand 16, single buffered']
    #allocation10 [shape = 's32[1]{0}', space=sflag, size = 0x4, scoped, tag = 'scoped memory for tpu_custom_call.1']
    #allocation11 [shape = 'u8[512]{0}', space=vmem, size = 0x400, scoped, tag = 'output window, operand 0, single buffered']
    %31 = vsyncpa [#allocation4], 0
    %32 = vsyncpa [#allocation7], 0
    %33 = vsyncpa [#allocation10], 0
    %34 = vsyncpa [#allocation5], 0
    // Predicated region
    $region2: #{tpu_custom_call.1} parent=1 // pred_check
      _
    $region3: #{tpu_custom_call.1} parent=1 // pred_check_branch
      %36 = sbr.rel (0) target = $region5
    $region4: #{tpu_custom_call.1} parent=1 // pred_region
      _
    $region5: #{tpu_custom_call.1} parent=1 // pred_fallthru
      _
    // Predicated region
    $region6: #{tpu_custom_call.1} parent=1 // pred_check
      _
    $region7: #{tpu_custom_call.1} parent=1 // pred_check_branch
      %38 = sbr.rel (0) target = $region9
    $region8: #{tpu_custom_call.1} parent=1 // pred_region
      %s40 = ssub.s32 128, 128
      %41 = vsyncadd [#allocation4], %s40
      %s43 = sshll.u32 [#allocation3], 4
      %s44 = int_to_ptr.vmem [resolvable:$true] %s43
      %46 = dma.hbm_to_vmem [thread:$0]  %s1, 128, %s44, [#allocation4]
    $region9: #{tpu_custom_call.1} parent=1 // pred_fallthru
      _
    // Predicated region
    $region10: #{tpu_custom_call.1} parent=1 // pred_check
      _
    $region11: #{tpu_custom_call.1} parent=1 // pred_check_branch
      %48 = sbr.rel (0) target = $region13
    $region12: #{tpu_custom_call.1} parent=1 // pred_region
      _
    $region13: #{tpu_custom_call.1} parent=1 // pred_fallthru
      _
    // Predicated region
    $region14: #{tpu_custom_call.1} parent=1 // pred_check
      _
    $region15: #{tpu_custom_call.1} parent=1 // pred_check_branch
      %50 = sbr.rel (0) target = $region17
    $region16: #{tpu_custom_call.1} parent=1 // pred_region
      _
    $region17: #{tpu_custom_call.1} parent=1 // pred_fallthru
      _
    // Predicated region
    $region18: #{tpu_custom_call.1} parent=1 // pred_check
      _
    $region19: #{tpu_custom_call.1} parent=1 // pred_check_branch
      %52 = sbr.rel (0) target = $region21
    $region20: #{tpu_custom_call.1} parent=1 // pred_region
      _
    $region21: #{tpu_custom_call.1} parent=1 // pred_fallthru
      _
    // Predicated region
    $region22: #{tpu_custom_call.1} parent=1 // pred_check
      _
    $region23: #{tpu_custom_call.1} parent=1 // pred_check_branch
      %54 = sbr.rel (0) target = $region25
    $region24: #{tpu_custom_call.1} parent=1 // pred_region
      _
    $region25: #{tpu_custom_call.1} parent=1 // pred_fallthru
      _
    // Predicated region
    $region26: #{tpu_custom_call.1} parent=1 // pred_check
      _
    $region27: #{tpu_custom_call.1} parent=1 // pred_check_branch
      %56 = sbr.rel (0) target = $region29
    $region28: #{tpu_custom_call.1} parent=1 // pred_region
      _
    $region29: #{tpu_custom_call.1} parent=1 // pred_fallthru
      _
    // Predicated region
    $region30: #{tpu_custom_call.1} parent=1 // pred_check
      _
    $region31: #{tpu_custom_call.1} parent=1 // pred_check_branch
      %58 = sbr.rel (0) target = $region33
    $region32: #{tpu_custom_call.1} parent=1 // pred_region
      %s60 = ssub.s32 32, 32
      %61 = vsyncadd [#allocation7], %s60
      %s62 = sshll.u32 [#allocation6], 4
      %s63 = int_to_ptr.vmem [resolvable:$true] %s62
      %68 = dma.hbm_to_vmem [thread:$0]  %s7, 32, %s63, [#allocation7], 16, 16, 1
    $region33: #{tpu_custom_call.1} parent=1 // pred_fallthru
      _
    // Predicated region
    $region34: #{tpu_custom_call.1} parent=1 // pred_check
      _
    $region35: #{tpu_custom_call.1} parent=1 // pred_check_branch
      %70 = sbr.rel (0) target = $region37
    $region36: #{tpu_custom_call.1} parent=1 // pred_region
      _
    $region37: #{tpu_custom_call.1} parent=1 // pred_fallthru
      _
    // Predicated region
    $region38: #{tpu_custom_call.1} parent=1 // pred_check
      _
    $region39: #{tpu_custom_call.1} parent=1 // pred_check_branch
      %72 = sbr.rel (0) target = $region41
    $region40: #{tpu_custom_call.1} parent=1 // pred_region
      _
    $region41: #{tpu_custom_call.1} parent=1 // pred_fallthru
      _
    // Predicated region
    $region42: #{tpu_custom_call.1} parent=1 // pred_check
      _
    $region43: #{tpu_custom_call.1} parent=1 // pred_check_branch
      %74 = sbr.rel (0) target = $region45
    $region44: #{tpu_custom_call.1} parent=1 // pred_region
      _
    $region45: #{tpu_custom_call.1} parent=1 // pred_fallthru
      _
    // Predicated region
    $region46: #{tpu_custom_call.1} parent=1 // pred_check
      _
    $region47: #{tpu_custom_call.1} parent=1 // pred_check_branch
      %76 = sbr.rel (0) target = $region49
    $region48: #{tpu_custom_call.1} parent=1 // pred_region
      _
    $region49: #{tpu_custom_call.1} parent=1 // pred_fallthru
      _
    // Predicated region
    $region50: #{tpu_custom_call.1} parent=1 // pred_check
      _
    $region51: #{tpu_custom_call.1} parent=1 // pred_check_branch
      %78 = sbr.rel (0) target = $region53
    $region52: #{tpu_custom_call.1} parent=1 // pred_region
      _
    $region53: #{tpu_custom_call.1} parent=1 // pred_fallthru
      _
    // Predicated region
    $region54: #{tpu_custom_call.1} parent=1 // pred_check
      _
    $region55: #{tpu_custom_call.1} parent=1 // pred_check_branch
      %80 = sbr.rel (0) target = $region57
    $region56: #{tpu_custom_call.1} parent=1 // pred_region
      _
    $region57: #{tpu_custom_call.1} parent=1 // pred_fallthru
      _
    // Predicated region
    $region58: #{tpu_custom_call.1} parent=1 // pred_check
      _
    $region59: #{tpu_custom_call.1} parent=1 // pred_check_branch
      %82 = sbr.rel (0) target = $region61
    $region60: #{tpu_custom_call.1} parent=1 // pred_region
      %s84 = ssub.s32 1024, 1024
      %85 = vsyncadd [#allocation7], %s84
      %s86 = sshll.u32 [#allocation8], 4
      %s87 = int_to_ptr.vmem [resolvable:$true] %s86
      %92 = dma.hbm_to_vmem [thread:$0]  %s14, 1024, %s87, [#allocation7], 128, 128, 8
    $region61: #{tpu_custom_call.1} parent=1 // pred_fallthru
      _
    // Predicated region
    $region62: #{tpu_custom_call.1} parent=1 // pred_check
      _
    $region63: #{tpu_custom_call.1} parent=1 // pred_check_branch
      %94 = sbr.rel (0) target = $region65
    $region64: #{tpu_custom_call.1} parent=1 // pred_region
      _
    $region65: #{tpu_custom_call.1} parent=1 // pred_fallthru
      _
    // Predicated region
    $region66: #{tpu_custom_call.1} parent=1 // pred_check
      _
    $region67: #{tpu_custom_call.1} parent=1 // pred_check_branch
      %96 = sbr.rel (0) target = $region69
    $region68: #{tpu_custom_call.1} parent=1 // pred_region
      %s98 = ssub.s32 1024, 1024
      %99 = vsyncadd [#allocation10], %s98
      %s100 = sshll.u32 [#allocation9], 4
      %s101 = int_to_ptr.vmem [resolvable:$true] %s100
      %106 = dma.hbm_to_vmem [thread:$0]  %s16, 1024, %s101, [#allocation10], 128, 128, 8
    $region69: #{tpu_custom_call.1} parent=1 // pred_fallthru
      _
    // Predicated region
    $region70: #{tpu_custom_call.1} parent=1 // pred_check
      _
    $region71: #{tpu_custom_call.1} parent=1 // pred_check_branch
      %108 = sbr.rel (0) target = $region73
    $region72: #{tpu_custom_call.1} parent=1 // pred_region
      _
    $region73: #{tpu_custom_call.1} parent=1 // pred_fallthru
      _
    // Predicated region
    $region74: #{tpu_custom_call.1} parent=1 // pred_check
      _
    $region75: #{tpu_custom_call.1} parent=1 // pred_check_branch
      %110 = sbr.rel (0) target = $region77
    $region76: #{tpu_custom_call.1} parent=1 // pred_region
      _
    $region77: #{tpu_custom_call.1} parent=1 // pred_fallthru
      _
    // Predicated region
    $region78: #{tpu_custom_call.1} parent=1 // pred_check
      _
    $region79: #{tpu_custom_call.1} parent=1 // pred_check_branch
      %112 = sbr.rel (0) target = $region81
    $region80: #{tpu_custom_call.1} parent=1 // pred_region
      _
    $region81: #{tpu_custom_call.1} parent=1 // pred_fallthru
      _
    // Predicated region
    $region82: #{tpu_custom_call.1} parent=1 // pred_check
      _
    $region83: #{tpu_custom_call.1} parent=1 // pred_check_branch
      %114 = sbr.rel (0) target = $region85
    $region84: #{tpu_custom_call.1} parent=1 // pred_region
      _
    $region85: #{tpu_custom_call.1} parent=1 // pred_fallthru
      _
    // Predicated region
    $region86: #{tpu_custom_call.1} parent=1 // pred_check
      _
    $region87: #{tpu_custom_call.1} parent=1 // pred_check_branch
      %116 = sbr.rel (0) target = $region89
    $region88: #{tpu_custom_call.1} parent=1 // pred_region
      _
    $region89: #{tpu_custom_call.1} parent=1 // pred_fallthru
      _
    // Predicated region
    $region90: #{tpu_custom_call.1} parent=1 // pred_check
      _
    $region91: #{tpu_custom_call.1} parent=1 // pred_check_branch
      %118 = sbr.rel (0) target = $region93
    $region92: #{tpu_custom_call.1} parent=1 // pred_region
      _
    $region93: #{tpu_custom_call.1} parent=1 // pred_fallthru
      _
    // Predicated region
    $region94: #{tpu_custom_call.1} parent=1 // pred_check
      _
    $region95: #{tpu_custom_call.1} parent=1 // pred_check_branch
      %120 = sbr.rel (0) target = $region97
    $region96: #{tpu_custom_call.1} parent=1 // pred_region
      _
    $region97: #{tpu_custom_call.1} parent=1 // pred_fallthru
      _
    // Predicated region
    $region98: #{tpu_custom_call.1} parent=1 // pred_check
      _
    $region99: #{tpu_custom_call.1} parent=1 // pred_check_branch
      %122 = sbr.rel (0) target = $region101
    $region100: #{tpu_custom_call.1} parent=1 // pred_region
      %123 = dma.done [#allocation4], 128
    $region101: #{tpu_custom_call.1} parent=1 // pred_fallthru
      _
    // Predicated region
    $region102: #{tpu_custom_call.1} parent=1 // pred_check
      _
    $region103: #{tpu_custom_call.1} parent=1 // pred_check_branch
      %125 = sbr.rel (0) target = $region105
    $region104: #{tpu_custom_call.1} parent=1 // pred_region
      %126 = dma.done [#allocation7], 32
    $region105: #{tpu_custom_call.1} parent=1 // pred_fallthru
      _
    // Predicated region
    $region106: #{tpu_custom_call.1} parent=1 // pred_check
      _
    $region107: #{tpu_custom_call.1} parent=1 // pred_check_branch
      %128 = sbr.rel (0) target = $region109
    $region108: #{tpu_custom_call.1} parent=1 // pred_region
      %129 = dma.done [#allocation7], 1024
    $region109: #{tpu_custom_call.1} parent=1 // pred_fallthru
      _
    // Predicated region
    $region110: #{tpu_custom_call.1} parent=1 // pred_check
      _
    $region111: #{tpu_custom_call.1} parent=1 // pred_check_branch
      %131 = sbr.rel (0) target = $region113
    $region112: #{tpu_custom_call.1} parent=1 // pred_region
      %132 = dma.done [#allocation10], 1024
    $region113: #{tpu_custom_call.1} parent=1 // pred_fallthru
      _
    %v133 = vld [vmem:[%s0] sm:$0xff]
    %v134 = vld [vmem:[#allocation3] sm:$0xff]
    %v135 = vld [vmem:[%s2] sm:$0xff]
    %v136 = vld [vmem:[%s2 + $0x8] sm:$0xff]
    %v137 = vld [vmem:[%s2 + $0x10] sm:$0xff]
    %v138 = vld [vmem:[%s2 + $0x18] sm:$0xff]
    %v139 = vld [vmem:[%s3] sm:$0x1]
    %v141 = vlaneseq
    %v142 = vshrl.u32 %v141, 7
    %v143 = vsub.s32 0, %v142
    %v144 = vrot.slane %v139, %v143
    %vm146 = vcmask 261120
    %v148 = vsel %vm146, %v133, 0
    %150 = vmatprep.subr.mxu0 0.0
    %151 = vmatpush1.msra.mxu0 0.0
    %152 = vmatprep.subr.mxu0 0.0
    %153 = vmatpush1.msra.mxu0 0.0
    %154 = vmatprep.subr.mxu0 0.0
    %155 = vmatpush1.msra.mxu0 0.0
    %156 = vmatprep.subr.mxu0 0.0
    %157 = vmatpush1.msra.mxu0 0.0
    %158 = vmatprep.subr.mxu0 0.0
    %159 = vmatpush1.msra.mxu0 0.0
    %160 = vmatprep.subr.mxu0 0.0
    %161 = vmatpush1.msra.mxu0 0.0
    %162 = vmatprep.subr.mxu0 0.0
    %163 = vmatpush1.msra.mxu0 0.0
    %164 = vmatprep.subr.mxu0 0.0
    %165 = vmatpush1.msra.mxu0 0.0
    %166 = vmatprep.subr.mxu0 0.0
    %167 = vmatpush1.msra.mxu0 0.0
    %168 = vmatprep.subr.mxu0 0.0
    %169 = vmatpush1.msra.mxu0 0.0
    %170 = vmatprep.subr.mxu0 0.0
    %171 = vmatpush1.msra.mxu0 0.0
    %172 = vmatprep.subr.mxu0 0.0
    %173 = vmatpush1.msra.mxu0 0.0
    %174 = vmatprep.subr.mxu0 0.0
    %175 = vmatpush1.msra.mxu0 %v138
    %176 = vmatprep.subr.mxu0 0.0
    %177 = vmatpush1.msra.mxu0 %v137
    %178 = vmatprep.subr.mxu0 0.0
    %179 = vmatpush1.msra.mxu0 %v136
    %180 = vmatprep.subr.mxu0 0.0
    %181 = vmatpush1.msra.mxu0 %v135
    %182 = vmatprep.subr.mxu0 0.0
    %183 = vmatpush2.msra.mxu0 0.0
    %184 = vmatprep.subr.mxu0 0.0
    %185 = vmatpush2.msra.mxu0 0.0
    %186 = vmatprep.subr.mxu0 0.0
    %187 = vmatpush2.msra.mxu0 0.0
    %188 = vmatprep.subr.mxu0 0.0
    %189 = vmatpush2.msra.mxu0 0.0
    %190 = vmatprep.subr.mxu0 0.0
    %191 = vmatpush2.msra.mxu0 0.0
    %192 = vmatprep.subr.mxu0 0.0
    %193 = vmatpush2.msra.mxu0 0.0
    %194 = vmatprep.subr.mxu0 0.0
    %195 = vmatpush2.msra.mxu0 0.0
    %196 = vmatprep.subr.mxu0 0.0
    %197 = vmatpush2.msra.mxu0 0.0
    %198 = vmatprep.subr.mxu0 0.0
    %199 = vmatpush2.msra.mxu0 0.0
    %200 = vmatprep.subr.mxu0 0.0
    %201 = vmatpush2.msra.mxu0 0.0
    %202 = vmatprep.subr.mxu0 0.0
    %203 = vmatpush2.msra.mxu0 0.0
    %204 = vmatprep.subr.mxu0 0.0
    %205 = vmatpush2.msra.mxu0 0.0
    %206 = vmatprep.subr.mxu0 0.0
    %207 = vmatpush2.msra.mxu0 0.0
    %208 = vmatprep.subr.mxu0 0.0
    %209 = vmatpush2.msra.mxu0 0.0
    %210 = vmatprep.subr.mxu0 0.0
    %211 = vmatpush2.msra.mxu0 0.0
    %212 = vmatprep.subr.mxu0 0.0
    %213 = vmatpush2.msra.mxu0 0.0
    %214 = vmatprep.mubr.f32.mxu0 0.0
    %215 = vmatmul.mubr.f32.gmra.mxu0 %v148
    %v216 = vpop.f32.mrf.mxu0
    %v217 = vadd.f32 %v144, %v216
    %v218 = vpop.f32.mrf.mxu0
    %219 = vdwg.mxu0
    %221 = vrot.lane.b32.xlu0 %v217, 96
    %v222 = vpop.permute.xlu0 %221
    %v223 = vsel %vm146, %v217, 0
    %v225 = vsel %vm146, %v222, 0
    %227 = vmatprep.subr.mxu0 0.0
    %228 = vmatpush1.xpose.msra.mxu0 0.0
    %229 = vmatprep.subr.mxu0 0.0
    %230 = vmatpush1.xpose.msra.mxu0 0.0
    %231 = vmatprep.subr.mxu0 0.0
    %232 = vmatpush1.xpose.msra.mxu0 0.0
    %233 = vmatprep.subr.mxu0 0.0
    %234 = vmatpush1.xpose.msra.mxu0 0.0
    %235 = vmatprep.subr.mxu0 0.0
    %236 = vmatpush1.xpose.msra.mxu0 0.0
    %237 = vmatprep.subr.mxu0 0.0
    %238 = vmatpush1.xpose.msra.mxu0 0.0
    %239 = vmatprep.subr.mxu0 0.0
    %240 = vmatpush1.xpose.msra.mxu0 0.0
    %241 = vmatprep.subr.mxu0 0.0
    %242 = vmatpush1.xpose.msra.mxu0 0.0
    %243 = vmatprep.subr.mxu0 0.0
    %244 = vmatpush1.xpose.msra.mxu0 0.0
    %245 = vmatprep.subr.mxu0 0.0
    %246 = vmatpush1.xpose.msra.mxu0 0.0
    %247 = vmatprep.subr.mxu0 0.0
    %248 = vmatpush1.xpose.msra.mxu0 0.0
    %249 = vmatprep.subr.mxu0 0.0
    %250 = vmatpush1.xpose.msra.mxu0 0.0
    %251 = vmatprep.subr.mxu0 0.0
    %252 = vmatpush1.xpose.msra.mxu0 0.0
    %253 = vmatprep.subr.mxu0 0.0
    %254 = vmatpush1.xpose.msra.mxu0 0.0
    %255 = vmatprep.subr.mxu0 0.0
    %256 = vmatpush1.xpose.msra.mxu0 0.0
    %257 = vmatprep.subr.mxu0 0.0
    %258 = vmatpush1.xpose.msra.mxu0 %v225
    %259 = vmatprep.subr.mxu0 0.0
    %260 = vmatpush2.xpose.msra.mxu0 0.0
    %261 = vmatprep.subr.mxu0 0.0
    %262 = vmatpush2.xpose.msra.mxu0 0.0
    %263 = vmatprep.subr.mxu0 0.0
    %264 = vmatpush2.xpose.msra.mxu0 0.0
    %265 = vmatprep.subr.mxu0 0.0
    %266 = vmatpush2.xpose.msra.mxu0 0.0
    %267 = vmatprep.subr.mxu0 0.0
    %268 = vmatpush2.xpose.msra.mxu0 0.0
    %269 = vmatprep.subr.mxu0 0.0
    %270 = vmatpush2.xpose.msra.mxu0 0.0
    %271 = vmatprep.subr.mxu0 0.0
    %272 = vmatpush2.xpose.msra.mxu0 0.0
    %273 = vmatprep.subr.mxu0 0.0
    %274 = vmatpush2.xpose.msra.mxu0 0.0
    %275 = vmatprep.subr.mxu0 0.0
    %276 = vmatpush2.xpose.msra.mxu0 0.0
    %277 = vmatprep.subr.mxu0 0.0
    %278 = vmatpush2.xpose.msra.mxu0 0.0
    %279 = vmatprep.subr.mxu0 0.0
    %280 = vmatpush2.xpose.msra.mxu0 0.0
    %281 = vmatprep.subr.mxu0 0.0
    %282 = vmatpush2.xpose.msra.mxu0 0.0
    %283 = vmatprep.subr.mxu0 0.0
    %284 = vmatpush2.xpose.msra.mxu0 0.0
    %285 = vmatprep.subr.mxu0 0.0
    %286 = vmatpush2.xpose.msra.mxu0 0.0
    %287 = vmatprep.subr.mxu0 0.0
    %288 = vmatpush2.xpose.msra.mxu0 0.0
    %289 = vmatprep.subr.mxu0 0.0
    %290 = vmatpush2.xpose.msra.mxu0 0.0
    %291 = vmatprep.mubr.f32.mxu0 0.0
    %292 = vmatmul.mubr.f32.gmra.mxu0 %v223
    %v293 = vpop.f32.mrf.mxu0
    %v294 = vadd.f32 0.0, %v293
    %v295 = vpop.f32.mrf.mxu0
    %296 = vdwg.mxu0
    %vm297 = vcmask 64512
    %v298 = vsel %vm297, %v294, -inf
    %299 = vmax.xlane.f32.xlu0 %v298
    %v300 = vpop.xlane.xlu0 %299
    %v301 = vsub.f32 %v294, %v300
    %v302 = vmul.f32 %v301, 1.442695
    %v303 = vpow.pop %v302
    %v304 = vsel %vm297, %v303, 0.0
    %305 = vadd.xlane.f32.xlu0 %v304
    %v306 = vpop.xlane.xlu0 %305
    %v307 = vrcp.pop %v306
    %v308 = vmul.f32 %v303, %v307
    %309 = vrot.lane.b32.xlu0 %v217, 64
    %v310 = vpop.permute.xlu0 %309
    %v313 = vsel %vm297, %v308, 0
    %315 = vmatprep.subr.mxu0 0.0
    %316 = vmatpush1.msra.mxu0 0.0
    %317 = vmatprep.subr.mxu0 0.0
    %318 = vmatpush1.msra.mxu0 0.0
    %319 = vmatprep.subr.mxu0 0.0
    %320 = vmatpush1.msra.mxu0 0.0
    %321 = vmatprep.subr.mxu0 0.0
    %322 = vmatpush1.msra.mxu0 0.0
    %323 = vmatprep.subr.mxu0 0.0
    %324 = vmatpush1.msra.mxu0 0.0
    %325 = vmatprep.subr.mxu0 0.0
    %326 = vmatpush1.msra.mxu0 0.0
    %327 = vmatprep.subr.mxu0 0.0
    %328 = vmatpush1.msra.mxu0 0.0
    %329 = vmatprep.subr.mxu0 0.0
    %330 = vmatpush1.msra.mxu0 0.0
    %331 = vmatprep.subr.mxu0 0.0
    %332 = vmatpush1.msra.mxu0 0.0
    %333 = vmatprep.subr.mxu0 0.0
    %334 = vmatpush1.msra.mxu0 0.0
    %335 = vmatprep.subr.mxu0 0.0
    %336 = vmatpush1.msra.mxu0 0.0
    %337 = vmatprep.subr.mxu0 0.0
    %338 = vmatpush1.msra.mxu0 0.0
    %339 = vmatprep.subr.mxu0 0.0
    %340 = vmatpush1.msra.mxu0 0.0
    %341 = vmatprep.subr.mxu0 0.0
    %342 = vmatpush1.msra.mxu0 0.0
    %343 = vmatprep.subr.mxu0 0.0
    %344 = vmatpush1.msra.mxu0 0.0
    %345 = vmatprep.subr.mxu0 0.0
    %346 = vmatpush1.msra.mxu0 %v310
    %347 = vmatprep.subr.mxu0 0.0
    %348 = vmatpush2.msra.mxu0 0.0
    %349 = vmatprep.subr.mxu0 0.0
    %350 = vmatpush2.msra.mxu0 0.0
    %351 = vmatprep.subr.mxu0 0.0
    %352 = vmatpush2.msra.mxu0 0.0
    %353 = vmatprep.subr.mxu0 0.0
    %354 = vmatpush2.msra.mxu0 0.0
    %355 = vmatprep.subr.mxu0 0.0
    %356 = vmatpush2.msra.mxu0 0.0
    %357 = vmatprep.subr.mxu0 0.0
    %358 = vmatpush2.msra.mxu0 0.0
    %359 = vmatprep.subr.mxu0 0.0
    %360 = vmatpush2.msra.mxu0 0.0
    %361 = vmatprep.subr.mxu0 0.0
    %362 = vmatpush2.msra.mxu0 0.0
    %363 = vmatprep.subr.mxu0 0.0
    %364 = vmatpush2.msra.mxu0 0.0
    %365 = vmatprep.subr.mxu0 0.0
    %366 = vmatpush2.msra.mxu0 0.0
    %367 = vmatprep.subr.mxu0 0.0
    %368 = vmatpush2.msra.mxu0 0.0
    %369 = vmatprep.subr.mxu0 0.0
    %370 = vmatpush2.msra.mxu0 0.0
    %371 = vmatprep.subr.mxu0 0.0
    %372 = vmatpush2.msra.mxu0 0.0
    %373 = vmatprep.subr.mxu0 0.0
    %374 = vmatpush2.msra.mxu0 0.0
    %375 = vmatprep.subr.mxu0 0.0
    %376 = vmatpush2.msra.mxu0 0.0
    %377 = vmatprep.subr.mxu0 0.0
    %378 = vmatpush2.msra.mxu0 0.0
    %379 = vmatprep.mubr.f32.mxu0 0.0
    %380 = vmatmul.mubr.f32.gmra.mxu0 %v313
    %v381 = vpop.f32.mrf.mxu0
    %v382 = vadd.f32 0.0, %v381
    %v383 = vpop.f32.mrf.mxu0
    %384 = vdwg.mxu0
    %v385 = vsel %vm146, %v382, 0.0
    %386 = vadd.xlane.f32.xlu0 %v385
    %v387 = vpop.xlane.xlu0 %386
    %v388 = vrcp.pop 32.0
    %v389 = vmul.f32 %v387, %v388
    %v390 = vsub.f32 %v382, %v389
    %v391 = vmul.f32 %v390, %v390
    %v392 = vsel %vm146, %v391, 0.0
    %393 = vadd.xlane.f32.xlu0 %v392
    %v394 = vpop.xlane.xlu0 %393
    %v395 = vmul.f32 %v394, %v388
    %v396 = vadd.f32 %v395, 1e-05
    %v397 = vrsqrt.pop %v396
    %v398 = vmul.f32 %v390, %v397
    %v399 = vld [vmem:[%s4] sm:$0xff]
    %v400 = vld [vmem:[%s4 + $0x8] sm:$0xff]
    %v401 = vld [vmem:[%s4 + $0x10] sm:$0xff]
    %v402 = vld [vmem:[%s4 + $0x18] sm:$0xff]
    %v403 = vld [vmem:[%s5] sm:$0x1]
    %v405 = vlaneseq
    %v406 = vshrl.u32 %v405, 7
    %v407 = vsub.s32 0, %v406
    %v408 = vrot.slane %v403, %v407
    %v411 = vsel %vm146, %v398, 0
    %413 = vmatprep.subr.mxu0 0.0
    %414 = vmatpush1.msra.mxu0 0.0
    %415 = vmatprep.subr.mxu0 0.0
    %416 = vmatpush1.msra.mxu0 0.0
    %417 = vmatprep.subr.mxu0 0.0
    %418 = vmatpush1.msra.mxu0 0.0
    %419 = vmatprep.subr.mxu0 0.0
    %420 = vmatpush1.msra.mxu0 0.0
    %421 = vmatprep.subr.mxu0 0.0
    %422 = vmatpush1.msra.mxu0 0.0
    %423 = vmatprep.subr.mxu0 0.0
    %424 = vmatpush1.msra.mxu0 0.0
    %425 = vmatprep.subr.mxu0 0.0
    %426 = vmatpush1.msra.mxu0 0.0
    %427 = vmatprep.subr.mxu0 0.0
    %428 = vmatpush1.msra.mxu0 0.0
    %429 = vmatprep.subr.mxu0 0.0
    %430 = vmatpush1.msra.mxu0 0.0
    %431 = vmatprep.subr.mxu0 0.0
    %432 = vmatpush1.msra.mxu0 0.0
    %433 = vmatprep.subr.mxu0 0.0
    %434 = vmatpush1.msra.mxu0 0.0
    %435 = vmatprep.subr.mxu0 0.0
    %436 = vmatpush1.msra.mxu0 0.0
    %437 = vmatprep.subr.mxu0 0.0
    %438 = vmatpush1.msra.mxu0 %v402
    %439 = vmatprep.subr.mxu0 0.0
    %440 = vmatpush1.msra.mxu0 %v401
    %441 = vmatprep.subr.mxu0 0.0
    %442 = vmatpush1.msra.mxu0 %v400
    %443 = vmatprep.subr.mxu0 0.0
    %444 = vmatpush1.msra.mxu0 %v399
    %445 = vmatprep.subr.mxu0 0.0
    %446 = vmatpush2.msra.mxu0 0.0
    %447 = vmatprep.subr.mxu0 0.0
    %448 = vmatpush2.msra.mxu0 0.0
    %449 = vmatprep.subr.mxu0 0.0
    %450 = vmatpush2.msra.mxu0 0.0
    %451 = vmatprep.subr.mxu0 0.0
    %452 = vmatpush2.msra.mxu0 0.0
    %453 = vmatprep.subr.mxu0 0.0
    %454 = vmatpush2.msra.mxu0 0.0
    %455 = vmatprep.subr.mxu0 0.0
    %456 = vmatpush2.msra.mxu0 0.0
    %457 = vmatprep.subr.mxu0 0.0
    %458 = vmatpush2.msra.mxu0 0.0
    %459 = vmatprep.subr.mxu0 0.0
    %460 = vmatpush2.msra.mxu0 0.0
    %461 = vmatprep.subr.mxu0 0.0
    %462 = vmatpush2.msra.mxu0 0.0
    %463 = vmatprep.subr.mxu0 0.0
    %464 = vmatpush2.msra.mxu0 0.0
    %465 = vmatprep.subr.mxu0 0.0
    %466 = vmatpush2.msra.mxu0 0.0
    %467 = vmatprep.subr.mxu0 0.0
    %468 = vmatpush2.msra.mxu0 0.0
    %469 = vmatprep.subr.mxu0 0.0
    %470 = vmatpush2.msra.mxu0 0.0
    %471 = vmatprep.subr.mxu0 0.0
    %472 = vmatpush2.msra.mxu0 0.0
    %473 = vmatprep.subr.mxu0 0.0
    %474 = vmatpush2.msra.mxu0 0.0
    %475 = vmatprep.subr.mxu0 0.0
    %476 = vmatpush2.msra.mxu0 0.0
    %477 = vmatprep.mubr.f32.mxu0 0.0
    %478 = vmatmul.mubr.f32.gmra.mxu0 %v411
    %v479 = vpop.f32.mrf.mxu0
    %v480 = vadd.f32 %v408, %v479
    %v481 = vpop.f32.mrf.mxu0
    %482 = vdwg.mxu0
    %v483 = vmax.f32 %v480, 0.0
    %v484 = vld [vmem:[%s6] sm:$0xff]
    %v485 = vld [vmem:[%s6 + $0x8] sm:$0xff]
    %v486 = vld [vmem:[%s6 + $0x10] sm:$0xff]
    %v487 = vld [vmem:[%s6 + $0x18] sm:$0xff]
    %v488 = vld [vmem:[%s6 + $0x20] sm:$0xff]
    %v489 = vld [vmem:[%s6 + $0x28] sm:$0xff]
    %v490 = vld [vmem:[%s6 + $0x30] sm:$0xff]
    %v491 = vld [vmem:[%s6 + $0x38] sm:$0xff]
    %vm492 = vcmask 523264
    %v494 = vsel %vm492, %v483, 0
    %496 = vmatprep.subr.mxu0 0.0
    %497 = vmatpush1.msra.mxu0 0.0
    %498 = vmatprep.subr.mxu0 0.0
    %499 = vmatpush1.msra.mxu0 0.0
    %500 = vmatprep.subr.mxu0 0.0
    %501 = vmatpush1.msra.mxu0 0.0
    %502 = vmatprep.subr.mxu0 0.0
    %503 = vmatpush1.msra.mxu0 0.0
    %504 = vmatprep.subr.mxu0 0.0
    %505 = vmatpush1.msra.mxu0 0.0
    %506 = vmatprep.subr.mxu0 0.0
    %507 = vmatpush1.msra.mxu0 0.0
    %508 = vmatprep.subr.mxu0 0.0
    %509 = vmatpush1.msra.mxu0 0.0
    %510 = vmatprep.subr.mxu0 0.0
    %511 = vmatpush1.msra.mxu0 0.0
    %512 = vmatprep.subr.mxu0 0.0
    %513 = vmatpush1.msra.mxu0 %v491
    %514 = vmatprep.subr.mxu0 0.0
    %515 = vmatpush1.msra.mxu0 %v490
    %516 = vmatprep.subr.mxu0 0.0
    %517 = vmatpush1.msra.mxu0 %v489
    %518 = vmatprep.subr.mxu0 0.0
    %519 = vmatpush1.msra.mxu0 %v488
    %520 = vmatprep.subr.mxu0 0.0
    %521 = vmatpush1.msra.mxu0 %v487
    %522 = vmatprep.subr.mxu0 0.0
    %523 = vmatpush1.msra.mxu0 %v486
    %524 = vmatprep.subr.mxu0 0.0
    %525 = vmatpush1.msra.mxu0 %v485
    %526 = vmatprep.subr.mxu0 0.0
    %527 = vmatpush1.msra.mxu0 %v484
    %528 = vmatprep.subr.mxu0 0.0
    %529 = vmatpush2.msra.mxu0 0.0
    %530 = vmatprep.subr.mxu0 0.0
    %531 = vmatpush2.msra.mxu0 0.0
    %532 = vmatprep.subr.mxu0 0.0
    %533 = vmatpush2.msra.mxu0 0.0
    %534 = vmatprep.subr.mxu0 0.0
    %535 = vmatpush2.msra.mxu0 0.0
    %536 = vmatprep.subr.mxu0 0.0
    %537 = vmatpush2.msra.mxu0 0.0
    %538 = vmatprep.subr.mxu0 0.0
    %539 = vmatpush2.msra.mxu0 0.0
    %540 = vmatprep.subr.mxu0 0.0
    %541 = vmatpush2.msra.mxu0 0.0
    %542 = vmatprep.subr.mxu0 0.0
    %543 = vmatpush2.msra.mxu0 0.0
    %544 = vmatprep.subr.mxu0 0.0
    %545 = vmatpush2.msra.mxu0 0.0
    %546 = vmatprep.subr.mxu0 0.0
    %547 = vmatpush2.msra.mxu0 0.0
    %548 = vmatprep.subr.mxu0 0.0
    %549 = vmatpush2.msra.mxu0 0.0
    %550 = vmatprep.subr.mxu0 0.0
    %551 = vmatpush2.msra.mxu0 0.0
    %552 = vmatprep.subr.mxu0 0.0
    %553 = vmatpush2.msra.mxu0 0.0
    %554 = vmatprep.subr.mxu0 0.0
    %555 = vmatpush2.msra.mxu0 0.0
    %556 = vmatprep.subr.mxu0 0.0
    %557 = vmatpush2.msra.mxu0 0.0
    %558 = vmatprep.subr.mxu0 0.0
    %559 = vmatpush2.msra.mxu0 0.0
    %560 = vmatprep.mubr.f32.mxu0 0.0
    %561 = vmatmul.mubr.f32.gmra.mxu0 %v494
    %v562 = vpop.f32.mrf.mxu0
    %v563 = vadd.f32 0.0, %v562
    %v564 = vpop.f32.mrf.mxu0
    %565 = vdwg.mxu0
    %v566 = vadd.f32 %v133, %v563
    %v567 = vld [vmem:[#allocation6] sm:$0x1]
    %v569 = vlaneseq
    %v570 = vshrl.u32 %v569, 7
    %v571 = vsub.s32 0, %v570
    %v572 = vrot.slane %v567, %v571
    %v574 = vadd.f32 %v566, %v572
    %s575 = scalar_lea.vmem %s2, 32
    %v576 = vld [vmem:[%s575] sm:$0xff]
    %v577 = vld [vmem:[%s575 + $0x8] sm:$0xff]
    %v578 = vld [vmem:[%s575 + $0x10] sm:$0xff]
    %v579 = vld [vmem:[%s575 + $0x18] sm:$0xff]
    %s580 = scalar_lea.vmem %s3, 1
    %v581 = vld [vmem:[%s580] sm:$0x1]
    %v583 = vlaneseq
    %v584 = vshrl.u32 %v583, 7
    %v585 = vsub.s32 0, %v584
    %v586 = vrot.slane %v581, %v585
    %v589 = vsel %vm146, %v574, 0
    %591 = vmatprep.subr.mxu0 0.0
    %592 = vmatpush1.msra.mxu0 0.0
    %593 = vmatprep.subr.mxu0 0.0
    %594 = vmatpush1.msra.mxu0 0.0
    %595 = vmatprep.subr.mxu0 0.0
    %596 = vmatpush1.msra.mxu0 0.0
    %597 = vmatprep.subr.mxu0 0.0
    %598 = vmatpush1.msra.mxu0 0.0
    %599 = vmatprep.subr.mxu0 0.0
    %600 = vmatpush1.msra.mxu0 0.0
    %601 = vmatprep.subr.mxu0 0.0
    %602 = vmatpush1.msra.mxu0 0.0
    %603 = vmatprep.subr.mxu0 0.0
    %604 = vmatpush1.msra.mxu0 0.0
    %605 = vmatprep.subr.mxu0 0.0
    %606 = vmatpush1.msra.mxu0 0.0
    %607 = vmatprep.subr.mxu0 0.0
    %608 = vmatpush1.msra.mxu0 0.0
    %609 = vmatprep.subr.mxu0 0.0
    %610 = vmatpush1.msra.mxu0 0.0
    %611 = vmatprep.subr.mxu0 0.0
    %612 = vmatpush1.msra.mxu0 0.0
    %613 = vmatprep.subr.mxu0 0.0
    %614 = vmatpush1.msra.mxu0 0.0
    %615 = vmatprep.subr.mxu0 0.0
    %616 = vmatpush1.msra.mxu0 %v579
    %617 = vmatprep.subr.mxu0 0.0
    %618 = vmatpush1.msra.mxu0 %v578
    %619 = vmatprep.subr.mxu0 0.0
    %620 = vmatpush1.msra.mxu0 %v577
    %621 = vmatprep.subr.mxu0 0.0
    %622 = vmatpush1.msra.mxu0 %v576
    %623 = vmatprep.subr.mxu0 0.0
    %624 = vmatpush2.msra.mxu0 0.0
    %625 = vmatprep.subr.mxu0 0.0
    %626 = vmatpush2.msra.mxu0 0.0
    %627 = vmatprep.subr.mxu0 0.0
    %628 = vmatpush2.msra.mxu0 0.0
    %629 = vmatprep.subr.mxu0 0.0
    %630 = vmatpush2.msra.mxu0 0.0
    %631 = vmatprep.subr.mxu0 0.0
    %632 = vmatpush2.msra.mxu0 0.0
    %633 = vmatprep.subr.mxu0 0.0
    %634 = vmatpush2.msra.mxu0 0.0
    %635 = vmatprep.subr.mxu0 0.0
    %636 = vmatpush2.msra.mxu0 0.0
    %637 = vmatprep.subr.mxu0 0.0
    %638 = vmatpush2.msra.mxu0 0.0
    %639 = vmatprep.subr.mxu0 0.0
    %640 = vmatpush2.msra.mxu0 0.0
    %641 = vmatprep.subr.mxu0 0.0
    %642 = vmatpush2.msra.mxu0 0.0
    %643 = vmatprep.subr.mxu0 0.0
    %644 = vmatpush2.msra.mxu0 0.0
    %645 = vmatprep.subr.mxu0 0.0
    %646 = vmatpush2.msra.mxu0 0.0
    %647 = vmatprep.subr.mxu0 0.0
    %648 = vmatpush2.msra.mxu0 0.0
    %649 = vmatprep.subr.mxu0 0.0
    %650 = vmatpush2.msra.mxu0 0.0
    %651 = vmatprep.subr.mxu0 0.0
    %652 = vmatpush2.msra.mxu0 0.0
    %653 = vmatprep.subr.mxu0 0.0
    %654 = vmatpush2.msra.mxu0 0.0
    %655 = vmatprep.mubr.f32.mxu0 0.0
    %656 = vmatmul.mubr.f32.gmra.mxu0 %v589
    %v657 = vpop.f32.mrf.mxu0
    %v658 = vadd.f32 %v586, %v657
    %v659 = vpop.f32.mrf.mxu0
    %660 = vdwg.mxu0
    %662 = vrot.lane.b32.xlu0 %v658, 96
    %v663 = vpop.permute.xlu0 %662
    %v664 = vsel %vm146, %v658, 0
    %v666 = vsel %vm146, %v663, 0
    %668 = vmatprep.subr.mxu0 0.0
    %669 = vmatpush1.xpose.msra.mxu0 0.0
    %670 = vmatprep.subr.mxu0 0.0
    %671 = vmatpush1.xpose.msra.mxu0 0.0
    %672 = vmatprep.subr.mxu0 0.0
    %673 = vmatpush1.xpose.msra.mxu0 0.0
    %674 = vmatprep.subr.mxu0 0.0
    %675 = vmatpush1.xpose.msra.mxu0 0.0
    %676 = vmatprep.subr.mxu0 0.0
    %677 = vmatpush1.xpose.msra.mxu0 0.0
    %678 = vmatprep.subr.mxu0 0.0
    %679 = vmatpush1.xpose.msra.mxu0 0.0
    %680 = vmatprep.subr.mxu0 0.0
    %681 = vmatpush1.xpose.msra.mxu0 0.0
    %682 = vmatprep.subr.mxu0 0.0
    %683 = vmatpush1.xpose.msra.mxu0 0.0
    %684 = vmatprep.subr.mxu0 0.0
    %685 = vmatpush1.xpose.msra.mxu0 0.0
    %686 = vmatprep.subr.mxu0 0.0
    %687 = vmatpush1.xpose.msra.mxu0 0.0
    %688 = vmatprep.subr.mxu0 0.0
    %689 = vmatpush1.xpose.msra.mxu0 0.0
    %690 = vmatprep.subr.mxu0 0.0
    %691 = vmatpush1.xpose.msra.mxu0 0.0
    %692 = vmatprep.subr.mxu0 0.0
    %693 = vmatpush1.xpose.msra.mxu0 0.0
    %694 = vmatprep.subr.mxu0 0.0
    %695 = vmatpush1.xpose.msra.mxu0 0.0
    %696 = vmatprep.subr.mxu0 0.0
    %697 = vmatpush1.xpose.msra.mxu0 0.0
    %698 = vmatprep.subr.mxu0 0.0
    %699 = vmatpush1.xpose.msra.mxu0 %v666
    %700 = vmatprep.subr.mxu0 0.0
    %701 = vmatpush2.xpose.msra.mxu0 0.0
    %702 = vmatprep.subr.mxu0 0.0
    %703 = vmatpush2.xpose.msra.mxu0 0.0
    %704 = vmatprep.subr.mxu0 0.0
    %705 = vmatpush2.xpose.msra.mxu0 0.0
    %706 = vmatprep.subr.mxu0 0.0
    %707 = vmatpush2.xpose.msra.mxu0 0.0
    %708 = vmatprep.subr.mxu0 0.0
    %709 = vmatpush2.xpose.msra.mxu0 0.0
    %710 = vmatprep.subr.mxu0 0.0
    %711 = vmatpush2.xpose.msra.mxu0 0.0
    %712 = vmatprep.subr.mxu0 0.0
    %713 = vmatpush2.xpose.msra.mxu0 0.0
    %714 = vmatprep.subr.mxu0 0.0
    %715 = vmatpush2.xpose.msra.mxu0 0.0
    %716 = vmatprep.subr.mxu0 0.0
    %717 = vmatpush2.xpose.msra.mxu0 0.0
    %718 = vmatprep.subr.mxu0 0.0
    %719 = vmatpush2.xpose.msra.mxu0 0.0
    %720 = vmatprep.subr.mxu0 0.0
    %721 = vmatpush2.xpose.msra.mxu0 0.0
    %722 = vmatprep.subr.mxu0 0.0
    %723 = vmatpush2.xpose.msra.mxu0 0.0
    %724 = vmatprep.subr.mxu0 0.0
    %725 = vmatpush2.xpose.msra.mxu0 0.0
    %726 = vmatprep.subr.mxu0 0.0
    %727 = vmatpush2.xpose.msra.mxu0 0.0
    %728 = vmatprep.subr.mxu0 0.0
    %729 = vmatpush2.xpose.msra.mxu0 0.0
    %730 = vmatprep.subr.mxu0 0.0
    %731 = vmatpush2.xpose.msra.mxu0 0.0
    %732 = vmatprep.mubr.f32.mxu0 0.0
    %733 = vmatmul.mubr.f32.gmra.mxu0 %v664
    %v734 = vpop.f32.mrf.mxu0
    %v735 = vadd.f32 0.0, %v734
    %v736 = vpop.f32.mrf.mxu0
    %737 = vdwg.mxu0
    %v738 = vsel %vm297, %v735, -inf
    %739 = vmax.xlane.f32.xlu0 %v738
    %v740 = vpop.xlane.xlu0 %739
    %v741 = vsub.f32 %v735, %v740
    %v742 = vmul.f32 %v741, 1.442695
    %v743 = vpow.pop %v742
    %v744 = vsel %vm297, %v743, 0.0
    %745 = vadd.xlane.f32.xlu0 %v744
    %v746 = vpop.xlane.xlu0 %745
    %v747 = vrcp.pop %v746
    %v748 = vmul.f32 %v743, %v747
    %749 = vrot.lane.b32.xlu0 %v658, 64
    %v750 = vpop.permute.xlu0 %749
    %v753 = vsel %vm297, %v748, 0
    %755 = vmatprep.subr.mxu0 0.0
    %756 = vmatpush1.msra.mxu0 0.0
    %757 = vmatprep.subr.mxu0 0.0
    %758 = vmatpush1.msra.mxu0 0.0
    %759 = vmatprep.subr.mxu0 0.0
    %760 = vmatpush1.msra.mxu0 0.0
    %761 = vmatprep.subr.mxu0 0.0
    %762 = vmatpush1.msra.mxu0 0.0
    %763 = vmatprep.subr.mxu0 0.0
    %764 = vmatpush1.msra.mxu0 0.0
    %765 = vmatprep.subr.mxu0 0.0
    %766 = vmatpush1.msra.mxu0 0.0
    %767 = vmatprep.subr.mxu0 0.0
    %768 = vmatpush1.msra.mxu0 0.0
    %769 = vmatprep.subr.mxu0 0.0
    %770 = vmatpush1.msra.mxu0 0.0
    %771 = vmatprep.subr.mxu0 0.0
    %772 = vmatpush1.msra.mxu0 0.0
    %773 = vmatprep.subr.mxu0 0.0
    %774 = vmatpush1.msra.mxu0 0.0
    %775 = vmatprep.subr.mxu0 0.0
    %776 = vmatpush1.msra.mxu0 0.0
    %777 = vmatprep.subr.mxu0 0.0
    %778 = vmatpush1.msra.mxu0 0.0
    %779 = vmatprep.subr.mxu0 0.0
    %780 = vmatpush1.msra.mxu0 0.0
    %781 = vmatprep.subr.mxu0 0.0
    %782 = vmatpush1.msra.mxu0 0.0
    %783 = vmatprep.subr.mxu0 0.0
    %784 = vmatpush1.msra.mxu0 0.0
    %785 = vmatprep.subr.mxu0 0.0
    %786 = vmatpush1.msra.mxu0 %v750
    %787 = vmatprep.subr.mxu0 0.0
    %788 = vmatpush2.msra.mxu0 0.0
    %789 = vmatprep.subr.mxu0 0.0
    %790 = vmatpush2.msra.mxu0 0.0
    %791 = vmatprep.subr.mxu0 0.0
    %792 = vmatpush2.msra.mxu0 0.0
    %793 = vmatprep.subr.mxu0 0.0
    %794 = vmatpush2.msra.mxu0 0.0
    %795 = vmatprep.subr.mxu0 0.0
    %796 = vmatpush2.msra.mxu0 0.0
    %797 = vmatprep.subr.mxu0 0.0
    %798 = vmatpush2.msra.mxu0 0.0
    %799 = vmatprep.subr.mxu0 0.0
    %800 = vmatpush2.msra.mxu0 0.0
    %801 = vmatprep.subr.mxu0 0.0
    %802 = vmatpush2.msra.mxu0 0.0
    %803 = vmatprep.subr.mxu0 0.0
    %804 = vmatpush2.msra.mxu0 0.0
    %805 = vmatprep.subr.mxu0 0.0
    %806 = vmatpush2.msra.mxu0 0.0
    %807 = vmatprep.subr.mxu0 0.0
    %808 = vmatpush2.msra.mxu0 0.0
    %809 = vmatprep.subr.mxu0 0.0
    %810 = vmatpush2.msra.mxu0 0.0
    %811 = vmatprep.subr.mxu0 0.0
    %812 = vmatpush2.msra.mxu0 0.0
    %813 = vmatprep.subr.mxu0 0.0
    %814 = vmatpush2.msra.mxu0 0.0
    %815 = vmatprep.subr.mxu0 0.0
    %816 = vmatpush2.msra.mxu0 0.0
    %817 = vmatprep.subr.mxu0 0.0
    %818 = vmatpush2.msra.mxu0 0.0
    %819 = vmatprep.mubr.f32.mxu0 0.0
    %820 = vmatmul.mubr.f32.gmra.mxu0 %v753
    %v821 = vpop.f32.mrf.mxu0
    %v822 = vadd.f32 0.0, %v821
    %v823 = vpop.f32.mrf.mxu0
    %824 = vdwg.mxu0
    %v825 = vsel %vm146, %v822, 0.0
    %826 = vadd.xlane.f32.xlu0 %v825
    %v827 = vpop.xlane.xlu0 %826
    %v828 = vmul.f32 %v827, %v388
    %v829 = vsub.f32 %v822, %v828
    %v830 = vmul.f32 %v829, %v829
    %v831 = vsel %vm146, %v830, 0.0
    %832 = vadd.xlane.f32.xlu0 %v831
    %v833 = vpop.xlane.xlu0 %832
    %v834 = vmul.f32 %v833, %v388
    %v835 = vadd.f32 %v834, 1e-05
    %v836 = vrsqrt.pop %v835
    %v837 = vmul.f32 %v829, %v836
    %s838 = scalar_lea.vmem %s4, 32
    %v839 = vld [vmem:[%s838] sm:$0xff]
    %v840 = vld [vmem:[%s838 + $0x8] sm:$0xff]
    %v841 = vld [vmem:[%s838 + $0x10] sm:$0xff]
    %v842 = vld [vmem:[%s838 + $0x18] sm:$0xff]
    %s843 = scalar_lea.vmem %s5, 1
    %v844 = vld [vmem:[%s843] sm:$0x1]
    %v846 = vlaneseq
    %v847 = vshrl.u32 %v846, 7
    %v848 = vsub.s32 0, %v847
    %v849 = vrot.slane %v844, %v848
    %v852 = vsel %vm146, %v837, 0
    %854 = vmatprep.subr.mxu0 0.0
    %855 = vmatpush1.msra.mxu0 0.0
    %856 = vmatprep.subr.mxu0 0.0
    %857 = vmatpush1.msra.mxu0 0.0
    %858 = vmatprep.subr.mxu0 0.0
    %859 = vmatpush1.msra.mxu0 0.0
    %860 = vmatprep.subr.mxu0 0.0
    %861 = vmatpush1.msra.mxu0 0.0
    %862 = vmatprep.subr.mxu0 0.0
    %863 = vmatpush1.msra.mxu0 0.0
    %864 = vmatprep.subr.mxu0 0.0
    %865 = vmatpush1.msra.mxu0 0.0
    %866 = vmatprep.subr.mxu0 0.0
    %867 = vmatpush1.msra.mxu0 0.0
    %868 = vmatprep.subr.mxu0 0.0
    %869 = vmatpush1.msra.mxu0 0.0
    %870 = vmatprep.subr.mxu0 0.0
    %871 = vmatpush1.msra.mxu0 0.0
    %872 = vmatprep.subr.mxu0 0.0
    %873 = vmatpush1.msra.mxu0 0.0
    %874 = vmatprep.subr.mxu0 0.0
    %875 = vmatpush1.msra.mxu0 0.0
    %876 = vmatprep.subr.mxu0 0.0
    %877 = vmatpush1.msra.mxu0 0.0
    %878 = vmatprep.subr.mxu0 0.0
    %879 = vmatpush1.msra.mxu0 %v842
    %880 = vmatprep.subr.mxu0 0.0
    %881 = vmatpush1.msra.mxu0 %v841
    %882 = vmatprep.subr.mxu0 0.0
    %883 = vmatpush1.msra.mxu0 %v840
    %884 = vmatprep.subr.mxu0 0.0
    %885 = vmatpush1.msra.mxu0 %v839
    %886 = vmatprep.subr.mxu0 0.0
    %887 = vmatpush2.msra.mxu0 0.0
    %888 = vmatprep.subr.mxu0 0.0
    %889 = vmatpush2.msra.mxu0 0.0
    %890 = vmatprep.subr.mxu0 0.0
    %891 = vmatpush2.msra.mxu0 0.0
    %892 = vmatprep.subr.mxu0 0.0
    %893 = vmatpush2.msra.mxu0 0.0
    %894 = vmatprep.subr.mxu0 0.0
    %895 = vmatpush2.msra.mxu0 0.0
    %896 = vmatprep.subr.mxu0 0.0
    %897 = vmatpush2.msra.mxu0 0.0
    %898 = vmatprep.subr.mxu0 0.0
    %899 = vmatpush2.msra.mxu0 0.0
    %900 = vmatprep.subr.mxu0 0.0
    %901 = vmatpush2.msra.mxu0 0.0
    %902 = vmatprep.subr.mxu0 0.0
    %903 = vmatpush2.msra.mxu0 0.0
    %904 = vmatprep.subr.mxu0 0.0
    %905 = vmatpush2.msra.mxu0 0.0
    %906 = vmatprep.subr.mxu0 0.0
    %907 = vmatpush2.msra.mxu0 0.0
    %908 = vmatprep.subr.mxu0 0.0
    %909 = vmatpush2.msra.mxu0 0.0
    %910 = vmatprep.subr.mxu0 0.0
    %911 = vmatpush2.msra.mxu0 0.0
    %912 = vmatprep.subr.mxu0 0.0
    %913 = vmatpush2.msra.mxu0 0.0
    %914 = vmatprep.subr.mxu0 0.0
    %915 = vmatpush2.msra.mxu0 0.0
    %916 = vmatprep.subr.mxu0 0.0
    %917 = vmatpush2.msra.mxu0 0.0
    %918 = vmatprep.mubr.f32.mxu0 0.0
    %919 = vmatmul.mubr.f32.gmra.mxu0 %v852
    %v920 = vpop.f32.mrf.mxu0
    %v921 = vadd.f32 %v849, %v920
    %v922 = vpop.f32.mrf.mxu0
    %923 = vdwg.mxu0
    %v924 = vmax.f32 %v921, 0.0
    %s925 = scalar_lea.vmem %s6, 64
    %v926 = vld [vmem:[%s925] sm:$0xff]
    %v927 = vld [vmem:[%s925 + $0x8] sm:$0xff]
    %v928 = vld [vmem:[%s925 + $0x10] sm:$0xff]
    %v929 = vld [vmem:[%s925 + $0x18] sm:$0xff]
    %v930 = vld [vmem:[%s925 + $0x20] sm:$0xff]
    %v931 = vld [vmem:[%s925 + $0x28] sm:$0xff]
    %v932 = vld [vmem:[%s925 + $0x30] sm:$0xff]
    %v933 = vld [vmem:[%s925 + $0x38] sm:$0xff]
    %v935 = vsel %vm492, %v924, 0
    %937 = vmatprep.subr.mxu0 0.0
    %938 = vmatpush1.msra.mxu0 0.0
    %939 = vmatprep.subr.mxu0 0.0
    %940 = vmatpush1.msra.mxu0 0.0
    %941 = vmatprep.subr.mxu0 0.0
    %942 = vmatpush1.msra.mxu0 0.0
    %943 = vmatprep.subr.mxu0 0.0
    %944 = vmatpush1.msra.mxu0 0.0
    %945 = vmatprep.subr.mxu0 0.0
    %946 = vmatpush1.msra.mxu0 0.0
    %947 = vmatprep.subr.mxu0 0.0
    %948 = vmatpush1.msra.mxu0 0.0
    %949 = vmatprep.subr.mxu0 0.0
    %950 = vmatpush1.msra.mxu0 0.0
    %951 = vmatprep.subr.mxu0 0.0
    %952 = vmatpush1.msra.mxu0 0.0
    %953 = vmatprep.subr.mxu0 0.0
    %954 = vmatpush1.msra.mxu0 %v933
    %955 = vmatprep.subr.mxu0 0.0
    %956 = vmatpush1.msra.mxu0 %v932
    %957 = vmatprep.subr.mxu0 0.0
    %958 = vmatpush1.msra.mxu0 %v931
    %959 = vmatprep.subr.mxu0 0.0
    %960 = vmatpush1.msra.mxu0 %v930
    %961 = vmatprep.subr.mxu0 0.0
    %962 = vmatpush1.msra.mxu0 %v929
    %963 = vmatprep.subr.mxu0 0.0
    %964 = vmatpush1.msra.mxu0 %v928
    %965 = vmatprep.subr.mxu0 0.0
    %966 = vmatpush1.msra.mxu0 %v927
    %967 = vmatprep.subr.mxu0 0.0
    %968 = vmatpush1.msra.mxu0 %v926
    %969 = vmatprep.subr.mxu0 0.0
    %970 = vmatpush2.msra.mxu0 0.0
    %971 = vmatprep.subr.mxu0 0.0
    %972 = vmatpush2.msra.mxu0 0.0
    %973 = vmatprep.subr.mxu0 0.0
    %974 = vmatpush2.msra.mxu0 0.0
    %975 = vmatprep.subr.mxu0 0.0
    %976 = vmatpush2.msra.mxu0 0.0
    %977 = vmatprep.subr.mxu0 0.0
    %978 = vmatpush2.msra.mxu0 0.0
    %979 = vmatprep.subr.mxu0 0.0
    %980 = vmatpush2.msra.mxu0 0.0
    %981 = vmatprep.subr.mxu0 0.0
    %982 = vmatpush2.msra.mxu0 0.0
    %983 = vmatprep.subr.mxu0 0.0
    %984 = vmatpush2.msra.mxu0 0.0
    %985 = vmatprep.subr.mxu0 0.0
    %986 = vmatpush2.msra.mxu0 0.0
    %987 = vmatprep.subr.mxu0 0.0
    %988 = vmatpush2.msra.mxu0 0.0
    %989 = vmatprep.subr.mxu0 0.0
    %990 = vmatpush2.msra.mxu0 0.0
    %991 = vmatprep.subr.mxu0 0.0
    %992 = vmatpush2.msra.mxu0 0.0
    %993 = vmatprep.subr.mxu0 0.0
    %994 = vmatpush2.msra.mxu0 0.0
    %995 = vmatprep.subr.mxu0 0.0
    %996 = vmatpush2.msra.mxu0 0.0
    %997 = vmatprep.subr.mxu0 0.0
    %998 = vmatpush2.msra.mxu0 0.0
    %999 = vmatprep.subr.mxu0 0.0
    %1000 = vmatpush2.msra.mxu0 0.0
    %1001 = vmatprep.mubr.f32.mxu0 0.0
    %1002 = vmatmul.mubr.f32.gmra.mxu0 %v935
    %v1003 = vpop.f32.mrf.mxu0
    %v1004 = vadd.f32 0.0, %v1003
    %v1005 = vpop.f32.mrf.mxu0
    %1006 = vdwg.mxu0
    %v1007 = vadd.f32 %v574, %v1004
    %s1008 = scalar_lea.vmem [#allocation6], 1
    %v1009 = vld [vmem:[%s1008] sm:$0x1]
    %v1011 = vlaneseq
    %v1012 = vshrl.u32 %v1011, 7
    %v1013 = vsub.s32 0, %v1012
    %v1014 = vrot.slane %v1009, %v1013
    %v1016 = vadd.f32 %v1007, %v1014
    %v1017 = vld [vmem:[%s8] sm:$0xff]
    %v1018 = vld [vmem:[%s8 + $0x8] sm:$0xff]
    %v1019 = vld [vmem:[%s8 + $0x10] sm:$0xff]
    %v1020 = vld [vmem:[%s8 + $0x18] sm:$0xff]
    %v1021 = vld [vmem:[%s9] sm:$0x1]
    %v1023 = vlaneseq
    %v1024 = vshrl.u32 %v1023, 7
    %v1025 = vsub.s32 0, %v1024
    %v1026 = vrot.slane %v1021, %v1025
    %v1029 = vsel %vm146, %v134, 0
    %1031 = vmatprep.subr.mxu0 0.0
    %1032 = vmatpush1.msra.mxu0 0.0
    %1033 = vmatprep.subr.mxu0 0.0
    %1034 = vmatpush1.msra.mxu0 0.0
    %1035 = vmatprep.subr.mxu0 0.0
    %1036 = vmatpush1.msra.mxu0 0.0
    %1037 = vmatprep.subr.mxu0 0.0
    %1038 = vmatpush1.msra.mxu0 0.0
    %1039 = vmatprep.subr.mxu0 0.0
    %1040 = vmatpush1.msra.mxu0 0.0
    %1041 = vmatprep.subr.mxu0 0.0
    %1042 = vmatpush1.msra.mxu0 0.0
    %1043 = vmatprep.subr.mxu0 0.0
    %1044 = vmatpush1.msra.mxu0 0.0
    %1045 = vmatprep.subr.mxu0 0.0
    %1046 = vmatpush1.msra.mxu0 0.0
    %1047 = vmatprep.subr.mxu0 0.0
    %1048 = vmatpush1.msra.mxu0 0.0
    %1049 = vmatprep.subr.mxu0 0.0
    %1050 = vmatpush1.msra.mxu0 0.0
    %1051 = vmatprep.subr.mxu0 0.0
    %1052 = vmatpush1.msra.mxu0 0.0
    %1053 = vmatprep.subr.mxu0 0.0
    %1054 = vmatpush1.msra.mxu0 0.0
    %1055 = vmatprep.subr.mxu0 0.0
    %1056 = vmatpush1.msra.mxu0 %v1020
    %1057 = vmatprep.subr.mxu0 0.0
    %1058 = vmatpush1.msra.mxu0 %v1019
    %1059 = vmatprep.subr.mxu0 0.0
    %1060 = vmatpush1.msra.mxu0 %v1018
    %1061 = vmatprep.subr.mxu0 0.0
    %1062 = vmatpush1.msra.mxu0 %v1017
    %1063 = vmatprep.subr.mxu0 0.0
    %1064 = vmatpush2.msra.mxu0 0.0
    %1065 = vmatprep.subr.mxu0 0.0
    %1066 = vmatpush2.msra.mxu0 0.0
    %1067 = vmatprep.subr.mxu0 0.0
    %1068 = vmatpush2.msra.mxu0 0.0
    %1069 = vmatprep.subr.mxu0 0.0
    %1070 = vmatpush2.msra.mxu0 0.0
    %1071 = vmatprep.subr.mxu0 0.0
    %1072 = vmatpush2.msra.mxu0 0.0
    %1073 = vmatprep.subr.mxu0 0.0
    %1074 = vmatpush2.msra.mxu0 0.0
    %1075 = vmatprep.subr.mxu0 0.0
    %1076 = vmatpush2.msra.mxu0 0.0
    %1077 = vmatprep.subr.mxu0 0.0
    %1078 = vmatpush2.msra.mxu0 0.0
    %1079 = vmatprep.subr.mxu0 0.0
    %1080 = vmatpush2.msra.mxu0 0.0
    %1081 = vmatprep.subr.mxu0 0.0
    %1082 = vmatpush2.msra.mxu0 0.0
    %1083 = vmatprep.subr.mxu0 0.0
    %1084 = vmatpush2.msra.mxu0 0.0
    %1085 = vmatprep.subr.mxu0 0.0
    %1086 = vmatpush2.msra.mxu0 0.0
    %1087 = vmatprep.subr.mxu0 0.0
    %1088 = vmatpush2.msra.mxu0 0.0
    %1089 = vmatprep.subr.mxu0 0.0
    %1090 = vmatpush2.msra.mxu0 0.0
    %1091 = vmatprep.subr.mxu0 0.0
    %1092 = vmatpush2.msra.mxu0 0.0
    %1093 = vmatprep.subr.mxu0 0.0
    %1094 = vmatpush2.msra.mxu0 0.0
    %1095 = vmatprep.mubr.f32.mxu0 0.0
    %1096 = vmatmul.mubr.f32.gmra.mxu0 %v1029
    %v1097 = vpop.f32.mrf.mxu0
    %v1098 = vadd.f32 %v1026, %v1097
    %v1099 = vpop.f32.mrf.mxu0
    %1100 = vdwg.mxu0
    %1102 = vrot.lane.b32.xlu0 %v1098, 96
    %v1103 = vpop.permute.xlu0 %1102
    %v1104 = vsel %vm146, %v1098, 0
    %v1106 = vsel %vm146, %v1103, 0
    %1108 = vmatprep.subr.mxu0 0.0
    %1109 = vmatpush1.xpose.msra.mxu0 0.0
    %1110 = vmatprep.subr.mxu0 0.0
    %1111 = vmatpush1.xpose.msra.mxu0 0.0
    %1112 = vmatprep.subr.mxu0 0.0
    %1113 = vmatpush1.xpose.msra.mxu0 0.0
    %1114 = vmatprep.subr.mxu0 0.0
    %1115 = vmatpush1.xpose.msra.mxu0 0.0
    %1116 = vmatprep.subr.mxu0 0.0
    %1117 = vmatpush1.xpose.msra.mxu0 0.0
    %1118 = vmatprep.subr.mxu0 0.0
    %1119 = vmatpush1.xpose.msra.mxu0 0.0
    %1120 = vmatprep.subr.mxu0 0.0
    %1121 = vmatpush1.xpose.msra.mxu0 0.0
    %1122 = vmatprep.subr.mxu0 0.0
    %1123 = vmatpush1.xpose.msra.mxu0 0.0
    %1124 = vmatprep.subr.mxu0 0.0
    %1125 = vmatpush1.xpose.msra.mxu0 0.0
    %1126 = vmatprep.subr.mxu0 0.0
    %1127 = vmatpush1.xpose.msra.mxu0 0.0
    %1128 = vmatprep.subr.mxu0 0.0
    %1129 = vmatpush1.xpose.msra.mxu0 0.0
    %1130 = vmatprep.subr.mxu0 0.0
    %1131 = vmatpush1.xpose.msra.mxu0 0.0
    %1132 = vmatprep.subr.mxu0 0.0
    %1133 = vmatpush1.xpose.msra.mxu0 0.0
    %1134 = vmatprep.subr.mxu0 0.0
    %1135 = vmatpush1.xpose.msra.mxu0 0.0
    %1136 = vmatprep.subr.mxu0 0.0
    %1137 = vmatpush1.xpose.msra.mxu0 0.0
    %1138 = vmatprep.subr.mxu0 0.0
    %1139 = vmatpush1.xpose.msra.mxu0 %v1106
    %1140 = vmatprep.subr.mxu0 0.0
    %1141 = vmatpush2.xpose.msra.mxu0 0.0
    %1142 = vmatprep.subr.mxu0 0.0
    %1143 = vmatpush2.xpose.msra.mxu0 0.0
    %1144 = vmatprep.subr.mxu0 0.0
    %1145 = vmatpush2.xpose.msra.mxu0 0.0
    %1146 = vmatprep.subr.mxu0 0.0
    %1147 = vmatpush2.xpose.msra.mxu0 0.0
    %1148 = vmatprep.subr.mxu0 0.0
    %1149 = vmatpush2.xpose.msra.mxu0 0.0
    %1150 = vmatprep.subr.mxu0 0.0
    %1151 = vmatpush2.xpose.msra.mxu0 0.0
    %1152 = vmatprep.subr.mxu0 0.0
    %1153 = vmatpush2.xpose.msra.mxu0 0.0
    %1154 = vmatprep.subr.mxu0 0.0
    %1155 = vmatpush2.xpose.msra.mxu0 0.0
    %1156 = vmatprep.subr.mxu0 0.0
    %1157 = vmatpush2.xpose.msra.mxu0 0.0
    %1158 = vmatprep.subr.mxu0 0.0
    %1159 = vmatpush2.xpose.msra.mxu0 0.0
    %1160 = vmatprep.subr.mxu0 0.0
    %1161 = vmatpush2.xpose.msra.mxu0 0.0
    %1162 = vmatprep.subr.mxu0 0.0
    %1163 = vmatpush2.xpose.msra.mxu0 0.0
    %1164 = vmatprep.subr.mxu0 0.0
    %1165 = vmatpush2.xpose.msra.mxu0 0.0
    %1166 = vmatprep.subr.mxu0 0.0
    %1167 = vmatpush2.xpose.msra.mxu0 0.0
    %1168 = vmatprep.subr.mxu0 0.0
    %1169 = vmatpush2.xpose.msra.mxu0 0.0
    %1170 = vmatprep.subr.mxu0 0.0
    %1171 = vmatpush2.xpose.msra.mxu0 0.0
    %1172 = vmatprep.mubr.f32.mxu0 0.0
    %1173 = vmatmul.mubr.f32.gmra.mxu0 %v1104
    %v1174 = vpop.f32.mrf.mxu0
    %v1175 = vadd.f32 0.0, %v1174
    %v1176 = vpop.f32.mrf.mxu0
    %1177 = vdwg.mxu0
    %v1178 = vsel %vm297, %v1175, -inf
    %1179 = vmax.xlane.f32.xlu0 %v1178
    %v1180 = vpop.xlane.xlu0 %1179
    %v1181 = vsub.f32 %v1175, %v1180
    %v1182 = vmul.f32 %v1181, 1.442695
    %v1183 = vpow.pop %v1182
    %v1184 = vsel %vm297, %v1183, 0.0
    %1185 = vadd.xlane.f32.xlu0 %v1184
    %v1186 = vpop.xlane.xlu0 %1185
    %v1187 = vrcp.pop %v1186
    %v1188 = vmul.f32 %v1183, %v1187
    %1189 = vrot.lane.b32.xlu0 %v1098, 64
    %v1190 = vpop.permute.xlu0 %1189
    %v1193 = vsel %vm297, %v1188, 0
    %1195 = vmatprep.subr.mxu0 0.0
    %1196 = vmatpush1.msra.mxu0 0.0
    %1197 = vmatprep.subr.mxu0 0.0
    %1198 = vmatpush1.msra.mxu0 0.0
    %1199 = vmatprep.subr.mxu0 0.0
    %1200 = vmatpush1.msra.mxu0 0.0
    %1201 = vmatprep.subr.mxu0 0.0
    %1202 = vmatpush1.msra.mxu0 0.0
    %1203 = vmatprep.subr.mxu0 0.0
    %1204 = vmatpush1.msra.mxu0 0.0
    %1205 = vmatprep.subr.mxu0 0.0
    %1206 = vmatpush1.msra.mxu0 0.0
    %1207 = vmatprep.subr.mxu0 0.0
    %1208 = vmatpush1.msra.mxu0 0.0
    %1209 = vmatprep.subr.mxu0 0.0
    %1210 = vmatpush1.msra.mxu0 0.0
    %1211 = vmatprep.subr.mxu0 0.0
    %1212 = vmatpush1.msra.mxu0 0.0
    %1213 = vmatprep.subr.mxu0 0.0
    %1214 = vmatpush1.msra.mxu0 0.0
    %1215 = vmatprep.subr.mxu0 0.0
    %1216 = vmatpush1.msra.mxu0 0.0
    %1217 = vmatprep.subr.mxu0 0.0
    %1218 = vmatpush1.msra.mxu0 0.0
    %1219 = vmatprep.subr.mxu0 0.0
    %1220 = vmatpush1.msra.mxu0 0.0
    %1221 = vmatprep.subr.mxu0 0.0
    %1222 = vmatpush1.msra.mxu0 0.0
    %1223 = vmatprep.subr.mxu0 0.0
    %1224 = vmatpush1.msra.mxu0 0.0
    %1225 = vmatprep.subr.mxu0 0.0
    %1226 = vmatpush1.msra.mxu0 %v1190
    %1227 = vmatprep.subr.mxu0 0.0
    %1228 = vmatpush2.msra.mxu0 0.0
    %1229 = vmatprep.subr.mxu0 0.0
    %1230 = vmatpush2.msra.mxu0 0.0
    %1231 = vmatprep.subr.mxu0 0.0
    %1232 = vmatpush2.msra.mxu0 0.0
    %1233 = vmatprep.subr.mxu0 0.0
    %1234 = vmatpush2.msra.mxu0 0.0
    %1235 = vmatprep.subr.mxu0 0.0
    %1236 = vmatpush2.msra.mxu0 0.0
    %1237 = vmatprep.subr.mxu0 0.0
    %1238 = vmatpush2.msra.mxu0 0.0
    %1239 = vmatprep.subr.mxu0 0.0
    %1240 = vmatpush2.msra.mxu0 0.0
    %1241 = vmatprep.subr.mxu0 0.0
    %1242 = vmatpush2.msra.mxu0 0.0
    %1243 = vmatprep.subr.mxu0 0.0
    %1244 = vmatpush2.msra.mxu0 0.0
    %1245 = vmatprep.subr.mxu0 0.0
    %1246 = vmatpush2.msra.mxu0 0.0
    %1247 = vmatprep.subr.mxu0 0.0
    %1248 = vmatpush2.msra.mxu0 0.0
    %1249 = vmatprep.subr.mxu0 0.0
    %1250 = vmatpush2.msra.mxu0 0.0
    %1251 = vmatprep.subr.mxu0 0.0
    %1252 = vmatpush2.msra.mxu0 0.0
    %1253 = vmatprep.subr.mxu0 0.0
    %1254 = vmatpush2.msra.mxu0 0.0
    %1255 = vmatprep.subr.mxu0 0.0
    %1256 = vmatpush2.msra.mxu0 0.0
    %1257 = vmatprep.subr.mxu0 0.0
    %1258 = vmatpush2.msra.mxu0 0.0
    %1259 = vmatprep.mubr.f32.mxu0 0.0
    %1260 = vmatmul.mubr.f32.gmra.mxu0 %v1193
    %v1261 = vpop.f32.mrf.mxu0
    %v1262 = vadd.f32 0.0, %v1261
    %v1263 = vpop.f32.mrf.mxu0
    %1264 = vdwg.mxu0
    %v1265 = vld [vmem:[%s10] sm:$0xff]
    %v1266 = vld [vmem:[%s10 + $0x8] sm:$0xff]
    %v1267 = vld [vmem:[%s10 + $0x10] sm:$0xff]
    %v1268 = vld [vmem:[%s10 + $0x18] sm:$0xff]
    %v1269 = vld [vmem:[%s11] sm:$0x1]
    %v1271 = vlaneseq
    %v1272 = vshrl.u32 %v1271, 7
    %v1273 = vsub.s32 0, %v1272
    %v1274 = vrot.slane %v1269, %v1273
    %v1277 = vsel %vm146, %v1262, 0
    %1279 = vmatprep.subr.mxu0 0.0
    %1280 = vmatpush1.msra.mxu0 0.0
    %1281 = vmatprep.subr.mxu0 0.0
    %1282 = vmatpush1.msra.mxu0 0.0
    %1283 = vmatprep.subr.mxu0 0.0
    %1284 = vmatpush1.msra.mxu0 0.0
    %1285 = vmatprep.subr.mxu0 0.0
    %1286 = vmatpush1.msra.mxu0 0.0
    %1287 = vmatprep.subr.mxu0 0.0
    %1288 = vmatpush1.msra.mxu0 0.0
    %1289 = vmatprep.subr.mxu0 0.0
    %1290 = vmatpush1.msra.mxu0 0.0
    %1291 = vmatprep.subr.mxu0 0.0
    %1292 = vmatpush1.msra.mxu0 0.0
    %1293 = vmatprep.subr.mxu0 0.0
    %1294 = vmatpush1.msra.mxu0 0.0
    %1295 = vmatprep.subr.mxu0 0.0
    %1296 = vmatpush1.msra.mxu0 0.0
    %1297 = vmatprep.subr.mxu0 0.0
    %1298 = vmatpush1.msra.mxu0 0.0
    %1299 = vmatprep.subr.mxu0 0.0
    %1300 = vmatpush1.msra.mxu0 0.0
    %1301 = vmatprep.subr.mxu0 0.0
    %1302 = vmatpush1.msra.mxu0 0.0
    %1303 = vmatprep.subr.mxu0 0.0
    %1304 = vmatpush1.msra.mxu0 %v1268
    %1305 = vmatprep.subr.mxu0 0.0
    %1306 = vmatpush1.msra.mxu0 %v1267
    %1307 = vmatprep.subr.mxu0 0.0
    %1308 = vmatpush1.msra.mxu0 %v1266
    %1309 = vmatprep.subr.mxu0 0.0
    %1310 = vmatpush1.msra.mxu0 %v1265
    %1311 = vmatprep.subr.mxu0 0.0
    %1312 = vmatpush2.msra.mxu0 0.0
    %1313 = vmatprep.subr.mxu0 0.0
    %1314 = vmatpush2.msra.mxu0 0.0
    %1315 = vmatprep.subr.mxu0 0.0
    %1316 = vmatpush2.msra.mxu0 0.0
    %1317 = vmatprep.subr.mxu0 0.0
    %1318 = vmatpush2.msra.mxu0 0.0
    %1319 = vmatprep.subr.mxu0 0.0
    %1320 = vmatpush2.msra.mxu0 0.0
    %1321 = vmatprep.subr.mxu0 0.0
    %1322 = vmatpush2.msra.mxu0 0.0
    %1323 = vmatprep.subr.mxu0 0.0
    %1324 = vmatpush2.msra.mxu0 0.0
    %1325 = vmatprep.subr.mxu0 0.0
    %1326 = vmatpush2.msra.mxu0 0.0
    %1327 = vmatprep.subr.mxu0 0.0
    %1328 = vmatpush2.msra.mxu0 0.0
    %1329 = vmatprep.subr.mxu0 0.0
    %1330 = vmatpush2.msra.mxu0 0.0
    %1331 = vmatprep.subr.mxu0 0.0
    %1332 = vmatpush2.msra.mxu0 0.0
    %1333 = vmatprep.subr.mxu0 0.0
    %1334 = vmatpush2.msra.mxu0 0.0
    %1335 = vmatprep.subr.mxu0 0.0
    %1336 = vmatpush2.msra.mxu0 0.0
    %1337 = vmatprep.subr.mxu0 0.0
    %1338 = vmatpush2.msra.mxu0 0.0
    %1339 = vmatprep.subr.mxu0 0.0
    %1340 = vmatpush2.msra.mxu0 0.0
    %1341 = vmatprep.subr.mxu0 0.0
    %1342 = vmatpush2.msra.mxu0 0.0
    %1343 = vmatprep.mubr.f32.mxu0 0.0
    %1344 = vmatmul.mubr.f32.gmra.mxu0 %v1277
    %v1345 = vpop.f32.mrf.mxu0
    %v1346 = vadd.f32 %v1274, %v1345
    %v1347 = vpop.f32.mrf.mxu0
    %1348 = vdwg.mxu0
    %v1349 = vld [vmem:[%s20] sm:$0xff]
    %v1350 = vld [vmem:[%s21] sm:$0xff]
    %1352 = vset.pattern.permute.xlu0 0
    %1353 = vperm.xlu0 %1352, %v1350
    %v1354 = vpop.permute.xlu0 %1353
    %1356 = vxpose.xlu0.b32.start [1/16] %v1349, 128
    %1357 = vxpose.xlu0.b32.cont [2/16] 0.0, 128
    %1358 = vxpose.xlu0.b32.cont [3/16] 0.0, 128
    %1359 = vxpose.xlu0.b32.cont [4/16] 0.0, 128
    %1360 = vxpose.xlu0.b32.cont [5/16] 0.0, 128
    %1361 = vxpose.xlu0.b32.cont [6/16] 0.0, 128
    %1362 = vxpose.xlu0.b32.cont [7/16] 0.0, 128
    %1363 = vxpose.xlu0.b32.cont [8/16] 0.0, 128
    %1364 = vxpose.xlu0.b32.cont [9/16] 0.0, 128
    %1365 = vxpose.xlu0.b32.cont [10/16] 0.0, 128
    %1366 = vxpose.xlu0.b32.cont [11/16] 0.0, 128
    %1367 = vxpose.xlu0.b32.cont [12/16] 0.0, 128
    %1368 = vxpose.xlu0.b32.cont [13/16] 0.0, 128
    %1369 = vxpose.xlu0.b32.cont [14/16] 0.0, 128
    %1370 = vxpose.xlu0.b32.cont [15/16] 0.0, 128
    %1371 = vxpose.xlu0.b32.end [16/16] 0.0, 128
    %v1372 = vpop.trf.xlu0
    %v1373 = vpop.trf.xlu0
    %v1374 = vpop.trf.xlu0
    %v1375 = vpop.trf.xlu0
    %v1376 = vpop.trf.xlu0
    %v1377 = vpop.trf.xlu0
    %v1378 = vpop.trf.xlu0
    %v1379 = vpop.trf.xlu0
    %v1380 = vpop.trf.xlu0
    %v1381 = vpop.trf.xlu0
    %v1382 = vpop.trf.xlu0
    %v1383 = vpop.trf.xlu0
    %v1384 = vpop.trf.xlu0
    %v1385 = vpop.trf.xlu0
    %v1386 = vpop.trf.xlu0
    %v1387 = vpop.trf.xlu0
    %v1389 = vsel %vm297, %v1372, 0
    %1391 = vmatprep.subr.mxu0 0.0
    %1392 = vmatpush1.msra.mxu0 0.0
    %1393 = vmatprep.subr.mxu0 0.0
    %1394 = vmatpush1.msra.mxu0 0.0
    %1395 = vmatprep.subr.mxu0 0.0
    %1396 = vmatpush1.msra.mxu0 0.0
    %1397 = vmatprep.subr.mxu0 0.0
    %1398 = vmatpush1.msra.mxu0 0.0
    %1399 = vmatprep.subr.mxu0 0.0
    %1400 = vmatpush1.msra.mxu0 0.0
    %1401 = vmatprep.subr.mxu0 0.0
    %1402 = vmatpush1.msra.mxu0 0.0
    %1403 = vmatprep.subr.mxu0 0.0
    %1404 = vmatpush1.msra.mxu0 0.0
    %1405 = vmatprep.subr.mxu0 0.0
    %1406 = vmatpush1.msra.mxu0 0.0
    %1407 = vmatprep.subr.mxu0 0.0
    %1408 = vmatpush1.msra.mxu0 0.0
    %1409 = vmatprep.subr.mxu0 0.0
    %1410 = vmatpush1.msra.mxu0 0.0
    %1411 = vmatprep.subr.mxu0 0.0
    %1412 = vmatpush1.msra.mxu0 0.0
    %1413 = vmatprep.subr.mxu0 0.0
    %1414 = vmatpush1.msra.mxu0 0.0
    %1415 = vmatprep.subr.mxu0 0.0
    %1416 = vmatpush1.msra.mxu0 0.0
    %1417 = vmatprep.subr.mxu0 0.0
    %1418 = vmatpush1.msra.mxu0 0.0
    %1419 = vmatprep.subr.mxu0 0.0
    %1420 = vmatpush1.msra.mxu0 0.0
    %1421 = vmatprep.subr.mxu0 0.0
    %1422 = vmatpush1.msra.mxu0 %v1016
    %1423 = vmatprep.subr.mxu0 0.0
    %1424 = vmatpush2.msra.mxu0 0.0
    %1425 = vmatprep.subr.mxu0 0.0
    %1426 = vmatpush2.msra.mxu0 0.0
    %1427 = vmatprep.subr.mxu0 0.0
    %1428 = vmatpush2.msra.mxu0 0.0
    %1429 = vmatprep.subr.mxu0 0.0
    %1430 = vmatpush2.msra.mxu0 0.0
    %1431 = vmatprep.subr.mxu0 0.0
    %1432 = vmatpush2.msra.mxu0 0.0
    %1433 = vmatprep.subr.mxu0 0.0
    %1434 = vmatpush2.msra.mxu0 0.0
    %1435 = vmatprep.subr.mxu0 0.0
    %1436 = vmatpush2.msra.mxu0 0.0
    %1437 = vmatprep.subr.mxu0 0.0
    %1438 = vmatpush2.msra.mxu0 0.0
    %1439 = vmatprep.subr.mxu0 0.0
    %1440 = vmatpush2.msra.mxu0 0.0
    %1441 = vmatprep.subr.mxu0 0.0
    %1442 = vmatpush2.msra.mxu0 0.0
    %1443 = vmatprep.subr.mxu0 0.0
    %1444 = vmatpush2.msra.mxu0 0.0
    %1445 = vmatprep.subr.mxu0 0.0
    %1446 = vmatpush2.msra.mxu0 0.0
    %1447 = vmatprep.subr.mxu0 0.0
    %1448 = vmatpush2.msra.mxu0 0.0
    %1449 = vmatprep.subr.mxu0 0.0
    %1450 = vmatpush2.msra.mxu0 0.0
    %1451 = vmatprep.subr.mxu0 0.0
    %1452 = vmatpush2.msra.mxu0 0.0
    %1453 = vmatprep.subr.mxu0 0.0
    %1454 = vmatpush2.msra.mxu0 0.0
    %1455 = vmatprep.mubr.f32.mxu0 0.0
    %1456 = vmatmul.mubr.f32.gmra.mxu0 %v1389
    %v1457 = vpop.f32.mrf.mxu0
    %v1458 = vadd.f32 %v1354, %v1457
    %v1459 = vpop.f32.mrf.mxu0
    %1460 = vdwg.mxu0
    %v1461 = vld [vmem:[%s12] sm:$0xff]
    %v1462 = vld [vmem:[%s12 + $0x8] sm:$0xff]
    %v1463 = vld [vmem:[%s12 + $0x10] sm:$0xff]
    %v1464 = vld [vmem:[%s12 + $0x18] sm:$0xff]
    %v1465 = vld [vmem:[%s13] sm:$0x1]
    %v1467 = vlaneseq
    %v1468 = vshrl.u32 %v1467, 7
    %v1469 = vsub.s32 0, %v1468
    %v1470 = vrot.slane %v1465, %v1469
    %v1473 = vsel %vm146, %v1458, 0
    %1475 = vmatprep.subr.mxu0 0.0
    %1476 = vmatpush1.msra.mxu0 0.0
    %1477 = vmatprep.subr.mxu0 0.0
    %1478 = vmatpush1.msra.mxu0 0.0
    %1479 = vmatprep.subr.mxu0 0.0
    %1480 = vmatpush1.msra.mxu0 0.0
    %1481 = vmatprep.subr.mxu0 0.0
    %1482 = vmatpush1.msra.mxu0 0.0
    %1483 = vmatprep.subr.mxu0 0.0
    %1484 = vmatpush1.msra.mxu0 0.0
    %1485 = vmatprep.subr.mxu0 0.0
    %1486 = vmatpush1.msra.mxu0 0.0
    %1487 = vmatprep.subr.mxu0 0.0
    %1488 = vmatpush1.msra.mxu0 0.0
    %1489 = vmatprep.subr.mxu0 0.0
    %1490 = vmatpush1.msra.mxu0 0.0
    %1491 = vmatprep.subr.mxu0 0.0
    %1492 = vmatpush1.msra.mxu0 0.0
    %1493 = vmatprep.subr.mxu0 0.0
    %1494 = vmatpush1.msra.mxu0 0.0
    %1495 = vmatprep.subr.mxu0 0.0
    %1496 = vmatpush1.msra.mxu0 0.0
    %1497 = vmatprep.subr.mxu0 0.0
    %1498 = vmatpush1.msra.mxu0 0.0
    %1499 = vmatprep.subr.mxu0 0.0
    %1500 = vmatpush1.msra.mxu0 %v1464
    %1501 = vmatprep.subr.mxu0 0.0
    %1502 = vmatpush1.msra.mxu0 %v1463
    %1503 = vmatprep.subr.mxu0 0.0
    %1504 = vmatpush1.msra.mxu0 %v1462
    %1505 = vmatprep.subr.mxu0 0.0
    %1506 = vmatpush1.msra.mxu0 %v1461
    %1507 = vmatprep.subr.mxu0 0.0
    %1508 = vmatpush2.msra.mxu0 0.0
    %1509 = vmatprep.subr.mxu0 0.0
    %1510 = vmatpush2.msra.mxu0 0.0
    %1511 = vmatprep.subr.mxu0 0.0
    %1512 = vmatpush2.msra.mxu0 0.0
    %1513 = vmatprep.subr.mxu0 0.0
    %1514 = vmatpush2.msra.mxu0 0.0
    %1515 = vmatprep.subr.mxu0 0.0
    %1516 = vmatpush2.msra.mxu0 0.0
    %1517 = vmatprep.subr.mxu0 0.0
    %1518 = vmatpush2.msra.mxu0 0.0
    %1519 = vmatprep.subr.mxu0 0.0
    %1520 = vmatpush2.msra.mxu0 0.0
    %1521 = vmatprep.subr.mxu0 0.0
    %1522 = vmatpush2.msra.mxu0 0.0
    %1523 = vmatprep.subr.mxu0 0.0
    %1524 = vmatpush2.msra.mxu0 0.0
    %1525 = vmatprep.subr.mxu0 0.0
    %1526 = vmatpush2.msra.mxu0 0.0
    %1527 = vmatprep.subr.mxu0 0.0
    %1528 = vmatpush2.msra.mxu0 0.0
    %1529 = vmatprep.subr.mxu0 0.0
    %1530 = vmatpush2.msra.mxu0 0.0
    %1531 = vmatprep.subr.mxu0 0.0
    %1532 = vmatpush2.msra.mxu0 0.0
    %1533 = vmatprep.subr.mxu0 0.0
    %1534 = vmatpush2.msra.mxu0 0.0
    %1535 = vmatprep.subr.mxu0 0.0
    %1536 = vmatpush2.msra.mxu0 0.0
    %1537 = vmatprep.subr.mxu0 0.0
    %1538 = vmatpush2.msra.mxu0 0.0
    %1539 = vmatprep.mubr.f32.mxu0 0.0
    %1540 = vmatmul.mubr.f32.gmra.mxu0 %v1473
    %v1541 = vpop.f32.mrf.mxu0
    %v1542 = vadd.f32 %v1470, %v1541
    %v1543 = vpop.f32.mrf.mxu0
    %1544 = vdwg.mxu0
    %v1545 = vld [vmem:[#allocation8] sm:$0xff]
    %v1546 = vld [vmem:[#allocation8 + $0x8] sm:$0xff]
    %v1547 = vld [vmem:[#allocation8 + $0x10] sm:$0xff]
    %v1548 = vld [vmem:[#allocation8 + $0x18] sm:$0xff]
    %v1549 = vld [vmem:[%s15] sm:$0x1]
    %v1551 = vlaneseq
    %v1552 = vshrl.u32 %v1551, 7
    %v1553 = vsub.s32 0, %v1552
    %v1554 = vrot.slane %v1549, %v1553
    %v1557 = vsel %vm146, %v1346, 0
    %1559 = vmatprep.subr.mxu0 0.0
    %1560 = vmatpush1.msra.mxu0 0.0
    %1561 = vmatprep.subr.mxu0 0.0
    %1562 = vmatpush1.msra.mxu0 0.0
    %1563 = vmatprep.subr.mxu0 0.0
    %1564 = vmatpush1.msra.mxu0 0.0
    %1565 = vmatprep.subr.mxu0 0.0
    %1566 = vmatpush1.msra.mxu0 0.0
    %1567 = vmatprep.subr.mxu0 0.0
    %1568 = vmatpush1.msra.mxu0 0.0
    %1569 = vmatprep.subr.mxu0 0.0
    %1570 = vmatpush1.msra.mxu0 0.0
    %1571 = vmatprep.subr.mxu0 0.0
    %1572 = vmatpush1.msra.mxu0 0.0
    %1573 = vmatprep.subr.mxu0 0.0
    %1574 = vmatpush1.msra.mxu0 0.0
    %1575 = vmatprep.subr.mxu0 0.0
    %1576 = vmatpush1.msra.mxu0 0.0
    %1577 = vmatprep.subr.mxu0 0.0
    %1578 = vmatpush1.msra.mxu0 0.0
    %1579 = vmatprep.subr.mxu0 0.0
    %1580 = vmatpush1.msra.mxu0 0.0
    %1581 = vmatprep.subr.mxu0 0.0
    %1582 = vmatpush1.msra.mxu0 0.0
    %1583 = vmatprep.subr.mxu0 0.0
    %1584 = vmatpush1.msra.mxu0 %v1548
    %1585 = vmatprep.subr.mxu0 0.0
    %1586 = vmatpush1.msra.mxu0 %v1547
    %1587 = vmatprep.subr.mxu0 0.0
    %1588 = vmatpush1.msra.mxu0 %v1546
    %1589 = vmatprep.subr.mxu0 0.0
    %1590 = vmatpush1.msra.mxu0 %v1545
    %1591 = vmatprep.subr.mxu0 0.0
    %1592 = vmatpush2.msra.mxu0 0.0
    %1593 = vmatprep.subr.mxu0 0.0
    %1594 = vmatpush2.msra.mxu0 0.0
    %1595 = vmatprep.subr.mxu0 0.0
    %1596 = vmatpush2.msra.mxu0 0.0
    %1597 = vmatprep.subr.mxu0 0.0
    %1598 = vmatpush2.msra.mxu0 0.0
    %1599 = vmatprep.subr.mxu0 0.0
    %1600 = vmatpush2.msra.mxu0 0.0
    %1601 = vmatprep.subr.mxu0 0.0
    %1602 = vmatpush2.msra.mxu0 0.0
    %1603 = vmatprep.subr.mxu0 0.0
    %1604 = vmatpush2.msra.mxu0 0.0
    %1605 = vmatprep.subr.mxu0 0.0
    %1606 = vmatpush2.msra.mxu0 0.0
    %1607 = vmatprep.subr.mxu0 0.0
    %1608 = vmatpush2.msra.mxu0 0.0
    %1609 = vmatprep.subr.mxu0 0.0
    %1610 = vmatpush2.msra.mxu0 0.0
    %1611 = vmatprep.subr.mxu0 0.0
    %1612 = vmatpush2.msra.mxu0 0.0
    %1613 = vmatprep.subr.mxu0 0.0
    %1614 = vmatpush2.msra.mxu0 0.0
    %1615 = vmatprep.subr.mxu0 0.0
    %1616 = vmatpush2.msra.mxu0 0.0
    %1617 = vmatprep.subr.mxu0 0.0
    %1618 = vmatpush2.msra.mxu0 0.0
    %1619 = vmatprep.subr.mxu0 0.0
    %1620 = vmatpush2.msra.mxu0 0.0
    %1621 = vmatprep.subr.mxu0 0.0
    %1622 = vmatpush2.msra.mxu0 0.0
    %1623 = vmatprep.mubr.f32.mxu0 0.0
    %1624 = vmatmul.mubr.f32.gmra.mxu0 %v1557
    %v1625 = vpop.f32.mrf.mxu0
    %v1626 = vadd.f32 %v1554, %v1625
    %v1627 = vpop.f32.mrf.mxu0
    %1628 = vdwg.mxu0
    %1630 = vrot.lane.b32.xlu0 %v1542, 96
    %v1631 = vpop.permute.xlu0 %1630
    %v1632 = vsel %vm146, %v1542, 0
    %v1634 = vsel %vm146, %v1631, 0
    %1636 = vmatprep.subr.mxu0 0.0
    %1637 = vmatpush1.xpose.msra.mxu0 0.0
    %1638 = vmatprep.subr.mxu0 0.0
    %1639 = vmatpush1.xpose.msra.mxu0 0.0
    %1640 = vmatprep.subr.mxu0 0.0
    %1641 = vmatpush1.xpose.msra.mxu0 0.0
    %1642 = vmatprep.subr.mxu0 0.0
    %1643 = vmatpush1.xpose.msra.mxu0 0.0
    %1644 = vmatprep.subr.mxu0 0.0
    %1645 = vmatpush1.xpose.msra.mxu0 0.0
    %1646 = vmatprep.subr.mxu0 0.0
    %1647 = vmatpush1.xpose.msra.mxu0 0.0
    %1648 = vmatprep.subr.mxu0 0.0
    %1649 = vmatpush1.xpose.msra.mxu0 0.0
    %1650 = vmatprep.subr.mxu0 0.0
    %1651 = vmatpush1.xpose.msra.mxu0 0.0
    %1652 = vmatprep.subr.mxu0 0.0
    %1653 = vmatpush1.xpose.msra.mxu0 0.0
    %1654 = vmatprep.subr.mxu0 0.0
    %1655 = vmatpush1.xpose.msra.mxu0 0.0
    %1656 = vmatprep.subr.mxu0 0.0
    %1657 = vmatpush1.xpose.msra.mxu0 0.0
    %1658 = vmatprep.subr.mxu0 0.0
    %1659 = vmatpush1.xpose.msra.mxu0 0.0
    %1660 = vmatprep.subr.mxu0 0.0
    %1661 = vmatpush1.xpose.msra.mxu0 0.0
    %1662 = vmatprep.subr.mxu0 0.0
    %1663 = vmatpush1.xpose.msra.mxu0 0.0
    %1664 = vmatprep.subr.mxu0 0.0
    %1665 = vmatpush1.xpose.msra.mxu0 0.0
    %1666 = vmatprep.subr.mxu0 0.0
    %1667 = vmatpush1.xpose.msra.mxu0 %v1634
    %1668 = vmatprep.subr.mxu0 0.0
    %1669 = vmatpush2.xpose.msra.mxu0 0.0
    %1670 = vmatprep.subr.mxu0 0.0
    %1671 = vmatpush2.xpose.msra.mxu0 0.0
    %1672 = vmatprep.subr.mxu0 0.0
    %1673 = vmatpush2.xpose.msra.mxu0 0.0
    %1674 = vmatprep.subr.mxu0 0.0
    %1675 = vmatpush2.xpose.msra.mxu0 0.0
    %1676 = vmatprep.subr.mxu0 0.0
    %1677 = vmatpush2.xpose.msra.mxu0 0.0
    %1678 = vmatprep.subr.mxu0 0.0
    %1679 = vmatpush2.xpose.msra.mxu0 0.0
    %1680 = vmatprep.subr.mxu0 0.0
    %1681 = vmatpush2.xpose.msra.mxu0 0.0
    %1682 = vmatprep.subr.mxu0 0.0
    %1683 = vmatpush2.xpose.msra.mxu0 0.0
    %1684 = vmatprep.subr.mxu0 0.0
    %1685 = vmatpush2.xpose.msra.mxu0 0.0
    %1686 = vmatprep.subr.mxu0 0.0
    %1687 = vmatpush2.xpose.msra.mxu0 0.0
    %1688 = vmatprep.subr.mxu0 0.0
    %1689 = vmatpush2.xpose.msra.mxu0 0.0
    %1690 = vmatprep.subr.mxu0 0.0
    %1691 = vmatpush2.xpose.msra.mxu0 0.0
    %1692 = vmatprep.subr.mxu0 0.0
    %1693 = vmatpush2.xpose.msra.mxu0 0.0
    %1694 = vmatprep.subr.mxu0 0.0
    %1695 = vmatpush2.xpose.msra.mxu0 0.0
    %1696 = vmatprep.subr.mxu0 0.0
    %1697 = vmatpush2.xpose.msra.mxu0 0.0
    %1698 = vmatprep.subr.mxu0 0.0
    %1699 = vmatpush2.xpose.msra.mxu0 0.0
    %1700 = vmatprep.mubr.f32.mxu0 0.0
    %1701 = vmatmul.mubr.f32.gmra.mxu0 %v1632
    %v1702 = vpop.f32.mrf.mxu0
    %v1703 = vadd.f32 0.0, %v1702
    %v1704 = vpop.f32.mrf.mxu0
    %1705 = vdwg.mxu0
    %v1706 = vsel %vm297, %v1703, -inf
    %1707 = vmax.xlane.f32.xlu0 %v1706
    %v1708 = vpop.xlane.xlu0 %1707
    %v1709 = vsub.f32 %v1703, %v1708
    %v1710 = vmul.f32 %v1709, 1.442695
    %v1711 = vpow.pop %v1710
    %v1712 = vsel %vm297, %v1711, 0.0
    %1713 = vadd.xlane.f32.xlu0 %v1712
    %v1714 = vpop.xlane.xlu0 %1713
    %v1715 = vrcp.pop %v1714
    %v1716 = vmul.f32 %v1711, %v1715
    %v1718 = vsel %vm297, %v1716, 0
    %1720 = vmatprep.subr.mxu0 0.0
    %1721 = vmatpush1.msra.mxu0 0.0
    %1722 = vmatprep.subr.mxu0 0.0
    %1723 = vmatpush1.msra.mxu0 0.0
    %1724 = vmatprep.subr.mxu0 0.0
    %1725 = vmatpush1.msra.mxu0 0.0
    %1726 = vmatprep.subr.mxu0 0.0
    %1727 = vmatpush1.msra.mxu0 0.0
    %1728 = vmatprep.subr.mxu0 0.0
    %1729 = vmatpush1.msra.mxu0 0.0
    %1730 = vmatprep.subr.mxu0 0.0
    %1731 = vmatpush1.msra.mxu0 0.0
    %1732 = vmatprep.subr.mxu0 0.0
    %1733 = vmatpush1.msra.mxu0 0.0
    %1734 = vmatprep.subr.mxu0 0.0
    %1735 = vmatpush1.msra.mxu0 0.0
    %1736 = vmatprep.subr.mxu0 0.0
    %1737 = vmatpush1.msra.mxu0 0.0
    %1738 = vmatprep.subr.mxu0 0.0
    %1739 = vmatpush1.msra.mxu0 0.0
    %1740 = vmatprep.subr.mxu0 0.0
    %1741 = vmatpush1.msra.mxu0 0.0
    %1742 = vmatprep.subr.mxu0 0.0
    %1743 = vmatpush1.msra.mxu0 0.0
    %1744 = vmatprep.subr.mxu0 0.0
    %1745 = vmatpush1.msra.mxu0 0.0
    %1746 = vmatprep.subr.mxu0 0.0
    %1747 = vmatpush1.msra.mxu0 0.0
    %1748 = vmatprep.subr.mxu0 0.0
    %1749 = vmatpush1.msra.mxu0 0.0
    %1750 = vmatprep.subr.mxu0 0.0
    %1751 = vmatpush1.msra.mxu0 %v1626
    %1752 = vmatprep.subr.mxu0 0.0
    %1753 = vmatpush2.msra.mxu0 0.0
    %1754 = vmatprep.subr.mxu0 0.0
    %1755 = vmatpush2.msra.mxu0 0.0
    %1756 = vmatprep.subr.mxu0 0.0
    %1757 = vmatpush2.msra.mxu0 0.0
    %1758 = vmatprep.subr.mxu0 0.0
    %1759 = vmatpush2.msra.mxu0 0.0
    %1760 = vmatprep.subr.mxu0 0.0
    %1761 = vmatpush2.msra.mxu0 0.0
    %1762 = vmatprep.subr.mxu0 0.0
    %1763 = vmatpush2.msra.mxu0 0.0
    %1764 = vmatprep.subr.mxu0 0.0
    %1765 = vmatpush2.msra.mxu0 0.0
    %1766 = vmatprep.subr.mxu0 0.0
    %1767 = vmatpush2.msra.mxu0 0.0
    %1768 = vmatprep.subr.mxu0 0.0
    %1769 = vmatpush2.msra.mxu0 0.0
    %1770 = vmatprep.subr.mxu0 0.0
    %1771 = vmatpush2.msra.mxu0 0.0
    %1772 = vmatprep.subr.mxu0 0.0
    %1773 = vmatpush2.msra.mxu0 0.0
    %1774 = vmatprep.subr.mxu0 0.0
    %1775 = vmatpush2.msra.mxu0 0.0
    %1776 = vmatprep.subr.mxu0 0.0
    %1777 = vmatpush2.msra.mxu0 0.0
    %1778 = vmatprep.subr.mxu0 0.0
    %1779 = vmatpush2.msra.mxu0 0.0
    %1780 = vmatprep.subr.mxu0 0.0
    %1781 = vmatpush2.msra.mxu0 0.0
    %1782 = vmatprep.subr.mxu0 0.0
    %1783 = vmatpush2.msra.mxu0 0.0
    %1784 = vmatprep.mubr.f32.mxu0 0.0
    %1785 = vmatmul.mubr.f32.gmra.mxu0 %v1718
    %v1786 = vpop.f32.mrf.mxu0
    %v1787 = vadd.f32 0.0, %v1786
    %v1788 = vpop.f32.mrf.mxu0
    %1789 = vdwg.mxu0
    %v1790 = vsel %vm146, %v1787, 0.0
    %1791 = vadd.xlane.f32.xlu0 %v1790
    %v1792 = vpop.xlane.xlu0 %1791
    %v1793 = vmul.f32 %v1792, %v388
    %v1794 = vsub.f32 %v1787, %v1793
    %v1795 = vmul.f32 %v1794, %v1794
    %v1796 = vsel %vm146, %v1795, 0.0
    %1797 = vadd.xlane.f32.xlu0 %v1796
    %v1798 = vpop.xlane.xlu0 %1797
    %v1799 = vmul.f32 %v1798, %v388
    %v1800 = vadd.f32 %v1799, 1e-05
    %v1801 = vrsqrt.pop %v1800
    %v1802 = vmul.f32 %v1794, %v1801
    %v1803 = vld [vmem:[#allocation9] sm:$0xff]
    %v1804 = vld [vmem:[#allocation9 + $0x8] sm:$0xff]
    %v1805 = vld [vmem:[#allocation9 + $0x10] sm:$0xff]
    %v1806 = vld [vmem:[#allocation9 + $0x18] sm:$0xff]
    %v1807 = vld [vmem:[%s17] sm:$0x1]
    %v1809 = vlaneseq
    %v1810 = vshrl.u32 %v1809, 7
    %v1811 = vsub.s32 0, %v1810
    %v1812 = vrot.slane %v1807, %v1811
    %v1815 = vsel %vm146, %v1802, 0
    %1817 = vmatprep.subr.mxu0 0.0
    %1818 = vmatpush1.msra.mxu0 0.0
    %1819 = vmatprep.subr.mxu0 0.0
    %1820 = vmatpush1.msra.mxu0 0.0
    %1821 = vmatprep.subr.mxu0 0.0
    %1822 = vmatpush1.msra.mxu0 0.0
    %1823 = vmatprep.subr.mxu0 0.0
    %1824 = vmatpush1.msra.mxu0 0.0
    %1825 = vmatprep.subr.mxu0 0.0
    %1826 = vmatpush1.msra.mxu0 0.0
    %1827 = vmatprep.subr.mxu0 0.0
    %1828 = vmatpush1.msra.mxu0 0.0
    %1829 = vmatprep.subr.mxu0 0.0
    %1830 = vmatpush1.msra.mxu0 0.0
    %1831 = vmatprep.subr.mxu0 0.0
    %1832 = vmatpush1.msra.mxu0 0.0
    %1833 = vmatprep.subr.mxu0 0.0
    %1834 = vmatpush1.msra.mxu0 0.0
    %1835 = vmatprep.subr.mxu0 0.0
    %1836 = vmatpush1.msra.mxu0 0.0
    %1837 = vmatprep.subr.mxu0 0.0
    %1838 = vmatpush1.msra.mxu0 0.0
    %1839 = vmatprep.subr.mxu0 0.0
    %1840 = vmatpush1.msra.mxu0 0.0
    %1841 = vmatprep.subr.mxu0 0.0
    %1842 = vmatpush1.msra.mxu0 %v1806
    %1843 = vmatprep.subr.mxu0 0.0
    %1844 = vmatpush1.msra.mxu0 %v1805
    %1845 = vmatprep.subr.mxu0 0.0
    %1846 = vmatpush1.msra.mxu0 %v1804
    %1847 = vmatprep.subr.mxu0 0.0
    %1848 = vmatpush1.msra.mxu0 %v1803
    %1849 = vmatprep.subr.mxu0 0.0
    %1850 = vmatpush2.msra.mxu0 0.0
    %1851 = vmatprep.subr.mxu0 0.0
    %1852 = vmatpush2.msra.mxu0 0.0
    %1853 = vmatprep.subr.mxu0 0.0
    %1854 = vmatpush2.msra.mxu0 0.0
    %1855 = vmatprep.subr.mxu0 0.0
    %1856 = vmatpush2.msra.mxu0 0.0
    %1857 = vmatprep.subr.mxu0 0.0
    %1858 = vmatpush2.msra.mxu0 0.0
    %1859 = vmatprep.subr.mxu0 0.0
    %1860 = vmatpush2.msra.mxu0 0.0
    %1861 = vmatprep.subr.mxu0 0.0
    %1862 = vmatpush2.msra.mxu0 0.0
    %1863 = vmatprep.subr.mxu0 0.0
    %1864 = vmatpush2.msra.mxu0 0.0
    %1865 = vmatprep.subr.mxu0 0.0
    %1866 = vmatpush2.msra.mxu0 0.0
    %1867 = vmatprep.subr.mxu0 0.0
    %1868 = vmatpush2.msra.mxu0 0.0
    %1869 = vmatprep.subr.mxu0 0.0
    %1870 = vmatpush2.msra.mxu0 0.0
    %1871 = vmatprep.subr.mxu0 0.0
    %1872 = vmatpush2.msra.mxu0 0.0
    %1873 = vmatprep.subr.mxu0 0.0
    %1874 = vmatpush2.msra.mxu0 0.0
    %1875 = vmatprep.subr.mxu0 0.0
    %1876 = vmatpush2.msra.mxu0 0.0
    %1877 = vmatprep.subr.mxu0 0.0
    %1878 = vmatpush2.msra.mxu0 0.0
    %1879 = vmatprep.subr.mxu0 0.0
    %1880 = vmatpush2.msra.mxu0 0.0
    %1881 = vmatprep.mubr.f32.mxu0 0.0
    %1882 = vmatmul.mubr.f32.gmra.mxu0 %v1815
    %v1883 = vpop.f32.mrf.mxu0
    %v1884 = vadd.f32 %v1812, %v1883
    %v1885 = vpop.f32.mrf.mxu0
    %1886 = vdwg.mxu0
    %v1887 = vmax.f32 %v1884, 0.0
    %v1888 = vld [vmem:[%s18] sm:$0xff]
    %v1889 = vld [vmem:[%s18 + $0x8] sm:$0xff]
    %v1890 = vld [vmem:[%s18 + $0x10] sm:$0xff]
    %v1891 = vld [vmem:[%s18 + $0x18] sm:$0xff]
    %v1892 = vld [vmem:[%s18 + $0x20] sm:$0xff]
    %v1893 = vld [vmem:[%s18 + $0x28] sm:$0xff]
    %v1894 = vld [vmem:[%s18 + $0x30] sm:$0xff]
    %v1895 = vld [vmem:[%s18 + $0x38] sm:$0xff]
    %v1896 = vld [vmem:[%s19] sm:$0x1]
    %v1898 = vlaneseq
    %v1899 = vshrl.u32 %v1898, 7
    %v1900 = vsub.s32 0, %v1899
    %v1901 = vrot.slane %v1896, %v1900
    %v1904 = vsel %vm492, %v1887, 0
    %1906 = vmatprep.subr.mxu0 0.0
    %1907 = vmatpush1.msra.mxu0 0.0
    %1908 = vmatprep.subr.mxu0 0.0
    %1909 = vmatpush1.msra.mxu0 0.0
    %1910 = vmatprep.subr.mxu0 0.0
    %1911 = vmatpush1.msra.mxu0 0.0
    %1912 = vmatprep.subr.mxu0 0.0
    %1913 = vmatpush1.msra.mxu0 0.0
    %1914 = vmatprep.subr.mxu0 0.0
    %1915 = vmatpush1.msra.mxu0 0.0
    %1916 = vmatprep.subr.mxu0 0.0
    %1917 = vmatpush1.msra.mxu0 0.0
    %1918 = vmatprep.subr.mxu0 0.0
    %1919 = vmatpush1.msra.mxu0 0.0
    %1920 = vmatprep.subr.mxu0 0.0
    %1921 = vmatpush1.msra.mxu0 0.0
    %1922 = vmatprep.subr.mxu0 0.0
    %1923 = vmatpush1.msra.mxu0 %v1895
    %1924 = vmatprep.subr.mxu0 0.0
    %1925 = vmatpush1.msra.mxu0 %v1894
    %1926 = vmatprep.subr.mxu0 0.0
    %1927 = vmatpush1.msra.mxu0 %v1893
    %1928 = vmatprep.subr.mxu0 0.0
    %1929 = vmatpush1.msra.mxu0 %v1892
    %1930 = vmatprep.subr.mxu0 0.0
    %1931 = vmatpush1.msra.mxu0 %v1891
    %1932 = vmatprep.subr.mxu0 0.0
    %1933 = vmatpush1.msra.mxu0 %v1890
    %1934 = vmatprep.subr.mxu0 0.0
    %1935 = vmatpush1.msra.mxu0 %v1889
    %1936 = vmatprep.subr.mxu0 0.0
    %1937 = vmatpush1.msra.mxu0 %v1888
    %1938 = vmatprep.subr.mxu0 0.0
    %1939 = vmatpush2.msra.mxu0 0.0
    %1940 = vmatprep.subr.mxu0 0.0
    %1941 = vmatpush2.msra.mxu0 0.0
    %1942 = vmatprep.subr.mxu0 0.0
    %1943 = vmatpush2.msra.mxu0 0.0
    %1944 = vmatprep.subr.mxu0 0.0
    %1945 = vmatpush2.msra.mxu0 0.0
    %1946 = vmatprep.subr.mxu0 0.0
    %1947 = vmatpush2.msra.mxu0 0.0
    %1948 = vmatprep.subr.mxu0 0.0
    %1949 = vmatpush2.msra.mxu0 0.0
    %1950 = vmatprep.subr.mxu0 0.0
    %1951 = vmatpush2.msra.mxu0 0.0
    %1952 = vmatprep.subr.mxu0 0.0
    %1953 = vmatpush2.msra.mxu0 0.0
    %1954 = vmatprep.subr.mxu0 0.0
    %1955 = vmatpush2.msra.mxu0 0.0
    %1956 = vmatprep.subr.mxu0 0.0
    %1957 = vmatpush2.msra.mxu0 0.0
    %1958 = vmatprep.subr.mxu0 0.0
    %1959 = vmatpush2.msra.mxu0 0.0
    %1960 = vmatprep.subr.mxu0 0.0
    %1961 = vmatpush2.msra.mxu0 0.0
    %1962 = vmatprep.subr.mxu0 0.0
    %1963 = vmatpush2.msra.mxu0 0.0
    %1964 = vmatprep.subr.mxu0 0.0
    %1965 = vmatpush2.msra.mxu0 0.0
    %1966 = vmatprep.subr.mxu0 0.0
    %1967 = vmatpush2.msra.mxu0 0.0
    %1968 = vmatprep.subr.mxu0 0.0
    %1969 = vmatpush2.msra.mxu0 0.0
    %1970 = vmatprep.mubr.f32.mxu0 0.0
    %1971 = vmatmul.mubr.f32.gmra.mxu0 %v1904
    %v1972 = vpop.f32.mrf.mxu0
    %v1973 = vadd.f32 %v1901, %v1972
    %v1974 = vpop.f32.mrf.mxu0
    %1975 = vdwg.mxu0
    %s1976 = scalar_lea.vmem %s8, 32
    %v1977 = vld [vmem:[%s1976] sm:$0xff]
    %v1978 = vld [vmem:[%s1976 + $0x8] sm:$0xff]
    %v1979 = vld [vmem:[%s1976 + $0x10] sm:$0xff]
    %v1980 = vld [vmem:[%s1976 + $0x18] sm:$0xff]
    %s1981 = scalar_lea.vmem %s9, 1
    %v1982 = vld [vmem:[%s1981] sm:$0x1]
    %v1984 = vlaneseq
    %v1985 = vshrl.u32 %v1984, 7
    %v1986 = vsub.s32 0, %v1985
    %v1987 = vrot.slane %v1982, %v1986
    %v1990 = vsel %vm146, %v1973, 0
    %1992 = vmatprep.subr.mxu0 0.0
    %1993 = vmatpush1.msra.mxu0 0.0
    %1994 = vmatprep.subr.mxu0 0.0
    %1995 = vmatpush1.msra.mxu0 0.0
    %1996 = vmatprep.subr.mxu0 0.0
    %1997 = vmatpush1.msra.mxu0 0.0
    %1998 = vmatprep.subr.mxu0 0.0
    %1999 = vmatpush1.msra.mxu0 0.0
    %2000 = vmatprep.subr.mxu0 0.0
    %2001 = vmatpush1.msra.mxu0 0.0
    %2002 = vmatprep.subr.mxu0 0.0
    %2003 = vmatpush1.msra.mxu0 0.0
    %2004 = vmatprep.subr.mxu0 0.0
    %2005 = vmatpush1.msra.mxu0 0.0
    %2006 = vmatprep.subr.mxu0 0.0
    %2007 = vmatpush1.msra.mxu0 0.0
    %2008 = vmatprep.subr.mxu0 0.0
    %2009 = vmatpush1.msra.mxu0 0.0
    %2010 = vmatprep.subr.mxu0 0.0
    %2011 = vmatpush1.msra.mxu0 0.0
    %2012 = vmatprep.subr.mxu0 0.0
    %2013 = vmatpush1.msra.mxu0 0.0
    %2014 = vmatprep.subr.mxu0 0.0
    %2015 = vmatpush1.msra.mxu0 0.0
    %2016 = vmatprep.subr.mxu0 0.0
    %2017 = vmatpush1.msra.mxu0 %v1980
    %2018 = vmatprep.subr.mxu0 0.0
    %2019 = vmatpush1.msra.mxu0 %v1979
    %2020 = vmatprep.subr.mxu0 0.0
    %2021 = vmatpush1.msra.mxu0 %v1978
    %2022 = vmatprep.subr.mxu0 0.0
    %2023 = vmatpush1.msra.mxu0 %v1977
    %2024 = vmatprep.subr.mxu0 0.0
    %2025 = vmatpush2.msra.mxu0 0.0
    %2026 = vmatprep.subr.mxu0 0.0
    %2027 = vmatpush2.msra.mxu0 0.0
    %2028 = vmatprep.subr.mxu0 0.0
    %2029 = vmatpush2.msra.mxu0 0.0
    %2030 = vmatprep.subr.mxu0 0.0
    %2031 = vmatpush2.msra.mxu0 0.0
    %2032 = vmatprep.subr.mxu0 0.0
    %2033 = vmatpush2.msra.mxu0 0.0
    %2034 = vmatprep.subr.mxu0 0.0
    %2035 = vmatpush2.msra.mxu0 0.0
    %2036 = vmatprep.subr.mxu0 0.0
    %2037 = vmatpush2.msra.mxu0 0.0
    %2038 = vmatprep.subr.mxu0 0.0
    %2039 = vmatpush2.msra.mxu0 0.0
    %2040 = vmatprep.subr.mxu0 0.0
    %2041 = vmatpush2.msra.mxu0 0.0
    %2042 = vmatprep.subr.mxu0 0.0
    %2043 = vmatpush2.msra.mxu0 0.0
    %2044 = vmatprep.subr.mxu0 0.0
    %2045 = vmatpush2.msra.mxu0 0.0
    %2046 = vmatprep.subr.mxu0 0.0
    %2047 = vmatpush2.msra.mxu0 0.0
    %2048 = vmatprep.subr.mxu0 0.0
    %2049 = vmatpush2.msra.mxu0 0.0
    %2050 = vmatprep.subr.mxu0 0.0
    %2051 = vmatpush2.msra.mxu0 0.0
    %2052 = vmatprep.subr.mxu0 0.0
    %2053 = vmatpush2.msra.mxu0 0.0
    %2054 = vmatprep.subr.mxu0 0.0
    %2055 = vmatpush2.msra.mxu0 0.0
    %2056 = vmatprep.mubr.f32.mxu0 0.0
    %2057 = vmatmul.mubr.f32.gmra.mxu0 %v1990
    %v2058 = vpop.f32.mrf.mxu0
    %v2059 = vadd.f32 %v1987, %v2058
    %v2060 = vpop.f32.mrf.mxu0
    %2061 = vdwg.mxu0
    %2063 = vrot.lane.b32.xlu0 %v2059, 96
    %v2064 = vpop.permute.xlu0 %2063
    %v2065 = vsel %vm146, %v2059, 0
    %v2067 = vsel %vm146, %v2064, 0
    %2069 = vmatprep.subr.mxu0 0.0
    %2070 = vmatpush1.xpose.msra.mxu0 0.0
    %2071 = vmatprep.subr.mxu0 0.0
    %2072 = vmatpush1.xpose.msra.mxu0 0.0
    %2073 = vmatprep.subr.mxu0 0.0
    %2074 = vmatpush1.xpose.msra.mxu0 0.0
    %2075 = vmatprep.subr.mxu0 0.0
    %2076 = vmatpush1.xpose.msra.mxu0 0.0
    %2077 = vmatprep.subr.mxu0 0.0
    %2078 = vmatpush1.xpose.msra.mxu0 0.0
    %2079 = vmatprep.subr.mxu0 0.0
    %2080 = vmatpush1.xpose.msra.mxu0 0.0
    %2081 = vmatprep.subr.mxu0 0.0
    %2082 = vmatpush1.xpose.msra.mxu0 0.0
    %2083 = vmatprep.subr.mxu0 0.0
    %2084 = vmatpush1.xpose.msra.mxu0 0.0
    %2085 = vmatprep.subr.mxu0 0.0
    %2086 = vmatpush1.xpose.msra.mxu0 0.0
    %2087 = vmatprep.subr.mxu0 0.0
    %2088 = vmatpush1.xpose.msra.mxu0 0.0
    %2089 = vmatprep.subr.mxu0 0.0
    %2090 = vmatpush1.xpose.msra.mxu0 0.0
    %2091 = vmatprep.subr.mxu0 0.0
    %2092 = vmatpush1.xpose.msra.mxu0 0.0
    %2093 = vmatprep.subr.mxu0 0.0
    %2094 = vmatpush1.xpose.msra.mxu0 0.0
    %2095 = vmatprep.subr.mxu0 0.0
    %2096 = vmatpush1.xpose.msra.mxu0 0.0
    %2097 = vmatprep.subr.mxu0 0.0
    %2098 = vmatpush1.xpose.msra.mxu0 0.0
    %2099 = vmatprep.subr.mxu0 0.0
    %2100 = vmatpush1.xpose.msra.mxu0 %v2067
    %2101 = vmatprep.subr.mxu0 0.0
    %2102 = vmatpush2.xpose.msra.mxu0 0.0
    %2103 = vmatprep.subr.mxu0 0.0
    %2104 = vmatpush2.xpose.msra.mxu0 0.0
    %2105 = vmatprep.subr.mxu0 0.0
    %2106 = vmatpush2.xpose.msra.mxu0 0.0
    %2107 = vmatprep.subr.mxu0 0.0
    %2108 = vmatpush2.xpose.msra.mxu0 0.0
    %2109 = vmatprep.subr.mxu0 0.0
    %2110 = vmatpush2.xpose.msra.mxu0 0.0
    %2111 = vmatprep.subr.mxu0 0.0
    %2112 = vmatpush2.xpose.msra.mxu0 0.0
    %2113 = vmatprep.subr.mxu0 0.0
    %2114 = vmatpush2.xpose.msra.mxu0 0.0
    %2115 = vmatprep.subr.mxu0 0.0
    %2116 = vmatpush2.xpose.msra.mxu0 0.0
    %2117 = vmatprep.subr.mxu0 0.0
    %2118 = vmatpush2.xpose.msra.mxu0 0.0
    %2119 = vmatprep.subr.mxu0 0.0
    %2120 = vmatpush2.xpose.msra.mxu0 0.0
    %2121 = vmatprep.subr.mxu0 0.0
    %2122 = vmatpush2.xpose.msra.mxu0 0.0
    %2123 = vmatprep.subr.mxu0 0.0
    %2124 = vmatpush2.xpose.msra.mxu0 0.0
    %2125 = vmatprep.subr.mxu0 0.0
    %2126 = vmatpush2.xpose.msra.mxu0 0.0
    %2127 = vmatprep.subr.mxu0 0.0
    %2128 = vmatpush2.xpose.msra.mxu0 0.0
    %2129 = vmatprep.subr.mxu0 0.0
    %2130 = vmatpush2.xpose.msra.mxu0 0.0
    %2131 = vmatprep.subr.mxu0 0.0
    %2132 = vmatpush2.xpose.msra.mxu0 0.0
    %2133 = vmatprep.mubr.f32.mxu0 0.0
    %2134 = vmatmul.mubr.f32.gmra.mxu0 %v2065
    %v2135 = vpop.f32.mrf.mxu0
    %v2136 = vadd.f32 0.0, %v2135
    %v2137 = vpop.f32.mrf.mxu0
    %2138 = vdwg.mxu0
    %v2139 = vsel %vm297, %v2136, -inf
    %2140 = vmax.xlane.f32.xlu0 %v2139
    %v2141 = vpop.xlane.xlu0 %2140
    %v2142 = vsub.f32 %v2136, %v2141
    %v2143 = vmul.f32 %v2142, 1.442695
    %v2144 = vpow.pop %v2143
    %v2145 = vsel %vm297, %v2144, 0.0
    %2146 = vadd.xlane.f32.xlu0 %v2145
    %v2147 = vpop.xlane.xlu0 %2146
    %v2148 = vrcp.pop %v2147
    %v2149 = vmul.f32 %v2144, %v2148
    %2150 = vrot.lane.b32.xlu0 %v2059, 64
    %v2151 = vpop.permute.xlu0 %2150
    %v2154 = vsel %vm297, %v2149, 0
    %2156 = vmatprep.subr.mxu0 0.0
    %2157 = vmatpush1.msra.mxu0 0.0
    %2158 = vmatprep.subr.mxu0 0.0
    %2159 = vmatpush1.msra.mxu0 0.0
    %2160 = vmatprep.subr.mxu0 0.0
    %2161 = vmatpush1.msra.mxu0 0.0
    %2162 = vmatprep.subr.mxu0 0.0
    %2163 = vmatpush1.msra.mxu0 0.0
    %2164 = vmatprep.subr.mxu0 0.0
    %2165 = vmatpush1.msra.mxu0 0.0
    %2166 = vmatprep.subr.mxu0 0.0
    %2167 = vmatpush1.msra.mxu0 0.0
    %2168 = vmatprep.subr.mxu0 0.0
    %2169 = vmatpush1.msra.mxu0 0.0
    %2170 = vmatprep.subr.mxu0 0.0
    %2171 = vmatpush1.msra.mxu0 0.0
    %2172 = vmatprep.subr.mxu0 0.0
    %2173 = vmatpush1.msra.mxu0 0.0
    %2174 = vmatprep.subr.mxu0 0.0
    %2175 = vmatpush1.msra.mxu0 0.0
    %2176 = vmatprep.subr.mxu0 0.0
    %2177 = vmatpush1.msra.mxu0 0.0
    %2178 = vmatprep.subr.mxu0 0.0
    %2179 = vmatpush1.msra.mxu0 0.0
    %2180 = vmatprep.subr.mxu0 0.0
    %2181 = vmatpush1.msra.mxu0 0.0
    %2182 = vmatprep.subr.mxu0 0.0
    %2183 = vmatpush1.msra.mxu0 0.0
    %2184 = vmatprep.subr.mxu0 0.0
    %2185 = vmatpush1.msra.mxu0 0.0
    %2186 = vmatprep.subr.mxu0 0.0
    %2187 = vmatpush1.msra.mxu0 %v2151
    %2188 = vmatprep.subr.mxu0 0.0
    %2189 = vmatpush2.msra.mxu0 0.0
    %2190 = vmatprep.subr.mxu0 0.0
    %2191 = vmatpush2.msra.mxu0 0.0
    %2192 = vmatprep.subr.mxu0 0.0
    %2193 = vmatpush2.msra.mxu0 0.0
    %2194 = vmatprep.subr.mxu0 0.0
    %2195 = vmatpush2.msra.mxu0 0.0
    %2196 = vmatprep.subr.mxu0 0.0
    %2197 = vmatpush2.msra.mxu0 0.0
    %2198 = vmatprep.subr.mxu0 0.0
    %2199 = vmatpush2.msra.mxu0 0.0
    %2200 = vmatprep.subr.mxu0 0.0
    %2201 = vmatpush2.msra.mxu0 0.0
    %2202 = vmatprep.subr.mxu0 0.0
    %2203 = vmatpush2.msra.mxu0 0.0
    %2204 = vmatprep.subr.mxu0 0.0
    %2205 = vmatpush2.msra.mxu0 0.0
    %2206 = vmatprep.subr.mxu0 0.0
    %2207 = vmatpush2.msra.mxu0 0.0
    %2208 = vmatprep.subr.mxu0 0.0
    %2209 = vmatpush2.msra.mxu0 0.0
    %2210 = vmatprep.subr.mxu0 0.0
    %2211 = vmatpush2.msra.mxu0 0.0
    %2212 = vmatprep.subr.mxu0 0.0
    %2213 = vmatpush2.msra.mxu0 0.0
    %2214 = vmatprep.subr.mxu0 0.0
    %2215 = vmatpush2.msra.mxu0 0.0
    %2216 = vmatprep.subr.mxu0 0.0
    %2217 = vmatpush2.msra.mxu0 0.0
    %2218 = vmatprep.subr.mxu0 0.0
    %2219 = vmatpush2.msra.mxu0 0.0
    %2220 = vmatprep.mubr.f32.mxu0 0.0
    %2221 = vmatmul.mubr.f32.gmra.mxu0 %v2154
    %v2222 = vpop.f32.mrf.mxu0
    %v2223 = vadd.f32 0.0, %v2222
    %v2224 = vpop.f32.mrf.mxu0
    %2225 = vdwg.mxu0
    %s2226 = scalar_lea.vmem %s10, 32
    %v2227 = vld [vmem:[%s2226] sm:$0xff]
    %v2228 = vld [vmem:[%s2226 + $0x8] sm:$0xff]
    %v2229 = vld [vmem:[%s2226 + $0x10] sm:$0xff]
    %v2230 = vld [vmem:[%s2226 + $0x18] sm:$0xff]
    %s2231 = scalar_lea.vmem %s11, 1
    %v2232 = vld [vmem:[%s2231] sm:$0x1]
    %v2234 = vlaneseq
    %v2235 = vshrl.u32 %v2234, 7
    %v2236 = vsub.s32 0, %v2235
    %v2237 = vrot.slane %v2232, %v2236
    %v2240 = vsel %vm146, %v2223, 0
    %2242 = vmatprep.subr.mxu0 0.0
    %2243 = vmatpush1.msra.mxu0 0.0
    %2244 = vmatprep.subr.mxu0 0.0
    %2245 = vmatpush1.msra.mxu0 0.0
    %2246 = vmatprep.subr.mxu0 0.0
    %2247 = vmatpush1.msra.mxu0 0.0
    %2248 = vmatprep.subr.mxu0 0.0
    %2249 = vmatpush1.msra.mxu0 0.0
    %2250 = vmatprep.subr.mxu0 0.0
    %2251 = vmatpush1.msra.mxu0 0.0
    %2252 = vmatprep.subr.mxu0 0.0
    %2253 = vmatpush1.msra.mxu0 0.0
    %2254 = vmatprep.subr.mxu0 0.0
    %2255 = vmatpush1.msra.mxu0 0.0
    %2256 = vmatprep.subr.mxu0 0.0
    %2257 = vmatpush1.msra.mxu0 0.0
    %2258 = vmatprep.subr.mxu0 0.0
    %2259 = vmatpush1.msra.mxu0 0.0
    %2260 = vmatprep.subr.mxu0 0.0
    %2261 = vmatpush1.msra.mxu0 0.0
    %2262 = vmatprep.subr.mxu0 0.0
    %2263 = vmatpush1.msra.mxu0 0.0
    %2264 = vmatprep.subr.mxu0 0.0
    %2265 = vmatpush1.msra.mxu0 0.0
    %2266 = vmatprep.subr.mxu0 0.0
    %2267 = vmatpush1.msra.mxu0 %v2230
    %2268 = vmatprep.subr.mxu0 0.0
    %2269 = vmatpush1.msra.mxu0 %v2229
    %2270 = vmatprep.subr.mxu0 0.0
    %2271 = vmatpush1.msra.mxu0 %v2228
    %2272 = vmatprep.subr.mxu0 0.0
    %2273 = vmatpush1.msra.mxu0 %v2227
    %2274 = vmatprep.subr.mxu0 0.0
    %2275 = vmatpush2.msra.mxu0 0.0
    %2276 = vmatprep.subr.mxu0 0.0
    %2277 = vmatpush2.msra.mxu0 0.0
    %2278 = vmatprep.subr.mxu0 0.0
    %2279 = vmatpush2.msra.mxu0 0.0
    %2280 = vmatprep.subr.mxu0 0.0
    %2281 = vmatpush2.msra.mxu0 0.0
    %2282 = vmatprep.subr.mxu0 0.0
    %2283 = vmatpush2.msra.mxu0 0.0
    %2284 = vmatprep.subr.mxu0 0.0
    %2285 = vmatpush2.msra.mxu0 0.0
    %2286 = vmatprep.subr.mxu0 0.0
    %2287 = vmatpush2.msra.mxu0 0.0
    %2288 = vmatprep.subr.mxu0 0.0
    %2289 = vmatpush2.msra.mxu0 0.0
    %2290 = vmatprep.subr.mxu0 0.0
    %2291 = vmatpush2.msra.mxu0 0.0
    %2292 = vmatprep.subr.mxu0 0.0
    %2293 = vmatpush2.msra.mxu0 0.0
    %2294 = vmatprep.subr.mxu0 0.0
    %2295 = vmatpush2.msra.mxu0 0.0
    %2296 = vmatprep.subr.mxu0 0.0
    %2297 = vmatpush2.msra.mxu0 0.0
    %2298 = vmatprep.subr.mxu0 0.0
    %2299 = vmatpush2.msra.mxu0 0.0
    %2300 = vmatprep.subr.mxu0 0.0
    %2301 = vmatpush2.msra.mxu0 0.0
    %2302 = vmatprep.subr.mxu0 0.0
    %2303 = vmatpush2.msra.mxu0 0.0
    %2304 = vmatprep.subr.mxu0 0.0
    %2305 = vmatpush2.msra.mxu0 0.0
    %2306 = vmatprep.mubr.f32.mxu0 0.0
    %2307 = vmatmul.mubr.f32.gmra.mxu0 %v2240
    %v2308 = vpop.f32.mrf.mxu0
    %v2309 = vadd.f32 %v2237, %v2308
    %v2310 = vpop.f32.mrf.mxu0
    %2311 = vdwg.mxu0
    %s2312 = scalar_lea.vmem %s12, 32
    %v2313 = vld [vmem:[%s2312] sm:$0xff]
    %v2314 = vld [vmem:[%s2312 + $0x8] sm:$0xff]
    %v2315 = vld [vmem:[%s2312 + $0x10] sm:$0xff]
    %v2316 = vld [vmem:[%s2312 + $0x18] sm:$0xff]
    %s2317 = scalar_lea.vmem %s13, 1
    %v2318 = vld [vmem:[%s2317] sm:$0x1]
    %v2320 = vlaneseq
    %v2321 = vshrl.u32 %v2320, 7
    %v2322 = vsub.s32 0, %v2321
    %v2323 = vrot.slane %v2318, %v2322
    %2325 = vmatprep.subr.mxu0 0.0
    %2326 = vmatpush1.msra.mxu0 0.0
    %2327 = vmatprep.subr.mxu0 0.0
    %2328 = vmatpush1.msra.mxu0 0.0
    %2329 = vmatprep.subr.mxu0 0.0
    %2330 = vmatpush1.msra.mxu0 0.0
    %2331 = vmatprep.subr.mxu0 0.0
    %2332 = vmatpush1.msra.mxu0 0.0
    %2333 = vmatprep.subr.mxu0 0.0
    %2334 = vmatpush1.msra.mxu0 0.0
    %2335 = vmatprep.subr.mxu0 0.0
    %2336 = vmatpush1.msra.mxu0 0.0
    %2337 = vmatprep.subr.mxu0 0.0
    %2338 = vmatpush1.msra.mxu0 0.0
    %2339 = vmatprep.subr.mxu0 0.0
    %2340 = vmatpush1.msra.mxu0 0.0
    %2341 = vmatprep.subr.mxu0 0.0
    %2342 = vmatpush1.msra.mxu0 0.0
    %2343 = vmatprep.subr.mxu0 0.0
    %2344 = vmatpush1.msra.mxu0 0.0
    %2345 = vmatprep.subr.mxu0 0.0
    %2346 = vmatpush1.msra.mxu0 0.0
    %2347 = vmatprep.subr.mxu0 0.0
    %2348 = vmatpush1.msra.mxu0 0.0
    %2349 = vmatprep.subr.mxu0 0.0
    %2350 = vmatpush1.msra.mxu0 %v2316
    %2351 = vmatprep.subr.mxu0 0.0
    %2352 = vmatpush1.msra.mxu0 %v2315
    %2353 = vmatprep.subr.mxu0 0.0
    %2354 = vmatpush1.msra.mxu0 %v2314
    %2355 = vmatprep.subr.mxu0 0.0
    %2356 = vmatpush1.msra.mxu0 %v2313
    %2357 = vmatprep.subr.mxu0 0.0
    %2358 = vmatpush2.msra.mxu0 0.0
    %2359 = vmatprep.subr.mxu0 0.0
    %2360 = vmatpush2.msra.mxu0 0.0
    %2361 = vmatprep.subr.mxu0 0.0
    %2362 = vmatpush2.msra.mxu0 0.0
    %2363 = vmatprep.subr.mxu0 0.0
    %2364 = vmatpush2.msra.mxu0 0.0
    %2365 = vmatprep.subr.mxu0 0.0
    %2366 = vmatpush2.msra.mxu0 0.0
    %2367 = vmatprep.subr.mxu0 0.0
    %2368 = vmatpush2.msra.mxu0 0.0
    %2369 = vmatprep.subr.mxu0 0.0
    %2370 = vmatpush2.msra.mxu0 0.0
    %2371 = vmatprep.subr.mxu0 0.0
    %2372 = vmatpush2.msra.mxu0 0.0
    %2373 = vmatprep.subr.mxu0 0.0
    %2374 = vmatpush2.msra.mxu0 0.0
    %2375 = vmatprep.subr.mxu0 0.0
    %2376 = vmatpush2.msra.mxu0 0.0
    %2377 = vmatprep.subr.mxu0 0.0
    %2378 = vmatpush2.msra.mxu0 0.0
    %2379 = vmatprep.subr.mxu0 0.0
    %2380 = vmatpush2.msra.mxu0 0.0
    %2381 = vmatprep.subr.mxu0 0.0
    %2382 = vmatpush2.msra.mxu0 0.0
    %2383 = vmatprep.subr.mxu0 0.0
    %2384 = vmatpush2.msra.mxu0 0.0
    %2385 = vmatprep.subr.mxu0 0.0
    %2386 = vmatpush2.msra.mxu0 0.0
    %2387 = vmatprep.subr.mxu0 0.0
    %2388 = vmatpush2.msra.mxu0 0.0
    %2389 = vmatprep.mubr.f32.mxu0 0.0
    %2390 = vmatmul.mubr.f32.gmra.mxu0 %v1473
    %v2391 = vpop.f32.mrf.mxu0
    %v2392 = vadd.f32 %v2323, %v2391
    %v2393 = vpop.f32.mrf.mxu0
    %2394 = vdwg.mxu0
    %s2395 = scalar_lea.vmem [#allocation8], 32
    %v2396 = vld [vmem:[%s2395] sm:$0xff]
    %v2397 = vld [vmem:[%s2395 + $0x8] sm:$0xff]
    %v2398 = vld [vmem:[%s2395 + $0x10] sm:$0xff]
    %v2399 = vld [vmem:[%s2395 + $0x18] sm:$0xff]
    %s2400 = scalar_lea.vmem %s15, 1
    %v2401 = vld [vmem:[%s2400] sm:$0x1]
    %v2403 = vlaneseq
    %v2404 = vshrl.u32 %v2403, 7
    %v2405 = vsub.s32 0, %v2404
    %v2406 = vrot.slane %v2401, %v2405
    %v2409 = vsel %vm146, %v2309, 0
    %2411 = vmatprep.subr.mxu0 0.0
    %2412 = vmatpush1.msra.mxu0 0.0
    %2413 = vmatprep.subr.mxu0 0.0
    %2414 = vmatpush1.msra.mxu0 0.0
    %2415 = vmatprep.subr.mxu0 0.0
    %2416 = vmatpush1.msra.mxu0 0.0
    %2417 = vmatprep.subr.mxu0 0.0
    %2418 = vmatpush1.msra.mxu0 0.0
    %2419 = vmatprep.subr.mxu0 0.0
    %2420 = vmatpush1.msra.mxu0 0.0
    %2421 = vmatprep.subr.mxu0 0.0
    %2422 = vmatpush1.msra.mxu0 0.0
    %2423 = vmatprep.subr.mxu0 0.0
    %2424 = vmatpush1.msra.mxu0 0.0
    %2425 = vmatprep.subr.mxu0 0.0
    %2426 = vmatpush1.msra.mxu0 0.0
    %2427 = vmatprep.subr.mxu0 0.0
    %2428 = vmatpush1.msra.mxu0 0.0
    %2429 = vmatprep.subr.mxu0 0.0
    %2430 = vmatpush1.msra.mxu0 0.0
    %2431 = vmatprep.subr.mxu0 0.0
    %2432 = vmatpush1.msra.mxu0 0.0
    %2433 = vmatprep.subr.mxu0 0.0
    %2434 = vmatpush1.msra.mxu0 0.0
    %2435 = vmatprep.subr.mxu0 0.0
    %2436 = vmatpush1.msra.mxu0 %v2399
    %2437 = vmatprep.subr.mxu0 0.0
    %2438 = vmatpush1.msra.mxu0 %v2398
    %2439 = vmatprep.subr.mxu0 0.0
    %2440 = vmatpush1.msra.mxu0 %v2397
    %2441 = vmatprep.subr.mxu0 0.0
    %2442 = vmatpush1.msra.mxu0 %v2396
    %2443 = vmatprep.subr.mxu0 0.0
    %2444 = vmatpush2.msra.mxu0 0.0
    %2445 = vmatprep.subr.mxu0 0.0
    %2446 = vmatpush2.msra.mxu0 0.0
    %2447 = vmatprep.subr.mxu0 0.0
    %2448 = vmatpush2.msra.mxu0 0.0
    %2449 = vmatprep.subr.mxu0 0.0
    %2450 = vmatpush2.msra.mxu0 0.0
    %2451 = vmatprep.subr.mxu0 0.0
    %2452 = vmatpush2.msra.mxu0 0.0
    %2453 = vmatprep.subr.mxu0 0.0
    %2454 = vmatpush2.msra.mxu0 0.0
    %2455 = vmatprep.subr.mxu0 0.0
    %2456 = vmatpush2.msra.mxu0 0.0
    %2457 = vmatprep.subr.mxu0 0.0
    %2458 = vmatpush2.msra.mxu0 0.0
    %2459 = vmatprep.subr.mxu0 0.0
    %2460 = vmatpush2.msra.mxu0 0.0
    %2461 = vmatprep.subr.mxu0 0.0
    %2462 = vmatpush2.msra.mxu0 0.0
    %2463 = vmatprep.subr.mxu0 0.0
    %2464 = vmatpush2.msra.mxu0 0.0
    %2465 = vmatprep.subr.mxu0 0.0
    %2466 = vmatpush2.msra.mxu0 0.0
    %2467 = vmatprep.subr.mxu0 0.0
    %2468 = vmatpush2.msra.mxu0 0.0
    %2469 = vmatprep.subr.mxu0 0.0
    %2470 = vmatpush2.msra.mxu0 0.0
    %2471 = vmatprep.subr.mxu0 0.0
    %2472 = vmatpush2.msra.mxu0 0.0
    %2473 = vmatprep.subr.mxu0 0.0
    %2474 = vmatpush2.msra.mxu0 0.0
    %2475 = vmatprep.mubr.f32.mxu0 0.0
    %2476 = vmatmul.mubr.f32.gmra.mxu0 %v2409
    %v2477 = vpop.f32.mrf.mxu0
    %v2478 = vadd.f32 %v2406, %v2477
    %v2479 = vpop.f32.mrf.mxu0
    %2480 = vdwg.mxu0
    %2482 = vrot.lane.b32.xlu0 %v2392, 96
    %v2483 = vpop.permute.xlu0 %2482
    %v2484 = vsel %vm146, %v2392, 0
    %v2486 = vsel %vm146, %v2483, 0
    %2488 = vmatprep.subr.mxu0 0.0
    %2489 = vmatpush1.xpose.msra.mxu0 0.0
    %2490 = vmatprep.subr.mxu0 0.0
    %2491 = vmatpush1.xpose.msra.mxu0 0.0
    %2492 = vmatprep.subr.mxu0 0.0
    %2493 = vmatpush1.xpose.msra.mxu0 0.0
    %2494 = vmatprep.subr.mxu0 0.0
    %2495 = vmatpush1.xpose.msra.mxu0 0.0
    %2496 = vmatprep.subr.mxu0 0.0
    %2497 = vmatpush1.xpose.msra.mxu0 0.0
    %2498 = vmatprep.subr.mxu0 0.0
    %2499 = vmatpush1.xpose.msra.mxu0 0.0
    %2500 = vmatprep.subr.mxu0 0.0
    %2501 = vmatpush1.xpose.msra.mxu0 0.0
    %2502 = vmatprep.subr.mxu0 0.0
    %2503 = vmatpush1.xpose.msra.mxu0 0.0
    %2504 = vmatprep.subr.mxu0 0.0
    %2505 = vmatpush1.xpose.msra.mxu0 0.0
    %2506 = vmatprep.subr.mxu0 0.0
    %2507 = vmatpush1.xpose.msra.mxu0 0.0
    %2508 = vmatprep.subr.mxu0 0.0
    %2509 = vmatpush1.xpose.msra.mxu0 0.0
    %2510 = vmatprep.subr.mxu0 0.0
    %2511 = vmatpush1.xpose.msra.mxu0 0.0
    %2512 = vmatprep.subr.mxu0 0.0
    %2513 = vmatpush1.xpose.msra.mxu0 0.0
    %2514 = vmatprep.subr.mxu0 0.0
    %2515 = vmatpush1.xpose.msra.mxu0 0.0
    %2516 = vmatprep.subr.mxu0 0.0
    %2517 = vmatpush1.xpose.msra.mxu0 0.0
    %2518 = vmatprep.subr.mxu0 0.0
    %2519 = vmatpush1.xpose.msra.mxu0 %v2486
    %2520 = vmatprep.subr.mxu0 0.0
    %2521 = vmatpush2.xpose.msra.mxu0 0.0
    %2522 = vmatprep.subr.mxu0 0.0
    %2523 = vmatpush2.xpose.msra.mxu0 0.0
    %2524 = vmatprep.subr.mxu0 0.0
    %2525 = vmatpush2.xpose.msra.mxu0 0.0
    %2526 = vmatprep.subr.mxu0 0.0
    %2527 = vmatpush2.xpose.msra.mxu0 0.0
    %2528 = vmatprep.subr.mxu0 0.0
    %2529 = vmatpush2.xpose.msra.mxu0 0.0
    %2530 = vmatprep.subr.mxu0 0.0
    %2531 = vmatpush2.xpose.msra.mxu0 0.0
    %2532 = vmatprep.subr.mxu0 0.0
    %2533 = vmatpush2.xpose.msra.mxu0 0.0
    %2534 = vmatprep.subr.mxu0 0.0
    %2535 = vmatpush2.xpose.msra.mxu0 0.0
    %2536 = vmatprep.subr.mxu0 0.0
    %2537 = vmatpush2.xpose.msra.mxu0 0.0
    %2538 = vmatprep.subr.mxu0 0.0
    %2539 = vmatpush2.xpose.msra.mxu0 0.0
    %2540 = vmatprep.subr.mxu0 0.0
    %2541 = vmatpush2.xpose.msra.mxu0 0.0
    %2542 = vmatprep.subr.mxu0 0.0
    %2543 = vmatpush2.xpose.msra.mxu0 0.0
    %2544 = vmatprep.subr.mxu0 0.0
    %2545 = vmatpush2.xpose.msra.mxu0 0.0
    %2546 = vmatprep.subr.mxu0 0.0
    %2547 = vmatpush2.xpose.msra.mxu0 0.0
    %2548 = vmatprep.subr.mxu0 0.0
    %2549 = vmatpush2.xpose.msra.mxu0 0.0
    %2550 = vmatprep.subr.mxu0 0.0
    %2551 = vmatpush2.xpose.msra.mxu0 0.0
    %2552 = vmatprep.mubr.f32.mxu0 0.0
    %2553 = vmatmul.mubr.f32.gmra.mxu0 %v2484
    %v2554 = vpop.f32.mrf.mxu0
    %v2555 = vadd.f32 0.0, %v2554
    %v2556 = vpop.f32.mrf.mxu0
    %2557 = vdwg.mxu0
    %v2558 = vsel %vm297, %v2555, -inf
    %2559 = vmax.xlane.f32.xlu0 %v2558
    %v2560 = vpop.xlane.xlu0 %2559
    %v2561 = vsub.f32 %v2555, %v2560
    %v2562 = vmul.f32 %v2561, 1.442695
    %v2563 = vpow.pop %v2562
    %v2564 = vsel %vm297, %v2563, 0.0
    %2565 = vadd.xlane.f32.xlu0 %v2564
    %v2566 = vpop.xlane.xlu0 %2565
    %v2567 = vrcp.pop %v2566
    %v2568 = vmul.f32 %v2563, %v2567
    %v2570 = vsel %vm297, %v2568, 0
    %2572 = vmatprep.subr.mxu0 0.0
    %2573 = vmatpush1.msra.mxu0 0.0
    %2574 = vmatprep.subr.mxu0 0.0
    %2575 = vmatpush1.msra.mxu0 0.0
    %2576 = vmatprep.subr.mxu0 0.0
    %2577 = vmatpush1.msra.mxu0 0.0
    %2578 = vmatprep.subr.mxu0 0.0
    %2579 = vmatpush1.msra.mxu0 0.0
    %2580 = vmatprep.subr.mxu0 0.0
    %2581 = vmatpush1.msra.mxu0 0.0
    %2582 = vmatprep.subr.mxu0 0.0
    %2583 = vmatpush1.msra.mxu0 0.0
    %2584 = vmatprep.subr.mxu0 0.0
    %2585 = vmatpush1.msra.mxu0 0.0
    %2586 = vmatprep.subr.mxu0 0.0
    %2587 = vmatpush1.msra.mxu0 0.0
    %2588 = vmatprep.subr.mxu0 0.0
    %2589 = vmatpush1.msra.mxu0 0.0
    %2590 = vmatprep.subr.mxu0 0.0
    %2591 = vmatpush1.msra.mxu0 0.0
    %2592 = vmatprep.subr.mxu0 0.0
    %2593 = vmatpush1.msra.mxu0 0.0
    %2594 = vmatprep.subr.mxu0 0.0
    %2595 = vmatpush1.msra.mxu0 0.0
    %2596 = vmatprep.subr.mxu0 0.0
    %2597 = vmatpush1.msra.mxu0 0.0
    %2598 = vmatprep.subr.mxu0 0.0
    %2599 = vmatpush1.msra.mxu0 0.0
    %2600 = vmatprep.subr.mxu0 0.0
    %2601 = vmatpush1.msra.mxu0 0.0
    %2602 = vmatprep.subr.mxu0 0.0
    %2603 = vmatpush1.msra.mxu0 %v2478
    %2604 = vmatprep.subr.mxu0 0.0
    %2605 = vmatpush2.msra.mxu0 0.0
    %2606 = vmatprep.subr.mxu0 0.0
    %2607 = vmatpush2.msra.mxu0 0.0
    %2608 = vmatprep.subr.mxu0 0.0
    %2609 = vmatpush2.msra.mxu0 0.0
    %2610 = vmatprep.subr.mxu0 0.0
    %2611 = vmatpush2.msra.mxu0 0.0
    %2612 = vmatprep.subr.mxu0 0.0
    %2613 = vmatpush2.msra.mxu0 0.0
    %2614 = vmatprep.subr.mxu0 0.0
    %2615 = vmatpush2.msra.mxu0 0.0
    %2616 = vmatprep.subr.mxu0 0.0
    %2617 = vmatpush2.msra.mxu0 0.0
    %2618 = vmatprep.subr.mxu0 0.0
    %2619 = vmatpush2.msra.mxu0 0.0
    %2620 = vmatprep.subr.mxu0 0.0
    %2621 = vmatpush2.msra.mxu0 0.0
    %2622 = vmatprep.subr.mxu0 0.0
    %2623 = vmatpush2.msra.mxu0 0.0
    %2624 = vmatprep.subr.mxu0 0.0
    %2625 = vmatpush2.msra.mxu0 0.0
    %2626 = vmatprep.subr.mxu0 0.0
    %2627 = vmatpush2.msra.mxu0 0.0
    %2628 = vmatprep.subr.mxu0 0.0
    %2629 = vmatpush2.msra.mxu0 0.0
    %2630 = vmatprep.subr.mxu0 0.0
    %2631 = vmatpush2.msra.mxu0 0.0
    %2632 = vmatprep.subr.mxu0 0.0
    %2633 = vmatpush2.msra.mxu0 0.0
    %2634 = vmatprep.subr.mxu0 0.0
    %2635 = vmatpush2.msra.mxu0 0.0
    %2636 = vmatprep.mubr.f32.mxu0 0.0
    %2637 = vmatmul.mubr.f32.gmra.mxu0 %v2570
    %v2638 = vpop.f32.mrf.mxu0
    %v2639 = vadd.f32 0.0, %v2638
    %v2640 = vpop.f32.mrf.mxu0
    %2641 = vdwg.mxu0
    %v2642 = vsel %vm146, %v2639, 0.0
    %2643 = vadd.xlane.f32.xlu0 %v2642
    %v2644 = vpop.xlane.xlu0 %2643
    %v2645 = vmul.f32 %v2644, %v388
    %v2646 = vsub.f32 %v2639, %v2645
    %v2647 = vmul.f32 %v2646, %v2646
    %v2648 = vsel %vm146, %v2647, 0.0
    %2649 = vadd.xlane.f32.xlu0 %v2648
    %v2650 = vpop.xlane.xlu0 %2649
    %v2651 = vmul.f32 %v2650, %v388
    %v2652 = vadd.f32 %v2651, 1e-05
    %v2653 = vrsqrt.pop %v2652
    %v2654 = vmul.f32 %v2646, %v2653
    %s2655 = scalar_lea.vmem [#allocation9], 32
    %v2656 = vld [vmem:[%s2655] sm:$0xff]
    %v2657 = vld [vmem:[%s2655 + $0x8] sm:$0xff]
    %v2658 = vld [vmem:[%s2655 + $0x10] sm:$0xff]
    %v2659 = vld [vmem:[%s2655 + $0x18] sm:$0xff]
    %s2660 = scalar_lea.vmem %s17, 1
    %v2661 = vld [vmem:[%s2660] sm:$0x1]
    %v2663 = vlaneseq
    %v2664 = vshrl.u32 %v2663, 7
    %v2665 = vsub.s32 0, %v2664
    %v2666 = vrot.slane %v2661, %v2665
    %v2669 = vsel %vm146, %v2654, 0
    %2671 = vmatprep.subr.mxu0 0.0
    %2672 = vmatpush1.msra.mxu0 0.0
    %2673 = vmatprep.subr.mxu0 0.0
    %2674 = vmatpush1.msra.mxu0 0.0
    %2675 = vmatprep.subr.mxu0 0.0
    %2676 = vmatpush1.msra.mxu0 0.0
    %2677 = vmatprep.subr.mxu0 0.0
    %2678 = vmatpush1.msra.mxu0 0.0
    %2679 = vmatprep.subr.mxu0 0.0
    %2680 = vmatpush1.msra.mxu0 0.0
    %2681 = vmatprep.subr.mxu0 0.0
    %2682 = vmatpush1.msra.mxu0 0.0
    %2683 = vmatprep.subr.mxu0 0.0
    %2684 = vmatpush1.msra.mxu0 0.0
    %2685 = vmatprep.subr.mxu0 0.0
    %2686 = vmatpush1.msra.mxu0 0.0
    %2687 = vmatprep.subr.mxu0 0.0
    %2688 = vmatpush1.msra.mxu0 0.0
    %2689 = vmatprep.subr.mxu0 0.0
    %2690 = vmatpush1.msra.mxu0 0.0
    %2691 = vmatprep.subr.mxu0 0.0
    %2692 = vmatpush1.msra.mxu0 0.0
    %2693 = vmatprep.subr.mxu0 0.0
    %2694 = vmatpush1.msra.mxu0 0.0
    %2695 = vmatprep.subr.mxu0 0.0
    %2696 = vmatpush1.msra.mxu0 %v2659
    %2697 = vmatprep.subr.mxu0 0.0
    %2698 = vmatpush1.msra.mxu0 %v2658
    %2699 = vmatprep.subr.mxu0 0.0
    %2700 = vmatpush1.msra.mxu0 %v2657
    %2701 = vmatprep.subr.mxu0 0.0
    %2702 = vmatpush1.msra.mxu0 %v2656
    %2703 = vmatprep.subr.mxu0 0.0
    %2704 = vmatpush2.msra.mxu0 0.0
    %2705 = vmatprep.subr.mxu0 0.0
    %2706 = vmatpush2.msra.mxu0 0.0
    %2707 = vmatprep.subr.mxu0 0.0
    %2708 = vmatpush2.msra.mxu0 0.0
    %2709 = vmatprep.subr.mxu0 0.0
    %2710 = vmatpush2.msra.mxu0 0.0
    %2711 = vmatprep.subr.mxu0 0.0
    %2712 = vmatpush2.msra.mxu0 0.0
    %2713 = vmatprep.subr.mxu0 0.0
    %2714 = vmatpush2.msra.mxu0 0.0
    %2715 = vmatprep.subr.mxu0 0.0
    %2716 = vmatpush2.msra.mxu0 0.0
    %2717 = vmatprep.subr.mxu0 0.0
    %2718 = vmatpush2.msra.mxu0 0.0
    %2719 = vmatprep.subr.mxu0 0.0
    %2720 = vmatpush2.msra.mxu0 0.0
    %2721 = vmatprep.subr.mxu0 0.0
    %2722 = vmatpush2.msra.mxu0 0.0
    %2723 = vmatprep.subr.mxu0 0.0
    %2724 = vmatpush2.msra.mxu0 0.0
    %2725 = vmatprep.subr.mxu0 0.0
    %2726 = vmatpush2.msra.mxu0 0.0
    %2727 = vmatprep.subr.mxu0 0.0
    %2728 = vmatpush2.msra.mxu0 0.0
    %2729 = vmatprep.subr.mxu0 0.0
    %2730 = vmatpush2.msra.mxu0 0.0
    %2731 = vmatprep.subr.mxu0 0.0
    %2732 = vmatpush2.msra.mxu0 0.0
    %2733 = vmatprep.subr.mxu0 0.0
    %2734 = vmatpush2.msra.mxu0 0.0
    %2735 = vmatprep.mubr.f32.mxu0 0.0
    %2736 = vmatmul.mubr.f32.gmra.mxu0 %v2669
    %v2737 = vpop.f32.mrf.mxu0
    %v2738 = vadd.f32 %v2666, %v2737
    %v2739 = vpop.f32.mrf.mxu0
    %2740 = vdwg.mxu0
    %v2741 = vmax.f32 %v2738, 0.0
    %s2742 = scalar_lea.vmem %s18, 64
    %v2743 = vld [vmem:[%s2742] sm:$0xff]
    %v2744 = vld [vmem:[%s2742 + $0x8] sm:$0xff]
    %v2745 = vld [vmem:[%s2742 + $0x10] sm:$0xff]
    %v2746 = vld [vmem:[%s2742 + $0x18] sm:$0xff]
    %v2747 = vld [vmem:[%s2742 + $0x20] sm:$0xff]
    %v2748 = vld [vmem:[%s2742 + $0x28] sm:$0xff]
    %v2749 = vld [vmem:[%s2742 + $0x30] sm:$0xff]
    %v2750 = vld [vmem:[%s2742 + $0x38] sm:$0xff]
    %s2751 = scalar_lea.vmem %s19, 1
    %v2752 = vld [vmem:[%s2751] sm:$0x1]
    %v2754 = vlaneseq
    %v2755 = vshrl.u32 %v2754, 7
    %v2756 = vsub.s32 0, %v2755
    %v2757 = vrot.slane %v2752, %v2756
    %v2760 = vsel %vm492, %v2741, 0
    %2762 = vmatprep.subr.mxu0 0.0
    %2763 = vmatpush1.msra.mxu0 0.0
    %2764 = vmatprep.subr.mxu0 0.0
    %2765 = vmatpush1.msra.mxu0 0.0
    %2766 = vmatprep.subr.mxu0 0.0
    %2767 = vmatpush1.msra.mxu0 0.0
    %2768 = vmatprep.subr.mxu0 0.0
    %2769 = vmatpush1.msra.mxu0 0.0
    %2770 = vmatprep.subr.mxu0 0.0
    %2771 = vmatpush1.msra.mxu0 0.0
    %2772 = vmatprep.subr.mxu0 0.0
    %2773 = vmatpush1.msra.mxu0 0.0
    %2774 = vmatprep.subr.mxu0 0.0
    %2775 = vmatpush1.msra.mxu0 0.0
    %2776 = vmatprep.subr.mxu0 0.0
    %2777 = vmatpush1.msra.mxu0 0.0
    %2778 = vmatprep.subr.mxu0 0.0
    %2779 = vmatpush1.msra.mxu0 %v2750
    %2780 = vmatprep.subr.mxu0 0.0
    %2781 = vmatpush1.msra.mxu0 %v2749
    %2782 = vmatprep.subr.mxu0 0.0
    %2783 = vmatpush1.msra.mxu0 %v2748
    %2784 = vmatprep.subr.mxu0 0.0
    %2785 = vmatpush1.msra.mxu0 %v2747
    %2786 = vmatprep.subr.mxu0 0.0
    %2787 = vmatpush1.msra.mxu0 %v2746
    %2788 = vmatprep.subr.mxu0 0.0
    %2789 = vmatpush1.msra.mxu0 %v2745
    %2790 = vmatprep.subr.mxu0 0.0
    %2791 = vmatpush1.msra.mxu0 %v2744
    %2792 = vmatprep.subr.mxu0 0.0
    %2793 = vmatpush1.msra.mxu0 %v2743
    %2794 = vmatprep.subr.mxu0 0.0
    %2795 = vmatpush2.msra.mxu0 0.0
    %2796 = vmatprep.subr.mxu0 0.0
    %2797 = vmatpush2.msra.mxu0 0.0
    %2798 = vmatprep.subr.mxu0 0.0
    %2799 = vmatpush2.msra.mxu0 0.0
    %2800 = vmatprep.subr.mxu0 0.0
    %2801 = vmatpush2.msra.mxu0 0.0
    %2802 = vmatprep.subr.mxu0 0.0
    %2803 = vmatpush2.msra.mxu0 0.0
    %2804 = vmatprep.subr.mxu0 0.0
    %2805 = vmatpush2.msra.mxu0 0.0
    %2806 = vmatprep.subr.mxu0 0.0
    %2807 = vmatpush2.msra.mxu0 0.0
    %2808 = vmatprep.subr.mxu0 0.0
    %2809 = vmatpush2.msra.mxu0 0.0
    %2810 = vmatprep.subr.mxu0 0.0
    %2811 = vmatpush2.msra.mxu0 0.0
    %2812 = vmatprep.subr.mxu0 0.0
    %2813 = vmatpush2.msra.mxu0 0.0
    %2814 = vmatprep.subr.mxu0 0.0
    %2815 = vmatpush2.msra.mxu0 0.0
    %2816 = vmatprep.subr.mxu0 0.0
    %2817 = vmatpush2.msra.mxu0 0.0
    %2818 = vmatprep.subr.mxu0 0.0
    %2819 = vmatpush2.msra.mxu0 0.0
    %2820 = vmatprep.subr.mxu0 0.0
    %2821 = vmatpush2.msra.mxu0 0.0
    %2822 = vmatprep.subr.mxu0 0.0
    %2823 = vmatpush2.msra.mxu0 0.0
    %2824 = vmatprep.subr.mxu0 0.0
    %2825 = vmatpush2.msra.mxu0 0.0
    %2826 = vmatprep.mubr.f32.mxu0 0.0
    %2827 = vmatmul.mubr.f32.gmra.mxu0 %v2760
    %v2828 = vpop.f32.mrf.mxu0
    %v2829 = vadd.f32 %v2757, %v2828
    %v2830 = vpop.f32.mrf.mxu0
    %2831 = vdwg.mxu0
    %v2832 = vadd.f32 %v2309, %v2829
    %v2833 = vld [vmem:[%s22] sm:$0x1]
    %v2834 = vld [vmem:[#allocation2] sm:$0x1]
    %2836 = vset.pattern.permute.xlu0 0
    %2837 = vperm.xlu0 %2836, %v2834
    %v2838 = vpop.permute.xlu0 %2837
    %v2840 = vlaneseq
    %v2841 = vshrl.u32 %v2840, 7
    %v2842 = vsub.s32 0, %v2841
    %v2843 = vrot.slane %v2838, %v2842
    %v2845 = vsel %vm297, %v2833, 0
    %2847 = vmatprep.subr.mxu0 0.0
    %2848 = vmatpush1.msra.mxu0 0.0
    %2849 = vmatprep.subr.mxu0 0.0
    %2850 = vmatpush1.msra.mxu0 0.0
    %2851 = vmatprep.subr.mxu0 0.0
    %2852 = vmatpush1.msra.mxu0 0.0
    %2853 = vmatprep.subr.mxu0 0.0
    %2854 = vmatpush1.msra.mxu0 0.0
    %2855 = vmatprep.subr.mxu0 0.0
    %2856 = vmatpush1.msra.mxu0 0.0
    %2857 = vmatprep.subr.mxu0 0.0
    %2858 = vmatpush1.msra.mxu0 0.0
    %2859 = vmatprep.subr.mxu0 0.0
    %2860 = vmatpush1.msra.mxu0 0.0
    %2861 = vmatprep.subr.mxu0 0.0
    %2862 = vmatpush1.msra.mxu0 0.0
    %2863 = vmatprep.subr.mxu0 0.0
    %2864 = vmatpush1.msra.mxu0 0.0
    %2865 = vmatprep.subr.mxu0 0.0
    %2866 = vmatpush1.msra.mxu0 0.0
    %2867 = vmatprep.subr.mxu0 0.0
    %2868 = vmatpush1.msra.mxu0 0.0
    %2869 = vmatprep.subr.mxu0 0.0
    %2870 = vmatpush1.msra.mxu0 0.0
    %2871 = vmatprep.subr.mxu0 0.0
    %2872 = vmatpush1.msra.mxu0 0.0
    %2873 = vmatprep.subr.mxu0 0.0
    %2874 = vmatpush1.msra.mxu0 0.0
    %2875 = vmatprep.subr.mxu0 0.0
    %2876 = vmatpush1.msra.mxu0 0.0
    %2877 = vmatprep.subr.mxu0 0.0
    %2878 = vmatpush1.msra.mxu0 %v2832
    %2879 = vmatprep.subr.mxu0 0.0
    %2880 = vmatpush2.msra.mxu0 0.0
    %2881 = vmatprep.subr.mxu0 0.0
    %2882 = vmatpush2.msra.mxu0 0.0
    %2883 = vmatprep.subr.mxu0 0.0
    %2884 = vmatpush2.msra.mxu0 0.0
    %2885 = vmatprep.subr.mxu0 0.0
    %2886 = vmatpush2.msra.mxu0 0.0
    %2887 = vmatprep.subr.mxu0 0.0
    %2888 = vmatpush2.msra.mxu0 0.0
    %2889 = vmatprep.subr.mxu0 0.0
    %2890 = vmatpush2.msra.mxu0 0.0
    %2891 = vmatprep.subr.mxu0 0.0
    %2892 = vmatpush2.msra.mxu0 0.0
    %2893 = vmatprep.subr.mxu0 0.0
    %2894 = vmatpush2.msra.mxu0 0.0
    %2895 = vmatprep.subr.mxu0 0.0
    %2896 = vmatpush2.msra.mxu0 0.0
    %2897 = vmatprep.subr.mxu0 0.0
    %2898 = vmatpush2.msra.mxu0 0.0
    %2899 = vmatprep.subr.mxu0 0.0
    %2900 = vmatpush2.msra.mxu0 0.0
    %2901 = vmatprep.subr.mxu0 0.0
    %2902 = vmatpush2.msra.mxu0 0.0
    %2903 = vmatprep.subr.mxu0 0.0
    %2904 = vmatpush2.msra.mxu0 0.0
    %2905 = vmatprep.subr.mxu0 0.0
    %2906 = vmatpush2.msra.mxu0 0.0
    %2907 = vmatprep.subr.mxu0 0.0
    %2908 = vmatpush2.msra.mxu0 0.0
    %2909 = vmatprep.subr.mxu0 0.0
    %2910 = vmatpush2.msra.mxu0 0.0
    %2911 = vmatprep.mubr.f32.mxu0 0.0
    %2912 = vmatmul.mubr.f32.gmra.mxu0 %v2845
    %v2913 = vpop.f32.mrf.mxu0
    %v2914 = vadd.f32 %v2843, %v2913
    %v2915 = vpop.f32.mrf.mxu0
    %2916 = vdwg.mxu0
    %vm2917 = vcmask 253952
    %2918 = vst.msk [vmem:[#allocation11] sm:$0x1] %vm2917, %v2914
    // Predicated region
    $region114: #{tpu_custom_call.1} parent=1 // pred_check
      _
    $region115: #{tpu_custom_call.1} parent=1 // pred_check_branch
      %2920 = sbr.rel (0) target = $region117
    $region116: #{tpu_custom_call.1} parent=1 // pred_region
      %s2922 = ssub.s32 16, 16
      %2923 = vsyncadd [#allocation5], %s2922
      %s2925 = sshll.u32 [#allocation11], 4
      %s2926 = int_to_ptr.vmem [resolvable:$true] %s2925
      %2928 = dma.vmem_to_hbm [thread:$0]  %s2926, 16, %s24, [#allocation5]
    $region117: #{tpu_custom_call.1} parent=1 // pred_fallthru
      _
    // Predicated region
    $region118: #{tpu_custom_call.1} parent=1 // pred_check
      _
    $region119: #{tpu_custom_call.1} parent=1 // pred_check_branch
      %2930 = sbr.rel (0) target = $region121
    $region120: #{tpu_custom_call.1} parent=1 // pred_region
      %2931 = dma.done [#allocation5], 16
    $region121: #{tpu_custom_call.1} parent=1 // pred_fallthru
      _
    %2932 = vsyncpa [#allocation4], 1
    %2933 = vsyncpa [#allocation7], 1
    %2934 = vsyncpa [#allocation10], 1
    %2935 = vsyncpa [#allocation5], 1

</llo_original>
